<compile_context>
chip_gen: v7x
topology: tpu7x:2x2x1
jax: 0.10.0
libtpu: 0.0.40
codegen_flags: <defaults>
</compile_context>

<pallas_src>
import functools

import numpy as np
import jax
import jax.numpy as jnp
from jax.experimental import pallas as pl
from jax.experimental.pallas import tpu as pltpu


# ---------------------------------------------------------------------------
# Pallas kernel: fused Conv3d(GEMM) + BN shift + ReLU + MaxPool3d(2)
# ---------------------------------------------------------------------------
def conv_bn_relu_pool_kernel(p_ref, w_ref, shift_ref, o_ref):
    # p_ref:     (8, Kp, tP)  bf16/f32  im2col patches, one slab per 2x2x2 pool position
    # w_ref:     (Cout, Kp)   bf16/f32  conv weights with BN scale folded in (f32 fold)
    # shift_ref: (Cout, 1)    f32       folded BN shift = beta + (bias - mean) * scale
    # o_ref:     (Cout, tP)              ReLU(maxpool) output tile
    w = w_ref[...]
    acc = jnp.dot(w, p_ref[0], preferred_element_type=jnp.float32)
    for t in range(1, 8):                       # unrolled: 8 matmuls, max-reduce in regs
        acc = jnp.maximum(acc, jnp.dot(w, p_ref[t], preferred_element_type=jnp.float32))
    o_ref[...] = jnp.maximum(acc + shift_ref[...], 0.0).astype(o_ref.dtype)


# ---------------------------------------------------------------------------
# Wrapper (glue: padding, pooled-window im2col, K/P padding, dtype casts)
# ---------------------------------------------------------------------------
def _round_up(x, m):
    return ((x + m - 1) // m) * m


def _pick_p_tile(p_pad, k_pad, itemsize):
    """Largest multiple-of-128 tile of the padded pooled-voxel axis that divides
    it and keeps the (8, Kp, tP) patch block under ~4 MiB (x2 for the default
    double-buffering -> fits the smallest default scoped VMEM, v5e's 16 MiB)."""
    max_tp = max(128, (4 * 1024 * 1024) // (8 * k_pad * itemsize))
    tp = min(p_pad, 2048, max_tp)
    tp = max(128, (tp // 128) * 128)
    while p_pad % tp:
        tp -= 128
    return tp


def conv3d_bn_relu_pool(x, w, scale, shift, *,
                        compute_dtype=jnp.bfloat16, out_dtype=jnp.float32):
    """One fused PerceptionNet block.

    x:     (N, Cin, D, H, W)    NCDHW (D, H, W even)
    w:     (Cout, Cin, 3, 3, 3) PyTorch Conv3d weight layout
    scale: (Cout,) folded BN scale;  shift: (Cout,) folded BN shift (incl. conv bias)
    returns (N, Cout, D//2, H//2, W//2) = MaxPool3d(2)(ReLU(BN(Conv3d(x))))
    """
    N, Cin, D, H, W = x.shape
    Cout = w.shape[0]
    assert D % 2 == 0 and H % 2 == 0 and W % 2 == 0, "MaxPool3d(2) path assumes even dims"
    Do, Ho, Wo = D // 2, H // 2, W // 2
    P = Do * Ho * Wo
    K = Cin * 27
    Kp = _round_up(K, 128)                     # lane-aligned contraction dim for the MXU
    Ppad = _round_up(P, 128)                   # lane-dense output / unmasked stores

    # --- glue: pooled-window im2col (TODO(synk): move in-kernel, see header) --
    # patches[n, t=(td,th,tw), k=(cin,kd,kh,kw), p=(do,ho,wo)]
    #     = xpad[n, cin, 2*do + td + kd, 2*ho + th + kh, 2*wo + tw + kw]
    xpad = jnp.pad(x, ((0, 0), (0, 0), (1, 1), (1, 1), (1, 1)))
    windows = []
    for td in range(2):
        for th in range(2):
            for tw in range(2):
                taps = []
                for kd in range(3):
                    for kh in range(3):
                        for kw in range(3):
                            sd, sh, sw = td + kd, th + kh, tw + kw
                            taps.append(jax.lax.slice(
                                xpad,
                                (0, 0, sd, sh, sw),
                                (N, Cin, sd + 2 * Do - 1, sh + 2 * Ho - 1, sw + 2 * Wo - 1),
                                (1, 1, 2, 2, 2)))              # (N, Cin, Do, Ho, Wo)
                tap_block = jnp.stack(taps, axis=2)            # (N, Cin, 27, Do, Ho, Wo)
                windows.append(tap_block.reshape(N, K, P))
    patches = jnp.stack(windows, axis=1)                       # (N, 8, K, P)
    patches = jnp.pad(patches, ((0, 0), (0, 0), (0, Kp - K), (0, Ppad - P)))
    patches = patches.astype(compute_dtype)                    # (N, 8, Kp, Ppad)

    # Fold BN scale into the weights in f32, then cast (exact fold, bf16 cast last).
    w2 = (w.astype(jnp.float32)
          * scale.astype(jnp.float32)[:, None, None, None, None]).reshape(Cout, K)
    w2 = jnp.pad(w2, ((0, 0), (0, Kp - K))).astype(compute_dtype)
    shift2 = shift.reshape(Cout, 1).astype(jnp.float32)

    tP = _pick_p_tile(Ppad, Kp, jnp.dtype(compute_dtype).itemsize)
    grid = (N, Ppad // tP)                                      # both axes parallel

    out = pl.pallas_call(
        conv_bn_relu_pool_kernel,
        out_shape=jax.ShapeDtypeStruct((N, Cout, Ppad), out_dtype),
        grid=grid,
        in_specs=[
            pl.BlockSpec((None, 8, Kp, tP), lambda n, j: (n, 0, 0, j)),
            pl.BlockSpec((Cout, Kp), lambda n, j: (0, 0)),
            pl.BlockSpec((Cout, 1), lambda n, j: (0, 0)),
        ],
        out_specs=pl.BlockSpec((None, Cout, tP), lambda n, j: (n, 0, j)),
        compiler_params=pltpu.CompilerParams(
            dimension_semantics=("parallel", "parallel")),
    )(patches, w2, shift2)

    if Ppad != P:
        out = out[:, :, :P]
    return out.reshape(N, Cout, Do, Ho, Wo)                    # already NCDHW


def perception_net_forward(x, params, *, compute_dtype=jnp.bfloat16):
    """x: (N, 3, D, H, W) NCDHW -> (N, 32 * D//4 * H//4 * W//4) float32."""
    # Inter-layer activation in bf16 on the fast path (f32 on the check path).
    inter_dtype = (jnp.bfloat16
                   if jnp.dtype(compute_dtype) == jnp.dtype(jnp.bfloat16)
                   else jnp.float32)
    x = conv3d_bn_relu_pool(x, params["w1"], params["s1"], params["t1"],
                            compute_dtype=compute_dtype, out_dtype=inter_dtype)
    x = conv3d_bn_relu_pool(x, params["w2"], params["s2"], params["t2"],
                            compute_dtype=compute_dtype, out_dtype=jnp.float32)
    return x.reshape(x.shape[0], -1)           # NCDHW flatten == torch .view(N, -1)


# ---------------------------------------------------------------------------
# Pure-JAX reference (for the in-script correctness check)
# ---------------------------------------------------------------------------
def _reference_forward(x, params):
    def block(x, w, scale, shift):
        y = jax.lax.conv_general_dilated(
            x, w, window_strides=(1, 1, 1),
            padding=((1, 1), (1, 1), (1, 1)),
            dimension_numbers=("NCDHW", "OIDHW", "NCDHW"),
            precision=jax.lax.Precision.HIGHEST)
        y = y * scale.reshape(1, -1, 1, 1, 1) + shift.reshape(1, -1, 1, 1, 1)
        y = jnp.maximum(y, 0.0)
        return jax.lax.reduce_window(y, -jnp.inf, jax.lax.max,
                                     (1, 1, 2, 2, 2), (1, 1, 2, 2, 2), "VALID")
    x = block(x, params["w1"], params["s1"], params["t1"])
    x = block(x, params["w2"], params["s2"], params["t2"])
    return x.reshape(x.shape[0], -1)


# ---------------------------------------------------------------------------
# Deterministic parameter init (shapes from PerceptionNet.__init__)
# ---------------------------------------------------------------------------
def _make_block_params(key, cin, cout):
    kw_, kb, kg, kbeta, km, kv = jax.random.split(key, 6)
    fan_in = cin * 27
    # PyTorch Conv3d weight layout: (Cout, Cin, kd, kh, kw).
    w = jax.random.normal(kw_, (cout, cin, 3, 3, 3), jnp.float32) / np.sqrt(fan_in)
    bias = 0.05 * jax.random.normal(kb, (cout,), jnp.float32)
    gamma = jax.random.uniform(kg, (cout,), jnp.float32, 0.5, 1.5)
    beta = 0.1 * jax.random.normal(kbeta, (cout,), jnp.float32)
    running_mean = 0.1 * jax.random.normal(km, (cout,), jnp.float32)
    running_var = jax.random.uniform(kv, (cout,), jnp.float32, 0.5, 1.5)
    eps = 1e-5
    scale = gamma / jnp.sqrt(running_var + eps)          # folded BN scale
    shift = beta + (bias - running_mean) * scale         # folded BN shift (+ conv bias)
    return w, scale, shift


def init_params(key):
    k1, k2 = jax.random.split(key)
    w1, s1, t1 = _make_block_params(k1, 3, 16)
    w2, s2, t2 = _make_block_params(k2, 16, 32)
    return {"w1": w1, "s1": s1, "t1": t1, "w2": w2, "s2": s2, "t2": t2}


# ---------------------------------------------------------------------------
if __name__ == "__main__":
    key = jax.random.PRNGKey(0)
    k_param, k_x = jax.random.split(key)

    params = init_params(k_param)
    # Small video chunk: batch=2, 3 channels, 8 frames, 16x16 spatial (NCDHW).
    x = jax.random.normal(k_x, (2, 3, 8, 16, 16), jnp.float32)

    # Fast path (bf16 MXU operands + bf16 inter-layer activation, f32 accumulation).
    fwd = jax.jit(perception_net_forward)
    out = jax.block_until_ready(fwd(x, params))

    expected = (2, 32 * 2 * 4 * 4)          # (N, 32 * D/4 * H/4 * W/4) = (2, 1024)
    assert out.shape == expected, (out.shape, expected)
    assert bool(jnp.all(jnp.isfinite(out)))

    # Structural correctness: f32-compute kernel vs. pure-JAX reference (tight).
    fwd_f32 = jax.jit(functools.partial(perception_net_forward,
                                        compute_dtype=jnp.float32))
    out_f32 = jax.block_until_ready(fwd_f32(x, params))
    ref = jax.block_until_ready(jax.jit(_reference_forward)(x, params))
    err_f32 = float(jnp.max(jnp.abs(out_f32 - ref)))
    assert err_f32 < 1e-2, f"f32 kernel mismatch vs reference: max abs err {err_f32}"

    # bf16 fast path vs. reference (loose: bf16 operands + bf16 inter-layer act).
    err_bf16 = float(jnp.max(jnp.abs(out - ref)))
    assert err_bf16 < 0.5, f"bf16 kernel mismatch vs reference: max abs err {err_bf16}"

    print("KERNEL_OK")
</pallas_src>

<mosaic_0001>
module attributes {stable_mosaic.version = 11 : i64} {
  func.func @conv_bn_relu_pool_kernel(%arg0: i32, %arg1: i32, %arg2: memref<1x8x128x256xbf16, #tpu.memory_space<vmem>>, %arg3: memref<16x128xbf16, #tpu.memory_space<vmem>>, %arg4: memref<16x1xf32, #tpu.memory_space<vmem>>, %arg5: memref<1x16x256xbf16, #tpu.memory_space<vmem>>) attributes {dimension_semantics = [#tpu.dimension_semantics<parallel>, #tpu.dimension_semantics<parallel>], iteration_bounds = array<i64: 2, 1>, scalar_prefetch = 0 : i64, scratch_operands = 0 : i64, tpu.core_type = #tpu.core_type<tc>, window_params = [{transform_indices = @transform_0, window_bounds = array<i64: 1, 8, 128, 256>}, {pipeline_mode = #tpu.pipeline_mode<synchronous>, transform_indices = @transform_1, window_bounds = array<i64: 16, 128>}, {pipeline_mode = #tpu.pipeline_mode<synchronous>, transform_indices = @transform_2, window_bounds = array<i64: 16, 1>}, {transform_indices = @transform_3, window_bounds = array<i64: 1, 16, 256>}]} {
    %c0 = arith.constant 0 : index
    %c0_0 = arith.constant 0 : index
    %0 = vector.load %arg3[%c0, %c0_0] : memref<16x128xbf16, #tpu.memory_space<vmem>>, vector<16x128xbf16>
    %c0_1 = arith.constant 0 : index
    %c0_2 = arith.constant 0 : index
    %c0_3 = arith.constant 0 : index
    %c0_4 = arith.constant 0 : index
    %1 = vector.load %arg2[%c0_1, %c0_2, %c0_3, %c0_4] : memref<1x8x128x256xbf16, #tpu.memory_space<vmem>>, vector<1x1x128x256xbf16>
    %2 = vector.shape_cast %1 : vector<1x1x128x256xbf16> to vector<128x256xbf16>
    %cst = arith.constant dense<0.000000e+00> : vector<16x256xf32>
    %3 = tpu.matmul %0, %2, %cst {dimension_numbers = #tpu.dot_dimension_numbers<[1], [0], [0], [1], [0, 0, 1, 1], [], []>} : vector<16x128xbf16>, vector<128x256xbf16>, vector<16x256xf32> -> vector<16x256xf32>
    %c0_5 = arith.constant 0 : index
    %c1 = arith.constant 1 : index
    %c0_6 = arith.constant 0 : index
    %c0_7 = arith.constant 0 : index
    %4 = vector.load %arg2[%c0_5, %c1, %c0_6, %c0_7] : memref<1x8x128x256xbf16, #tpu.memory_space<vmem>>, vector<1x1x128x256xbf16>
    %5 = vector.shape_cast %4 : vector<1x1x128x256xbf16> to vector<128x256xbf16>
    %cst_8 = arith.constant dense<0.000000e+00> : vector<16x256xf32>
    %6 = tpu.matmul %0, %5, %cst_8 {dimension_numbers = #tpu.dot_dimension_numbers<[1], [0], [0], [1], [0, 0, 1, 1], [], []>} : vector<16x128xbf16>, vector<128x256xbf16>, vector<16x256xf32> -> vector<16x256xf32>
    %7 = arith.maximumf %3, %6 : vector<16x256xf32>
    %c0_9 = arith.constant 0 : index
    %c2 = arith.constant 2 : index
    %c0_10 = arith.constant 0 : index
    %c0_11 = arith.constant 0 : index
    %8 = vector.load %arg2[%c0_9, %c2, %c0_10, %c0_11] : memref<1x8x128x256xbf16, #tpu.memory_space<vmem>>, vector<1x1x128x256xbf16>
    %9 = vector.shape_cast %8 : vector<1x1x128x256xbf16> to vector<128x256xbf16>
    %cst_12 = arith.constant dense<0.000000e+00> : vector<16x256xf32>
    %10 = tpu.matmul %0, %9, %cst_12 {dimension_numbers = #tpu.dot_dimension_numbers<[1], [0], [0], [1], [0, 0, 1, 1], [], []>} : vector<16x128xbf16>, vector<128x256xbf16>, vector<16x256xf32> -> vector<16x256xf32>
    %11 = arith.maximumf %7, %10 : vector<16x256xf32>
    %c0_13 = arith.constant 0 : index
    %c3 = arith.constant 3 : index
    %c0_14 = arith.constant 0 : index
    %c0_15 = arith.constant 0 : index
    %12 = vector.load %arg2[%c0_13, %c3, %c0_14, %c0_15] : memref<1x8x128x256xbf16, #tpu.memory_space<vmem>>, vector<1x1x128x256xbf16>
    %13 = vector.shape_cast %12 : vector<1x1x128x256xbf16> to vector<128x256xbf16>
    %cst_16 = arith.constant dense<0.000000e+00> : vector<16x256xf32>
    %14 = tpu.matmul %0, %13, %cst_16 {dimension_numbers = #tpu.dot_dimension_numbers<[1], [0], [0], [1], [0, 0, 1, 1], [], []>} : vector<16x128xbf16>, vector<128x256xbf16>, vector<16x256xf32> -> vector<16x256xf32>
    %15 = arith.maximumf %11, %14 : vector<16x256xf32>
    %c0_17 = arith.constant 0 : index
    %c4 = arith.constant 4 : index
    %c0_18 = arith.constant 0 : index
    %c0_19 = arith.constant 0 : index
    %16 = vector.load %arg2[%c0_17, %c4, %c0_18, %c0_19] : memref<1x8x128x256xbf16, #tpu.memory_space<vmem>>, vector<1x1x128x256xbf16>
    %17 = vector.shape_cast %16 : vector<1x1x128x256xbf16> to vector<128x256xbf16>
    %cst_20 = arith.constant dense<0.000000e+00> : vector<16x256xf32>
    %18 = tpu.matmul %0, %17, %cst_20 {dimension_numbers = #tpu.dot_dimension_numbers<[1], [0], [0], [1], [0, 0, 1, 1], [], []>} : vector<16x128xbf16>, vector<128x256xbf16>, vector<16x256xf32> -> vector<16x256xf32>
    %19 = arith.maximumf %15, %18 : vector<16x256xf32>
    %c0_21 = arith.constant 0 : index
    %c5 = arith.constant 5 : index
    %c0_22 = arith.constant 0 : index
    %c0_23 = arith.constant 0 : index
    %20 = vector.load %arg2[%c0_21, %c5, %c0_22, %c0_23] : memref<1x8x128x256xbf16, #tpu.memory_space<vmem>>, vector<1x1x128x256xbf16>
    %21 = vector.shape_cast %20 : vector<1x1x128x256xbf16> to vector<128x256xbf16>
    %cst_24 = arith.constant dense<0.000000e+00> : vector<16x256xf32>
    %22 = tpu.matmul %0, %21, %cst_24 {dimension_numbers = #tpu.dot_dimension_numbers<[1], [0], [0], [1], [0, 0, 1, 1], [], []>} : vector<16x128xbf16>, vector<128x256xbf16>, vector<16x256xf32> -> vector<16x256xf32>
    %23 = arith.maximumf %19, %22 : vector<16x256xf32>
    %c0_25 = arith.constant 0 : index
    %c6 = arith.constant 6 : index
    %c0_26 = arith.constant 0 : index
    %c0_27 = arith.constant 0 : index
    %24 = vector.load %arg2[%c0_25, %c6, %c0_26, %c0_27] : memref<1x8x128x256xbf16, #tpu.memory_space<vmem>>, vector<1x1x128x256xbf16>
    %25 = vector.shape_cast %24 : vector<1x1x128x256xbf16> to vector<128x256xbf16>
    %cst_28 = arith.constant dense<0.000000e+00> : vector<16x256xf32>
    %26 = tpu.matmul %0, %25, %cst_28 {dimension_numbers = #tpu.dot_dimension_numbers<[1], [0], [0], [1], [0, 0, 1, 1], [], []>} : vector<16x128xbf16>, vector<128x256xbf16>, vector<16x256xf32> -> vector<16x256xf32>
    %27 = arith.maximumf %23, %26 : vector<16x256xf32>
    %c0_29 = arith.constant 0 : index
    %c7 = arith.constant 7 : index
    %c0_30 = arith.constant 0 : index
    %c0_31 = arith.constant 0 : index
    %28 = vector.load %arg2[%c0_29, %c7, %c0_30, %c0_31] : memref<1x8x128x256xbf16, #tpu.memory_space<vmem>>, vector<1x1x128x256xbf16>
    %29 = vector.shape_cast %28 : vector<1x1x128x256xbf16> to vector<128x256xbf16>
    %cst_32 = arith.constant dense<0.000000e+00> : vector<16x256xf32>
    %30 = tpu.matmul %0, %29, %cst_32 {dimension_numbers = #tpu.dot_dimension_numbers<[1], [0], [0], [1], [0, 0, 1, 1], [], []>} : vector<16x128xbf16>, vector<128x256xbf16>, vector<16x256xf32> -> vector<16x256xf32>
    %31 = arith.maximumf %27, %30 : vector<16x256xf32>
    %c0_33 = arith.constant 0 : index
    %c0_34 = arith.constant 0 : index
    %32 = vector.load %arg4[%c0_33, %c0_34] : memref<16x1xf32, #tpu.memory_space<vmem>>, vector<16x1xf32>
    %33 = vector.broadcast %32 : vector<16x1xf32> to vector<16x256xf32>
    %34 = arith.addf %31, %33 : vector<16x256xf32>
    %cst_35 = arith.constant 0.000000e+00 : f32
    %35 = vector.broadcast %cst_35 : f32 to vector<16x256xf32>
    %36 = arith.maximumf %34, %35 : vector<16x256xf32>
    %37 = arith.truncf %36 : vector<16x256xf32> to vector<16x256xbf16>
    %c0_36 = arith.constant 0 : index
    %c0_37 = arith.constant 0 : index
    %c0_38 = arith.constant 0 : index
    %38 = vector.load %arg5[%c0_36, %c0_37, %c0_38] : memref<1x16x256xbf16, #tpu.memory_space<vmem>>, vector<1x16x256xbf16>
    %39 = vector.shape_cast %38 : vector<1x16x256xbf16> to vector<16x256xbf16>
    %40 = vector.shape_cast %37 : vector<16x256xbf16> to vector<1x16x256xbf16>
    tpu.vector_store %arg5[%c0_36, %c0_37, %c0_38], %40 {strides = array<i32>} : memref<1x16x256xbf16, #tpu.memory_space<vmem>>, vector<1x16x256xbf16>,
    return
  }
  func.func @transform_0(%arg0: i32, %arg1: i32) -> (i32, i32, i32, i32) {
    %c0_i32 = arith.constant 0 : i32
    %c0_i32_0 = arith.constant 0 : i32
    %c0_i32_1 = arith.constant 0 : i32
    return %arg0, %c0_i32, %c0_i32_0, %arg1 : i32, i32, i32, i32
  }
  func.func @transform_1(%arg0: i32, %arg1: i32) -> (i32, i32) {
    %c0_i32 = arith.constant 0 : i32
    %c0_i32_0 = arith.constant 0 : i32
    %c0_i32_1 = arith.constant 0 : i32
    return %c0_i32, %c0_i32_0 : i32, i32
  }
  func.func @transform_2(%arg0: i32, %arg1: i32) -> (i32, i32) {
    %c0_i32 = arith.constant 0 : i32
    %c0_i32_0 = arith.constant 0 : i32
    %c0_i32_1 = arith.constant 0 : i32
    return %c0_i32, %c0_i32_0 : i32, i32
  }
  func.func @transform_3(%arg0: i32, %arg1: i32) -> (i32, i32, i32) {
    %c0_i32 = arith.constant 0 : i32
    %c0_i32_0 = arith.constant 0 : i32
    return %arg0, %c0_i32, %arg1 : i32, i32, i32
  }
}

module attributes {stable_mosaic.version = 11 : i64} {
  func.func @conv_bn_relu_pool_kernel(%arg0: i32, %arg1: i32, %arg2: memref<1x8x512x128xbf16, #tpu.memory_space<vmem>>, %arg3: memref<32x512xbf16, #tpu.memory_space<vmem>>, %arg4: memref<32x1xf32, #tpu.memory_space<vmem>>, %arg5: memref<1x32x128xf32, #tpu.memory_space<vmem>>) attributes {dimension_semantics = [#tpu.dimension_semantics<parallel>, #tpu.dimension_semantics<parallel>], iteration_bounds = array<i64: 2, 1>, scalar_prefetch = 0 : i64, scratch_operands = 0 : i64, tpu.core_type = #tpu.core_type<tc>, window_params = [{transform_indices = @transform_0, window_bounds = array<i64: 1, 8, 512, 128>}, {pipeline_mode = #tpu.pipeline_mode<synchronous>, transform_indices = @transform_1, window_bounds = array<i64: 32, 512>}, {pipeline_mode = #tpu.pipeline_mode<synchronous>, transform_indices = @transform_2, window_bounds = array<i64: 32, 1>}, {transform_indices = @transform_3, window_bounds = array<i64: 1, 32, 128>}]} {
    %c0 = arith.constant 0 : index
    %c0_0 = arith.constant 0 : index
    %0 = vector.load %arg3[%c0, %c0_0] : memref<32x512xbf16, #tpu.memory_space<vmem>>, vector<32x512xbf16>
    %c0_1 = arith.constant 0 : index
    %c0_2 = arith.constant 0 : index
    %c0_3 = arith.constant 0 : index
    %c0_4 = arith.constant 0 : index
    %1 = vector.load %arg2[%c0_1, %c0_2, %c0_3, %c0_4] : memref<1x8x512x128xbf16, #tpu.memory_space<vmem>>, vector<1x1x512x128xbf16>
    %2 = vector.shape_cast %1 : vector<1x1x512x128xbf16> to vector<512x128xbf16>
    %cst = arith.constant dense<0.000000e+00> : vector<32x128xf32>
    %3 = tpu.matmul %0, %2, %cst {dimension_numbers = #tpu.dot_dimension_numbers<[1], [0], [0], [1], [0, 0, 1, 1], [], []>} : vector<32x512xbf16>, vector<512x128xbf16>, vector<32x128xf32> -> vector<32x128xf32>
    %c0_5 = arith.constant 0 : index
    %c1 = arith.constant 1 : index
    %c0_6 = arith.constant 0 : index
    %c0_7 = arith.constant 0 : index
    %4 = vector.load %arg2[%c0_5, %c1, %c0_6, %c0_7] : memref<1x8x512x128xbf16, #tpu.memory_space<vmem>>, vector<1x1x512x128xbf16>
    %5 = vector.shape_cast %4 : vector<1x1x512x128xbf16> to vector<512x128xbf16>
    %cst_8 = arith.constant dense<0.000000e+00> : vector<32x128xf32>
    %6 = tpu.matmul %0, %5, %cst_8 {dimension_numbers = #tpu.dot_dimension_numbers<[1], [0], [0], [1], [0, 0, 1, 1], [], []>} : vector<32x512xbf16>, vector<512x128xbf16>, vector<32x128xf32> -> vector<32x128xf32>
    %7 = arith.maximumf %3, %6 : vector<32x128xf32>
    %c0_9 = arith.constant 0 : index
    %c2 = arith.constant 2 : index
    %c0_10 = arith.constant 0 : index
    %c0_11 = arith.constant 0 : index
    %8 = vector.load %arg2[%c0_9, %c2, %c0_10, %c0_11] : memref<1x8x512x128xbf16, #tpu.memory_space<vmem>>, vector<1x1x512x128xbf16>
    %9 = vector.shape_cast %8 : vector<1x1x512x128xbf16> to vector<512x128xbf16>
    %cst_12 = arith.constant dense<0.000000e+00> : vector<32x128xf32>
    %10 = tpu.matmul %0, %9, %cst_12 {dimension_numbers = #tpu.dot_dimension_numbers<[1], [0], [0], [1], [0, 0, 1, 1], [], []>} : vector<32x512xbf16>, vector<512x128xbf16>, vector<32x128xf32> -> vector<32x128xf32>
    %11 = arith.maximumf %7, %10 : vector<32x128xf32>
    %c0_13 = arith.constant 0 : index
    %c3 = arith.constant 3 : index
    %c0_14 = arith.constant 0 : index
    %c0_15 = arith.constant 0 : index
    %12 = vector.load %arg2[%c0_13, %c3, %c0_14, %c0_15] : memref<1x8x512x128xbf16, #tpu.memory_space<vmem>>, vector<1x1x512x128xbf16>
    %13 = vector.shape_cast %12 : vector<1x1x512x128xbf16> to vector<512x128xbf16>
    %cst_16 = arith.constant dense<0.000000e+00> : vector<32x128xf32>
    %14 = tpu.matmul %0, %13, %cst_16 {dimension_numbers = #tpu.dot_dimension_numbers<[1], [0], [0], [1], [0, 0, 1, 1], [], []>} : vector<32x512xbf16>, vector<512x128xbf16>, vector<32x128xf32> -> vector<32x128xf32>
    %15 = arith.maximumf %11, %14 : vector<32x128xf32>
    %c0_17 = arith.constant 0 : index
    %c4 = arith.constant 4 : index
    %c0_18 = arith.constant 0 : index
    %c0_19 = arith.constant 0 : index
    %16 = vector.load %arg2[%c0_17, %c4, %c0_18, %c0_19] : memref<1x8x512x128xbf16, #tpu.memory_space<vmem>>, vector<1x1x512x128xbf16>
    %17 = vector.shape_cast %16 : vector<1x1x512x128xbf16> to vector<512x128xbf16>
    %cst_20 = arith.constant dense<0.000000e+00> : vector<32x128xf32>
    %18 = tpu.matmul %0, %17, %cst_20 {dimension_numbers = #tpu.dot_dimension_numbers<[1], [0], [0], [1], [0, 0, 1, 1], [], []>} : vector<32x512xbf16>, vector<512x128xbf16>, vector<32x128xf32> -> vector<32x128xf32>
    %19 = arith.maximumf %15, %18 : vector<32x128xf32>
    %c0_21 = arith.constant 0 : index
    %c5 = arith.constant 5 : index
    %c0_22 = arith.constant 0 : index
    %c0_23 = arith.constant 0 : index
    %20 = vector.load %arg2[%c0_21, %c5, %c0_22, %c0_23] : memref<1x8x512x128xbf16, #tpu.memory_space<vmem>>, vector<1x1x512x128xbf16>
    %21 = vector.shape_cast %20 : vector<1x1x512x128xbf16> to vector<512x128xbf16>
    %cst_24 = arith.constant dense<0.000000e+00> : vector<32x128xf32>
    %22 = tpu.matmul %0, %21, %cst_24 {dimension_numbers = #tpu.dot_dimension_numbers<[1], [0], [0], [1], [0, 0, 1, 1], [], []>} : vector<32x512xbf16>, vector<512x128xbf16>, vector<32x128xf32> -> vector<32x128xf32>
    %23 = arith.maximumf %19, %22 : vector<32x128xf32>
    %c0_25 = arith.constant 0 : index
    %c6 = arith.constant 6 : index
    %c0_26 = arith.constant 0 : index
    %c0_27 = arith.constant 0 : index
    %24 = vector.load %arg2[%c0_25, %c6, %c0_26, %c0_27] : memref<1x8x512x128xbf16, #tpu.memory_space<vmem>>, vector<1x1x512x128xbf16>
    %25 = vector.shape_cast %24 : vector<1x1x512x128xbf16> to vector<512x128xbf16>
    %cst_28 = arith.constant dense<0.000000e+00> : vector<32x128xf32>
    %26 = tpu.matmul %0, %25, %cst_28 {dimension_numbers = #tpu.dot_dimension_numbers<[1], [0], [0], [1], [0, 0, 1, 1], [], []>} : vector<32x512xbf16>, vector<512x128xbf16>, vector<32x128xf32> -> vector<32x128xf32>
    %27 = arith.maximumf %23, %26 : vector<32x128xf32>
    %c0_29 = arith.constant 0 : index
    %c7 = arith.constant 7 : index
    %c0_30 = arith.constant 0 : index
    %c0_31 = arith.constant 0 : index
    %28 = vector.load %arg2[%c0_29, %c7, %c0_30, %c0_31] : memref<1x8x512x128xbf16, #tpu.memory_space<vmem>>, vector<1x1x512x128xbf16>
    %29 = vector.shape_cast %28 : vector<1x1x512x128xbf16> to vector<512x128xbf16>
    %cst_32 = arith.constant dense<0.000000e+00> : vector<32x128xf32>
    %30 = tpu.matmul %0, %29, %cst_32 {dimension_numbers = #tpu.dot_dimension_numbers<[1], [0], [0], [1], [0, 0, 1, 1], [], []>} : vector<32x512xbf16>, vector<512x128xbf16>, vector<32x128xf32> -> vector<32x128xf32>
    %31 = arith.maximumf %27, %30 : vector<32x128xf32>
    %c0_33 = arith.constant 0 : index
    %c0_34 = arith.constant 0 : index
    %32 = vector.load %arg4[%c0_33, %c0_34] : memref<32x1xf32, #tpu.memory_space<vmem>>, vector<32x1xf32>
    %33 = vector.broadcast %32 : vector<32x1xf32> to vector<32x128xf32>
    %34 = arith.addf %31, %33 : vector<32x128xf32>
    %cst_35 = arith.constant 0.000000e+00 : f32
    %35 = vector.broadcast %cst_35 : f32 to vector<32x128xf32>
    %36 = arith.maximumf %34, %35 : vector<32x128xf32>
    %c0_36 = arith.constant 0 : index
    %c0_37 = arith.constant 0 : index
    %c0_38 = arith.constant 0 : index
    %37 = vector.load %arg5[%c0_36, %c0_37, %c0_38] : memref<1x32x128xf32, #tpu.memory_space<vmem>>, vector<1x32x128xf32>
    %38 = vector.shape_cast %37 : vector<1x32x128xf32> to vector<32x128xf32>
    %39 = vector.shape_cast %36 : vector<32x128xf32> to vector<1x32x128xf32>
    tpu.vector_store %arg5[%c0_36, %c0_37, %c0_38], %39 {strides = array<i32>} : memref<1x32x128xf32, #tpu.memory_space<vmem>>, vector<1x32x128xf32>,
    return
  }
  func.func @transform_0(%arg0: i32, %arg1: i32) -> (i32, i32, i32, i32) {
    %c0_i32 = arith.constant 0 : i32
    %c0_i32_0 = arith.constant 0 : i32
    %c0_i32_1 = arith.constant 0 : i32
    return %arg0, %c0_i32, %c0_i32_0, %arg1 : i32, i32, i32, i32
  }
  func.func @transform_1(%arg0: i32, %arg1: i32) -> (i32, i32) {
    %c0_i32 = arith.constant 0 : i32
    %c0_i32_0 = arith.constant 0 : i32
    %c0_i32_1 = arith.constant 0 : i32
    return %c0_i32, %c0_i32_0 : i32, i32
  }
  func.func @transform_2(%arg0: i32, %arg1: i32) -> (i32, i32) {
    %c0_i32 = arith.constant 0 : i32
    %c0_i32_0 = arith.constant 0 : i32
    %c0_i32_1 = arith.constant 0 : i32
    return %c0_i32, %c0_i32_0 : i32, i32
  }
  func.func @transform_3(%arg0: i32, %arg1: i32) -> (i32, i32, i32) {
    %c0_i32 = arith.constant 0 : i32
    %c0_i32_0 = arith.constant 0 : i32
    return %arg0, %c0_i32, %arg1 : i32, i32, i32
  }
}

</mosaic_0001>

<llo_original>
// kernel: perception_net_forward.2
$region0: #{perception_net_forward.2}
  #allocation0 [shape = 'u32[]', space=smem, size = 0x4, offset = 0x4, fixed_abs, tag = 'smem constant byte address 0x4 - core index']
  #allocation1 [shape = 'u32[144,128]{1,0:T(1,128)}', space=vmem, size = 0x12000, scoped, tag = 'internal scratch']
  %s0 = inlined_call_operand.vmem [shape: bf16[2,8,128,256], index: 0, kind: input, shape index: {}]
  %s1 = inlined_call_operand.vmem [shape: bf16[16,128], index: 1, kind: input, shape index: {}]
  %s2 = inlined_call_operand.vmem [shape: f32[16,1], index: 2, kind: input, shape index: {}]
  %s3 = inlined_call_operand.vmem [shape: bf16[2,16,256], index: 3, kind: output, shape index: {}]
  %s4 = sld [smem:[#allocation0]]
  $region45: #{perception_net_forward.2} parent=0
    _
  %s6 = ssub.s32 1, %s4
  %s7 = scalar_select 0, %s6, %s4
  loop: start=0, step=1, limit=4
  $region2: #{perception_net_forward.2} parent=0 // loop_pre_header
    _
  $region3: #{perception_net_forward.2} parent=0 // loop_header
    %s9 = sphi 0, %s13
    %p10 = scmp.ge.s32.totalorder %s9, 4
    %s16 = sphi 0, %s28
    %s17 = sphi 0, %s24
    %s18 = sphi 0, %s16
    %s19 = sphi 0, %s17
    %s20 = sphi 0, %s18
    %s21 = sphi 0, %s19
    %s33 = sphi 0, %s35
    %s36 = sphi 0, %s33
    %s37 = sphi 0, %s36
    %s53 = sphi 0, %s37
    %s57 = sphi 0, %s57
    %s59 = sphi 0, %s57
    %s60 = sphi 0, %s59
    %s74 = sphi 0, %s60
    %s78 = sphi 0, %s78
    %s80 = sphi 0, %s78
    %s81 = sphi 0, %s80
    %s95 = sphi 0, %s81
    %s103 = sphi 0, %s105
    %s106 = sphi 0, %s103
    %s107 = sphi 0, %s106
    %s123 = sphi 0, %s107
  $region4: #{perception_net_forward.2} parent=0 // loop_header_branch
    %12 = sbr.rel (%p10) target = $region8
  $region5: #{perception_net_forward.2} parent=0 // loop_body
    %s14 = ssub.s32 %s9, 1
    %s15 = ssub.s32 %s9, 2
    %s22 = sadd.s32 1, %s17
    %p23 = scmp.ge.s32.totalorder %s22, 1
    %s24 = scalar_select %p23, 0, %s22
    %s25 = sadd.s32 1, %s16
    %s26 = scalar_select %p23, %s25, %s16
    %p27 = scmp.ge.s32.totalorder %s26, 2
    %s28 = scalar_select %p27, 0, %s26
    %s29 = ssub.s32 %s16, %s28
    %s30 = ssub.s32 %s17, %s24
    %s31 = sor.u32 %s29, %s30
    %p32 = scmp.eq.s32.totalorder %s31, 0
    %s34 = sadd.s32 %s33, 1
    %s35 = scalar_select %p32, %s33, %s34
    %p38 = pneg %p32
    %p39 = scmp.eq.s32.totalorder %s9, 1
    %p40 = por %p38, %p39
    %p41 = scmp.ne.s32.totalorder %s33, %s36
    %p42 = scmp.eq.s32.totalorder %s9, 0
    %p43 = por %p41, %p42
    %p44 = scmp.ne.s32.totalorder %s33, %s36
    %p45 = scmp.eq.s32.totalorder %s14, 1
    %p46 = por %p44, %p45
    %p47 = scmp.ne.s32.totalorder %s36, %s37
    %p48 = scmp.eq.s32.totalorder %s14, 0
    %p49 = por %p47, %p48
    %p50 = scmp.ne.s32.totalorder %s36, %s37
    %p51 = scmp.eq.s32.totalorder %s15, 1
    %p52 = por %p50, %p51
    %p54 = scmp.ne.s32.totalorder %s37, %s53
    %p55 = scmp.eq.s32.totalorder %s15, 0
    %p56 = por %p54, %p55
    %s58 = sadd.s32 %s57, 1
    %p61 = scmp.eq.s32.totalorder %s9, 1
    %p62 = scmp.ne.s32.totalorder %s57, %s59
    %p63 = scmp.eq.s32.totalorder %s9, 0
    %p64 = por %p62, %p63
    %p65 = scmp.ne.s32.totalorder %s57, %s59
    %p66 = scmp.eq.s32.totalorder %s14, 1
    %p67 = por %p65, %p66
    %p68 = scmp.ne.s32.totalorder %s59, %s60
    %p69 = scmp.eq.s32.totalorder %s14, 0
    %p70 = por %p68, %p69
    %p71 = scmp.ne.s32.totalorder %s59, %s60
    %p72 = scmp.eq.s32.totalorder %s15, 1
    %p73 = por %p71, %p72
    %p75 = scmp.ne.s32.totalorder %s60, %s74
    %p76 = scmp.eq.s32.totalorder %s15, 0
    %p77 = por %p75, %p76
    %s79 = sadd.s32 %s78, 1
    %p82 = scmp.eq.s32.totalorder %s9, 1
    %p83 = scmp.ne.s32.totalorder %s78, %s80
    %p84 = scmp.eq.s32.totalorder %s9, 0
    %p85 = por %p83, %p84
    %p86 = scmp.ne.s32.totalorder %s78, %s80
    %p87 = scmp.eq.s32.totalorder %s14, 1
    %p88 = por %p86, %p87
    %p89 = scmp.ne.s32.totalorder %s80, %s81
    %p90 = scmp.eq.s32.totalorder %s14, 0
    %p91 = por %p89, %p90
    %p92 = scmp.ne.s32.totalorder %s80, %s81
    %p93 = scmp.eq.s32.totalorder %s15, 1
    %p94 = por %p92, %p93
    %p96 = scmp.ne.s32.totalorder %s81, %s95
    %p97 = scmp.eq.s32.totalorder %s15, 0
    %p98 = por %p96, %p97
    %s99 = ssub.s32 %s16, %s28
    %s100 = ssub.s32 %s17, %s24
    %s101 = sor.u32 %s99, %s100
    %p102 = scmp.eq.s32.totalorder %s101, 0
    %s104 = sadd.s32 %s103, 1
    %s105 = scalar_select %p102, %s103, %s104
    %p108 = pneg %p102
    %p109 = scmp.eq.s32.totalorder %s9, 1
    %p110 = por %p108, %p109
    %p111 = scmp.ne.s32.totalorder %s103, %s106
    %p112 = scmp.eq.s32.totalorder %s9, 0
    %p113 = por %p111, %p112
    %p114 = scmp.ne.s32.totalorder %s103, %s106
    %p115 = scmp.eq.s32.totalorder %s14, 1
    %p116 = por %p114, %p115
    %p117 = scmp.ne.s32.totalorder %s106, %s107
    %p118 = scmp.eq.s32.totalorder %s14, 0
    %p119 = por %p117, %p118
    %p120 = scmp.ne.s32.totalorder %s106, %s107
    %p121 = scmp.eq.s32.totalorder %s15, 1
    %p122 = por %p120, %p121
    %p124 = scmp.ne.s32.totalorder %s107, %s123
    %p125 = scmp.eq.s32.totalorder %s15, 0
    %p126 = por %p124, %p125
    %p127 = scmp.le.s32.totalorder 1, %s9
    %p128 = scmp.lt.s32.totalorder %s9, 3
    %p129 = pnand %p127, %p128
    %p130 = pneg %p129
    // Predicated region
    $region9: #{perception_net_forward.2} parent=5 // pred_check
      _
    $region10: #{perception_net_forward.2} parent=5 // pred_check_branch
      %132 = sbr.rel (%p129) target = $region12
    $region11: #{perception_net_forward.2} parent=5 // pred_region
      %s133 = ssub.s32 %s9, 1
      // Predicated region
      $region13: #{perception_net_forward.2} parent=11 // pred_check
        %p134 = pneg %p70
      $region14: #{perception_net_forward.2} parent=11 // pred_check_branch
        %136 = sbr.rel (%p134) target = $region16
      $region15: #{perception_net_forward.2} parent=11 // pred_region
        _
      $region16: #{perception_net_forward.2} parent=11 // pred_fallthru
        _
      // Predicated region
      $region17: #{perception_net_forward.2} parent=11 // pred_check
        %p137 = pneg %p91
      $region18: #{perception_net_forward.2} parent=11 // pred_check_branch
        %139 = sbr.rel (%p137) target = $region20
      $region19: #{perception_net_forward.2} parent=11 // pred_region
        _
      $region20: #{perception_net_forward.2} parent=11 // pred_fallthru
        _
    $region12: #{perception_net_forward.2} parent=5 // pred_fallthru
      _
    %p140 = scmp.lt.s32.totalorder %s9, 2
    // Predicated region
    $region21: #{perception_net_forward.2} parent=5 // pred_check
      %p141 = pneg %p140
    $region22: #{perception_net_forward.2} parent=5 // pred_check_branch
      %143 = sbr.rel (%p141) target = $region24
    $region23: #{perception_net_forward.2} parent=5 // pred_region
      // Predicated region
      $region25: #{perception_net_forward.2} parent=23 // pred_check
        %p144 = pneg %p43
      $region26: #{perception_net_forward.2} parent=23 // pred_check_branch
        %146 = sbr.rel (%p144) target = $region28
      $region27: #{perception_net_forward.2} parent=23 // pred_region
        %s147 = smul.u32 2, %s17
        %p148 = scmp.lt.s32.totalorder %s16, 1
        %s149 = scalar_select %p148, %s16, 1
        %p150 = scmp.lt.s32.totalorder %s147, 1
        %s151 = scalar_select %p150, %s147, 1
        %s152 = smul.addr %s149, 256
        %s153 = sadd.s32 %s151, %s152
        %s154 = smul.addr %s153, 4
        %s155 = scalar_lea.vmem %s0, %s154
        %s156 = smul.u32 2, %s17
      $region28: #{perception_net_forward.2} parent=23 // pred_fallthru
        _
    $region24: #{perception_net_forward.2} parent=5 // pred_fallthru
      _
    %p157 = scmp.le.s32.totalorder 1, %s9
    %p158 = scmp.lt.s32.totalorder %s9, 3
    %p159 = pnand %p157, %p158
    %p160 = pneg %p159
    // Predicated region
    $region29: #{perception_net_forward.2} parent=5 // pred_check
      _
    $region30: #{perception_net_forward.2} parent=5 // pred_check_branch
      %162 = sbr.rel (%p159) target = $region32
    $region31: #{perception_net_forward.2} parent=5 // pred_region
      %s163 = ssub.s32 %s9, 1
      %s164 = smul.u32 2, %s19
      %p165 = scmp.lt.s32.totalorder %s18, 1
      %s166 = scalar_select %p165, %s18, 1
      %p167 = scmp.lt.s32.totalorder %s164, 1
      %s168 = scalar_select %p167, %s164, 1
      %s169 = smul.addr %s166, 256
      %s170 = sadd.s32 %s168, %s169
      %s171 = smul.addr %s170, 4
      %s172 = scalar_lea.vmem %s0, %s171
      %p173 = pneg %p49
      %p174 = pneg %p46
      %p175 = pneg %p70
      %p176 = pneg %p67
      %p177 = pneg %p91
      %p178 = pneg %p88
      %p179 = pneg %p119
      %p180 = pneg %p116
      %s181 = smul.u32 2, %s19
      %p182 = scmp.lt.s32.totalorder %s18, 1
      %s183 = scalar_select %p182, %s18, 1
      %p184 = scmp.lt.s32.totalorder %s181, 1
      %s185 = scalar_select %p184, %s181, 1
      %s186 = smul.addr %s183, 4
      %s187 = sadd.s32 %s185, %s186
      %s188 = smul.addr %s187, 4
      %s189 = scalar_lea.vmem %s3, %s188
      %s190 = smul.u32 2, %s19
      %p191 = scmp.lt.s32.totalorder %s18, 1
      %s192 = scalar_select %p191, %s18, 1
      %p193 = scmp.lt.s32.totalorder %s190, 1
      %s194 = scalar_select %p193, %s190, 1
      %s195 = smul.addr %s192, 256
      %s196 = sadd.s32 %s194, %s195
      %s197 = smul.addr %s196, 4
      %s198 = scalar_lea.vmem %s0, %s197
      %s199 = smul.u32 2, %s19
      %s200 = smul.u32 2, %s19
      %p201 = scmp.lt.s32.totalorder %s18, 1
      %s202 = scalar_select %p201, %s18, 1
      %p203 = scmp.lt.s32.totalorder %s200, 1
      %s204 = scalar_select %p203, %s200, 1
      %s205 = smul.addr %s202, 4
      %s206 = sadd.s32 %s204, %s205
      %s207 = smul.addr %s206, 4
      %s208 = scalar_lea.vmem %s3, %s207
      %s209 = smul.u32 2, %s19
      %v211 = vld [vmem:[%s1] sm:$0xf]
      %v212 = vld [vmem:[%s1 + $0x4] sm:$0xf]
      %v213 = vld [vmem:[%s198] sm:$0xff]
      %v214 = vld [vmem:[%s198 + $0x8] sm:$0xff]
      %v215 = vld [vmem:[%s198 + $0x10] sm:$0xff]
      %v216 = vld [vmem:[%s198 + $0x18] sm:$0xff]
      %v217 = vld [vmem:[%s198 + $0x20] sm:$0xff]
      %v218 = vld [vmem:[%s198 + $0x28] sm:$0xff]
      %v219 = vld [vmem:[%s198 + $0x30] sm:$0xff]
      %v220 = vld [vmem:[%s198 + $0x38] sm:$0xff]
      %v221 = vld [vmem:[%s198 + $0x40] sm:$0xff]
      %v222 = vld [vmem:[%s198 + $0x48] sm:$0xff]
      %v223 = vld [vmem:[%s198 + $0x50] sm:$0xff]
      %v224 = vld [vmem:[%s198 + $0x58] sm:$0xff]
      %v225 = vld [vmem:[%s198 + $0x60] sm:$0xff]
      %v226 = vld [vmem:[%s198 + $0x68] sm:$0xff]
      %v227 = vld [vmem:[%s198 + $0x70] sm:$0xff]
      %v228 = vld [vmem:[%s198 + $0x78] sm:$0xff]
      %v231 = vunpack.c.l.b16 %v211
      %v232 = vunpack.c.l.b16 %v212
      %v233 = vpack.c.b16 %v232, %v231
      %v251 = vunpack.c.l.b16 %v213
      %v252 = vunpack.c.h.b16 %v213
      %v253 = vunpack.c.l.b16 %v214
      %v254 = vunpack.c.h.b16 %v214
      %v255 = vunpack.c.l.b16 %v215
      %v256 = vunpack.c.h.b16 %v215
      %v257 = vunpack.c.l.b16 %v216
      %v258 = vunpack.c.h.b16 %v216
      %v259 = vunpack.c.l.b16 %v217
      %v260 = vunpack.c.h.b16 %v217
      %v261 = vunpack.c.l.b16 %v218
      %v262 = vunpack.c.h.b16 %v218
      %v263 = vunpack.c.l.b16 %v219
      %v264 = vunpack.c.h.b16 %v219
      %v265 = vunpack.c.l.b16 %v220
      %v266 = vunpack.c.h.b16 %v220
      %v267 = vunpack.c.l.b16 %v221
      %v268 = vunpack.c.h.b16 %v221
      %v269 = vunpack.c.l.b16 %v222
      %v270 = vunpack.c.h.b16 %v222
      %v271 = vunpack.c.l.b16 %v223
      %v272 = vunpack.c.h.b16 %v223
      %v273 = vunpack.c.l.b16 %v224
      %v274 = vunpack.c.h.b16 %v224
      %v275 = vunpack.c.l.b16 %v225
      %v276 = vunpack.c.h.b16 %v225
      %v277 = vunpack.c.l.b16 %v226
      %v278 = vunpack.c.h.b16 %v226
      %v279 = vunpack.c.l.b16 %v227
      %v280 = vunpack.c.h.b16 %v227
      %v281 = vunpack.c.l.b16 %v228
      %v282 = vunpack.c.h.b16 %v228
      %v283 = vpack.c.b16 %v253, %v251
      %v284 = vpack.c.b16 %v254, %v252
      %v285 = vpack.c.b16 %v257, %v255
      %v286 = vpack.c.b16 %v258, %v256
      %v287 = vpack.c.b16 %v261, %v259
      %v288 = vpack.c.b16 %v262, %v260
      %v289 = vpack.c.b16 %v265, %v263
      %v290 = vpack.c.b16 %v266, %v264
      %v291 = vpack.c.b16 %v269, %v267
      %v292 = vpack.c.b16 %v270, %v268
      %v293 = vpack.c.b16 %v273, %v271
      %v294 = vpack.c.b16 %v274, %v272
      %v295 = vpack.c.b16 %v277, %v275
      %v296 = vpack.c.b16 %v278, %v276
      %v297 = vpack.c.b16 %v281, %v279
      %v298 = vpack.c.b16 %v282, %v280
      %315 = vmatprep.subr.bf16.mxu0 %v284
      %316 = vmatpush1.bf16.msra.mxu0 %v283
      %317 = vmatprep.subr.bf16.mxu0 %v286
      %318 = vmatpush1.bf16.msra.mxu0 %v285
      %319 = vmatprep.subr.bf16.mxu0 %v288
      %320 = vmatpush1.bf16.msra.mxu0 %v287
      %321 = vmatprep.subr.bf16.mxu0 %v290
      %322 = vmatpush1.bf16.msra.mxu0 %v289
      %323 = vmatprep.subr.bf16.mxu0 %v292
      %324 = vmatpush1.bf16.msra.mxu0 %v291
      %325 = vmatprep.subr.bf16.mxu0 %v294
      %326 = vmatpush1.bf16.msra.mxu0 %v293
      %327 = vmatprep.subr.bf16.mxu0 %v296
      %328 = vmatpush1.bf16.msra.mxu0 %v295
      %329 = vmatprep.subr.bf16.mxu0 %v298
      %330 = vmatpush1.bf16.msra.mxu0 %v297
      %331 = vmatprep.subr.bf16.mxu0 0
      %332 = vmatpush1.bf16.msra.mxu0 0
      %333 = vmatprep.subr.bf16.mxu0 0
      %334 = vmatpush1.bf16.msra.mxu0 0
      %335 = vmatprep.subr.bf16.mxu0 0
      %336 = vmatpush1.bf16.msra.mxu0 0
      %337 = vmatprep.subr.bf16.mxu0 0
      %338 = vmatpush1.bf16.msra.mxu0 0
      %339 = vmatprep.subr.bf16.mxu0 0
      %340 = vmatpush1.bf16.msra.mxu0 0
      %341 = vmatprep.subr.bf16.mxu0 0
      %342 = vmatpush1.bf16.msra.mxu0 0
      %343 = vmatprep.subr.bf16.mxu0 0
      %344 = vmatpush1.bf16.msra.mxu0 0
      %345 = vmatprep.subr.bf16.mxu0 0
      %346 = vmatpush1.bf16.msra.mxu0 0
      %347 = vmatprep.mubr.bf16.mxu0 0
      %348 = vmatmul.mubr.bf16.gmra.mrb[0].mxu0 %v233
      %v349 = vpop.f32.mrb[0].mxu0
      %v350 = vadd.f32 0.0, %v349
      %v351 = vpop.f32.mrb[0].mxu0
      %v352 = vadd.f32 0.0, %v351
      %v353 = vpop.f32.mrb[0].mxu0
      %v354 = vadd.f32 0.0, %v353
      %v355 = vpop.f32.mrb[0].mxu0
      %v356 = vadd.f32 0.0, %v355
      %357 = vdwg.mxu0
      %s358 = scalar_lea.vmem %s198, 128
      %v359 = vld [vmem:[%s358] sm:$0xff]
      %v360 = vld [vmem:[%s358 + $0x8] sm:$0xff]
      %v361 = vld [vmem:[%s358 + $0x10] sm:$0xff]
      %v362 = vld [vmem:[%s358 + $0x18] sm:$0xff]
      %v363 = vld [vmem:[%s358 + $0x20] sm:$0xff]
      %v364 = vld [vmem:[%s358 + $0x28] sm:$0xff]
      %v365 = vld [vmem:[%s358 + $0x30] sm:$0xff]
      %v366 = vld [vmem:[%s358 + $0x38] sm:$0xff]
      %v367 = vld [vmem:[%s358 + $0x40] sm:$0xff]
      %v368 = vld [vmem:[%s358 + $0x48] sm:$0xff]
      %v369 = vld [vmem:[%s358 + $0x50] sm:$0xff]
      %v370 = vld [vmem:[%s358 + $0x58] sm:$0xff]
      %v371 = vld [vmem:[%s358 + $0x60] sm:$0xff]
      %v372 = vld [vmem:[%s358 + $0x68] sm:$0xff]
      %v373 = vld [vmem:[%s358 + $0x70] sm:$0xff]
      %v374 = vld [vmem:[%s358 + $0x78] sm:$0xff]
      %v391 = vunpack.c.l.b16 %v359
      %v392 = vunpack.c.h.b16 %v359
      %v393 = vunpack.c.l.b16 %v360
      %v394 = vunpack.c.h.b16 %v360
      %v395 = vunpack.c.l.b16 %v361
      %v396 = vunpack.c.h.b16 %v361
      %v397 = vunpack.c.l.b16 %v362
      %v398 = vunpack.c.h.b16 %v362
      %v399 = vunpack.c.l.b16 %v363
      %v400 = vunpack.c.h.b16 %v363
      %v401 = vunpack.c.l.b16 %v364
      %v402 = vunpack.c.h.b16 %v364
      %v403 = vunpack.c.l.b16 %v365
      %v404 = vunpack.c.h.b16 %v365
      %v405 = vunpack.c.l.b16 %v366
      %v406 = vunpack.c.h.b16 %v366
      %v407 = vunpack.c.l.b16 %v367
      %v408 = vunpack.c.h.b16 %v367
      %v409 = vunpack.c.l.b16 %v368
      %v410 = vunpack.c.h.b16 %v368
      %v411 = vunpack.c.l.b16 %v369
      %v412 = vunpack.c.h.b16 %v369
      %v413 = vunpack.c.l.b16 %v370
      %v414 = vunpack.c.h.b16 %v370
      %v415 = vunpack.c.l.b16 %v371
      %v416 = vunpack.c.h.b16 %v371
      %v417 = vunpack.c.l.b16 %v372
      %v418 = vunpack.c.h.b16 %v372
      %v419 = vunpack.c.l.b16 %v373
      %v420 = vunpack.c.h.b16 %v373
      %v421 = vunpack.c.l.b16 %v374
      %v422 = vunpack.c.h.b16 %v374
      %v423 = vpack.c.b16 %v393, %v391
      %v424 = vpack.c.b16 %v394, %v392
      %v425 = vpack.c.b16 %v397, %v395
      %v426 = vpack.c.b16 %v398, %v396
      %v427 = vpack.c.b16 %v401, %v399
      %v428 = vpack.c.b16 %v402, %v400
      %v429 = vpack.c.b16 %v405, %v403
      %v430 = vpack.c.b16 %v406, %v404
      %v431 = vpack.c.b16 %v409, %v407
      %v432 = vpack.c.b16 %v410, %v408
      %v433 = vpack.c.b16 %v413, %v411
      %v434 = vpack.c.b16 %v414, %v412
      %v435 = vpack.c.b16 %v417, %v415
      %v436 = vpack.c.b16 %v418, %v416
      %v437 = vpack.c.b16 %v421, %v419
      %v438 = vpack.c.b16 %v422, %v420
      %455 = vmatprep.subr.bf16.mxu0 %v424
      %456 = vmatpush1.bf16.msra.mxu0 %v423
      %457 = vmatprep.subr.bf16.mxu0 %v426
      %458 = vmatpush1.bf16.msra.mxu0 %v425
      %459 = vmatprep.subr.bf16.mxu0 %v428
      %460 = vmatpush1.bf16.msra.mxu0 %v427
      %461 = vmatprep.subr.bf16.mxu0 %v430
      %462 = vmatpush1.bf16.msra.mxu0 %v429
      %463 = vmatprep.subr.bf16.mxu0 %v432
      %464 = vmatpush1.bf16.msra.mxu0 %v431
      %465 = vmatprep.subr.bf16.mxu0 %v434
      %466 = vmatpush1.bf16.msra.mxu0 %v433
      %467 = vmatprep.subr.bf16.mxu0 %v436
      %468 = vmatpush1.bf16.msra.mxu0 %v435
      %469 = vmatprep.subr.bf16.mxu0 %v438
      %470 = vmatpush1.bf16.msra.mxu0 %v437
      %471 = vmatprep.subr.bf16.mxu0 0
      %472 = vmatpush1.bf16.msra.mxu0 0
      %473 = vmatprep.subr.bf16.mxu0 0
      %474 = vmatpush1.bf16.msra.mxu0 0
      %475 = vmatprep.subr.bf16.mxu0 0
      %476 = vmatpush1.bf16.msra.mxu0 0
      %477 = vmatprep.subr.bf16.mxu0 0
      %478 = vmatpush1.bf16.msra.mxu0 0
      %479 = vmatprep.subr.bf16.mxu0 0
      %480 = vmatpush1.bf16.msra.mxu0 0
      %481 = vmatprep.subr.bf16.mxu0 0
      %482 = vmatpush1.bf16.msra.mxu0 0
      %483 = vmatprep.subr.bf16.mxu0 0
      %484 = vmatpush1.bf16.msra.mxu0 0
      %485 = vmatprep.subr.bf16.mxu0 0
      %486 = vmatpush1.bf16.msra.mxu0 0
      %487 = vmatprep.mubr.bf16.mxu0 0
      %488 = vmatmul.mubr.bf16.gmra.mrb[0].mxu0 %v233
      %v489 = vpop.f32.mrb[0].mxu0
      %v490 = vadd.f32 0.0, %v489
      %v491 = vpop.f32.mrb[0].mxu0
      %v492 = vadd.f32 0.0, %v491
      %v493 = vpop.f32.mrb[0].mxu0
      %v494 = vadd.f32 0.0, %v493
      %v495 = vpop.f32.mrb[0].mxu0
      %v496 = vadd.f32 0.0, %v495
      %497 = vdwg.mxu0
      %v498 = vmax.f32 %v350, %v490
      %v499 = vmax.f32 %v352, %v492
      %v500 = vmax.f32 %v354, %v494
      %v501 = vmax.f32 %v356, %v496
      %s502 = scalar_lea.vmem %s198, 256
      %v503 = vld [vmem:[%s502] sm:$0xff]
      %v504 = vld [vmem:[%s502 + $0x8] sm:$0xff]
      %v505 = vld [vmem:[%s502 + $0x10] sm:$0xff]
      %v506 = vld [vmem:[%s502 + $0x18] sm:$0xff]
      %v507 = vld [vmem:[%s502 + $0x20] sm:$0xff]
      %v508 = vld [vmem:[%s502 + $0x28] sm:$0xff]
      %v509 = vld [vmem:[%s502 + $0x30] sm:$0xff]
      %v510 = vld [vmem:[%s502 + $0x38] sm:$0xff]
      %v511 = vld [vmem:[%s502 + $0x40] sm:$0xff]
      %v512 = vld [vmem:[%s502 + $0x48] sm:$0xff]
      %v513 = vld [vmem:[%s502 + $0x50] sm:$0xff]
      %v514 = vld [vmem:[%s502 + $0x58] sm:$0xff]
      %v515 = vld [vmem:[%s502 + $0x60] sm:$0xff]
      %v516 = vld [vmem:[%s502 + $0x68] sm:$0xff]
      %v517 = vld [vmem:[%s502 + $0x70] sm:$0xff]
      %v518 = vld [vmem:[%s502 + $0x78] sm:$0xff]
      %v535 = vunpack.c.l.b16 %v503
      %v536 = vunpack.c.h.b16 %v503
      %v537 = vunpack.c.l.b16 %v504
      %v538 = vunpack.c.h.b16 %v504
      %v539 = vunpack.c.l.b16 %v505
      %v540 = vunpack.c.h.b16 %v505
      %v541 = vunpack.c.l.b16 %v506
      %v542 = vunpack.c.h.b16 %v506
      %v543 = vunpack.c.l.b16 %v507
      %v544 = vunpack.c.h.b16 %v507
      %v545 = vunpack.c.l.b16 %v508
      %v546 = vunpack.c.h.b16 %v508
      %v547 = vunpack.c.l.b16 %v509
      %v548 = vunpack.c.h.b16 %v509
      %v549 = vunpack.c.l.b16 %v510
      %v550 = vunpack.c.h.b16 %v510
      %v551 = vunpack.c.l.b16 %v511
      %v552 = vunpack.c.h.b16 %v511
      %v553 = vunpack.c.l.b16 %v512
      %v554 = vunpack.c.h.b16 %v512
      %v555 = vunpack.c.l.b16 %v513
      %v556 = vunpack.c.h.b16 %v513
      %v557 = vunpack.c.l.b16 %v514
      %v558 = vunpack.c.h.b16 %v514
      %v559 = vunpack.c.l.b16 %v515
      %v560 = vunpack.c.h.b16 %v515
      %v561 = vunpack.c.l.b16 %v516
      %v562 = vunpack.c.h.b16 %v516
      %v563 = vunpack.c.l.b16 %v517
      %v564 = vunpack.c.h.b16 %v517
      %v565 = vunpack.c.l.b16 %v518
      %v566 = vunpack.c.h.b16 %v518
      %v567 = vpack.c.b16 %v537, %v535
      %v568 = vpack.c.b16 %v538, %v536
      %v569 = vpack.c.b16 %v541, %v539
      %v570 = vpack.c.b16 %v542, %v540
      %v571 = vpack.c.b16 %v545, %v543
      %v572 = vpack.c.b16 %v546, %v544
      %v573 = vpack.c.b16 %v549, %v547
      %v574 = vpack.c.b16 %v550, %v548
      %v575 = vpack.c.b16 %v553, %v551
      %v576 = vpack.c.b16 %v554, %v552
      %v577 = vpack.c.b16 %v557, %v555
      %v578 = vpack.c.b16 %v558, %v556
      %v579 = vpack.c.b16 %v561, %v559
      %v580 = vpack.c.b16 %v562, %v560
      %v581 = vpack.c.b16 %v565, %v563
      %v582 = vpack.c.b16 %v566, %v564
      %599 = vmatprep.subr.bf16.mxu0 %v568
      %600 = vmatpush1.bf16.msra.mxu0 %v567
      %601 = vmatprep.subr.bf16.mxu0 %v570
      %602 = vmatpush1.bf16.msra.mxu0 %v569
      %603 = vmatprep.subr.bf16.mxu0 %v572
      %604 = vmatpush1.bf16.msra.mxu0 %v571
      %605 = vmatprep.subr.bf16.mxu0 %v574
      %606 = vmatpush1.bf16.msra.mxu0 %v573
      %607 = vmatprep.subr.bf16.mxu0 %v576
      %608 = vmatpush1.bf16.msra.mxu0 %v575
      %609 = vmatprep.subr.bf16.mxu0 %v578
      %610 = vmatpush1.bf16.msra.mxu0 %v577
      %611 = vmatprep.subr.bf16.mxu0 %v580
      %612 = vmatpush1.bf16.msra.mxu0 %v579
      %613 = vmatprep.subr.bf16.mxu0 %v582
      %614 = vmatpush1.bf16.msra.mxu0 %v581
      %615 = vmatprep.subr.bf16.mxu0 0
      %616 = vmatpush1.bf16.msra.mxu0 0
      %617 = vmatprep.subr.bf16.mxu0 0
      %618 = vmatpush1.bf16.msra.mxu0 0
      %619 = vmatprep.subr.bf16.mxu0 0
      %620 = vmatpush1.bf16.msra.mxu0 0
      %621 = vmatprep.subr.bf16.mxu0 0
      %622 = vmatpush1.bf16.msra.mxu0 0
      %623 = vmatprep.subr.bf16.mxu0 0
      %624 = vmatpush1.bf16.msra.mxu0 0
      %625 = vmatprep.subr.bf16.mxu0 0
      %626 = vmatpush1.bf16.msra.mxu0 0
      %627 = vmatprep.subr.bf16.mxu0 0
      %628 = vmatpush1.bf16.msra.mxu0 0
      %629 = vmatprep.subr.bf16.mxu0 0
      %630 = vmatpush1.bf16.msra.mxu0 0
      %631 = vmatprep.mubr.bf16.mxu0 0
      %632 = vmatmul.mubr.bf16.gmra.mrb[0].mxu0 %v233
      %v633 = vpop.f32.mrb[0].mxu0
      %v634 = vadd.f32 0.0, %v633
      %v635 = vpop.f32.mrb[0].mxu0
      %v636 = vadd.f32 0.0, %v635
      %v637 = vpop.f32.mrb[0].mxu0
      %v638 = vadd.f32 0.0, %v637
      %v639 = vpop.f32.mrb[0].mxu0
      %v640 = vadd.f32 0.0, %v639
      %641 = vdwg.mxu0
      %v642 = vmax.f32 %v498, %v634
      %v643 = vmax.f32 %v499, %v636
      %v644 = vmax.f32 %v500, %v638
      %v645 = vmax.f32 %v501, %v640
      %s646 = scalar_lea.vmem %s198, 384
      %v647 = vld [vmem:[%s646] sm:$0xff]
      %v648 = vld [vmem:[%s646 + $0x8] sm:$0xff]
      %v649 = vld [vmem:[%s646 + $0x10] sm:$0xff]
      %v650 = vld [vmem:[%s646 + $0x18] sm:$0xff]
      %v651 = vld [vmem:[%s646 + $0x20] sm:$0xff]
      %v652 = vld [vmem:[%s646 + $0x28] sm:$0xff]
      %v653 = vld [vmem:[%s646 + $0x30] sm:$0xff]
      %v654 = vld [vmem:[%s646 + $0x38] sm:$0xff]
      %v655 = vld [vmem:[%s646 + $0x40] sm:$0xff]
      %v656 = vld [vmem:[%s646 + $0x48] sm:$0xff]
      %v657 = vld [vmem:[%s646 + $0x50] sm:$0xff]
      %v658 = vld [vmem:[%s646 + $0x58] sm:$0xff]
      %v659 = vld [vmem:[%s646 + $0x60] sm:$0xff]
      %v660 = vld [vmem:[%s646 + $0x68] sm:$0xff]
      %v661 = vld [vmem:[%s646 + $0x70] sm:$0xff]
      %v662 = vld [vmem:[%s646 + $0x78] sm:$0xff]
      %v679 = vunpack.c.l.b16 %v647
      %v680 = vunpack.c.h.b16 %v647
      %v681 = vunpack.c.l.b16 %v648
      %v682 = vunpack.c.h.b16 %v648
      %v683 = vunpack.c.l.b16 %v649
      %v684 = vunpack.c.h.b16 %v649
      %v685 = vunpack.c.l.b16 %v650
      %v686 = vunpack.c.h.b16 %v650
      %v687 = vunpack.c.l.b16 %v651
      %v688 = vunpack.c.h.b16 %v651
      %v689 = vunpack.c.l.b16 %v652
      %v690 = vunpack.c.h.b16 %v652
      %v691 = vunpack.c.l.b16 %v653
      %v692 = vunpack.c.h.b16 %v653
      %v693 = vunpack.c.l.b16 %v654
      %v694 = vunpack.c.h.b16 %v654
      %v695 = vunpack.c.l.b16 %v655
      %v696 = vunpack.c.h.b16 %v655
      %v697 = vunpack.c.l.b16 %v656
      %v698 = vunpack.c.h.b16 %v656
      %v699 = vunpack.c.l.b16 %v657
      %v700 = vunpack.c.h.b16 %v657
      %v701 = vunpack.c.l.b16 %v658
      %v702 = vunpack.c.h.b16 %v658
      %v703 = vunpack.c.l.b16 %v659
      %v704 = vunpack.c.h.b16 %v659
      %v705 = vunpack.c.l.b16 %v660
      %v706 = vunpack.c.h.b16 %v660
      %v707 = vunpack.c.l.b16 %v661
      %v708 = vunpack.c.h.b16 %v661
      %v709 = vunpack.c.l.b16 %v662
      %v710 = vunpack.c.h.b16 %v662
      %v711 = vpack.c.b16 %v681, %v679
      %v712 = vpack.c.b16 %v682, %v680
      %v713 = vpack.c.b16 %v685, %v683
      %v714 = vpack.c.b16 %v686, %v684
      %v715 = vpack.c.b16 %v689, %v687
      %v716 = vpack.c.b16 %v690, %v688
      %v717 = vpack.c.b16 %v693, %v691
      %v718 = vpack.c.b16 %v694, %v692
      %v719 = vpack.c.b16 %v697, %v695
      %v720 = vpack.c.b16 %v698, %v696
      %v721 = vpack.c.b16 %v701, %v699
      %v722 = vpack.c.b16 %v702, %v700
      %v723 = vpack.c.b16 %v705, %v703
      %v724 = vpack.c.b16 %v706, %v704
      %v725 = vpack.c.b16 %v709, %v707
      %v726 = vpack.c.b16 %v710, %v708
      %743 = vmatprep.subr.bf16.mxu0 %v712
      %744 = vmatpush1.bf16.msra.mxu0 %v711
      %745 = vmatprep.subr.bf16.mxu0 %v714
      %746 = vmatpush1.bf16.msra.mxu0 %v713
      %747 = vmatprep.subr.bf16.mxu0 %v716
      %748 = vmatpush1.bf16.msra.mxu0 %v715
      %749 = vmatprep.subr.bf16.mxu0 %v718
      %750 = vmatpush1.bf16.msra.mxu0 %v717
      %751 = vmatprep.subr.bf16.mxu0 %v720
      %752 = vmatpush1.bf16.msra.mxu0 %v719
      %753 = vmatprep.subr.bf16.mxu0 %v722
      %754 = vmatpush1.bf16.msra.mxu0 %v721
      %755 = vmatprep.subr.bf16.mxu0 %v724
      %756 = vmatpush1.bf16.msra.mxu0 %v723
      %757 = vmatprep.subr.bf16.mxu0 %v726
      %758 = vmatpush1.bf16.msra.mxu0 %v725
      %759 = vmatprep.subr.bf16.mxu0 0
      %760 = vmatpush1.bf16.msra.mxu0 0
      %761 = vmatprep.subr.bf16.mxu0 0
      %762 = vmatpush1.bf16.msra.mxu0 0
      %763 = vmatprep.subr.bf16.mxu0 0
      %764 = vmatpush1.bf16.msra.mxu0 0
      %765 = vmatprep.subr.bf16.mxu0 0
      %766 = vmatpush1.bf16.msra.mxu0 0
      %767 = vmatprep.subr.bf16.mxu0 0
      %768 = vmatpush1.bf16.msra.mxu0 0
      %769 = vmatprep.subr.bf16.mxu0 0
      %770 = vmatpush1.bf16.msra.mxu0 0
      %771 = vmatprep.subr.bf16.mxu0 0
      %772 = vmatpush1.bf16.msra.mxu0 0
      %773 = vmatprep.subr.bf16.mxu0 0
      %774 = vmatpush1.bf16.msra.mxu0 0
      %775 = vmatprep.mubr.bf16.mxu0 0
      %776 = vmatmul.mubr.bf16.gmra.mrb[0].mxu0 %v233
      %v777 = vpop.f32.mrb[0].mxu0
      %v778 = vadd.f32 0.0, %v777
      %v779 = vpop.f32.mrb[0].mxu0
      %v780 = vadd.f32 0.0, %v779
      %v781 = vpop.f32.mrb[0].mxu0
      %v782 = vadd.f32 0.0, %v781
      %v783 = vpop.f32.mrb[0].mxu0
      %v784 = vadd.f32 0.0, %v783
      %785 = vdwg.mxu0
      %v786 = vmax.f32 %v642, %v778
      %v787 = vmax.f32 %v643, %v780
      %v788 = vmax.f32 %v644, %v782
      %v789 = vmax.f32 %v645, %v784
      %s790 = scalar_lea.vmem %s198, 512
      %v791 = vld [vmem:[%s790] sm:$0xff]
      %v792 = vld [vmem:[%s790 + $0x8] sm:$0xff]
      %v793 = vld [vmem:[%s790 + $0x10] sm:$0xff]
      %v794 = vld [vmem:[%s790 + $0x18] sm:$0xff]
      %v795 = vld [vmem:[%s790 + $0x20] sm:$0xff]
      %v796 = vld [vmem:[%s790 + $0x28] sm:$0xff]
      %v797 = vld [vmem:[%s790 + $0x30] sm:$0xff]
      %v798 = vld [vmem:[%s790 + $0x38] sm:$0xff]
      %v799 = vld [vmem:[%s790 + $0x40] sm:$0xff]
      %v800 = vld [vmem:[%s790 + $0x48] sm:$0xff]
      %v801 = vld [vmem:[%s790 + $0x50] sm:$0xff]
      %v802 = vld [vmem:[%s790 + $0x58] sm:$0xff]
      %v803 = vld [vmem:[%s790 + $0x60] sm:$0xff]
      %v804 = vld [vmem:[%s790 + $0x68] sm:$0xff]
      %v805 = vld [vmem:[%s790 + $0x70] sm:$0xff]
      %v806 = vld [vmem:[%s790 + $0x78] sm:$0xff]
      %v823 = vunpack.c.l.b16 %v791
      %v824 = vunpack.c.h.b16 %v791
      %v825 = vunpack.c.l.b16 %v792
      %v826 = vunpack.c.h.b16 %v792
      %v827 = vunpack.c.l.b16 %v793
      %v828 = vunpack.c.h.b16 %v793
      %v829 = vunpack.c.l.b16 %v794
      %v830 = vunpack.c.h.b16 %v794
      %v831 = vunpack.c.l.b16 %v795
      %v832 = vunpack.c.h.b16 %v795
      %v833 = vunpack.c.l.b16 %v796
      %v834 = vunpack.c.h.b16 %v796
      %v835 = vunpack.c.l.b16 %v797
      %v836 = vunpack.c.h.b16 %v797
      %v837 = vunpack.c.l.b16 %v798
      %v838 = vunpack.c.h.b16 %v798
      %v839 = vunpack.c.l.b16 %v799
      %v840 = vunpack.c.h.b16 %v799
      %v841 = vunpack.c.l.b16 %v800
      %v842 = vunpack.c.h.b16 %v800
      %v843 = vunpack.c.l.b16 %v801
      %v844 = vunpack.c.h.b16 %v801
      %v845 = vunpack.c.l.b16 %v802
      %v846 = vunpack.c.h.b16 %v802
      %v847 = vunpack.c.l.b16 %v803
      %v848 = vunpack.c.h.b16 %v803
      %v849 = vunpack.c.l.b16 %v804
      %v850 = vunpack.c.h.b16 %v804
      %v851 = vunpack.c.l.b16 %v805
      %v852 = vunpack.c.h.b16 %v805
      %v853 = vunpack.c.l.b16 %v806
      %v854 = vunpack.c.h.b16 %v806
      %v855 = vpack.c.b16 %v825, %v823
      %v856 = vpack.c.b16 %v826, %v824
      %v857 = vpack.c.b16 %v829, %v827
      %v858 = vpack.c.b16 %v830, %v828
      %v859 = vpack.c.b16 %v833, %v831
      %v860 = vpack.c.b16 %v834, %v832
      %v861 = vpack.c.b16 %v837, %v835
      %v862 = vpack.c.b16 %v838, %v836
      %v863 = vpack.c.b16 %v841, %v839
      %v864 = vpack.c.b16 %v842, %v840
      %v865 = vpack.c.b16 %v845, %v843
      %v866 = vpack.c.b16 %v846, %v844
      %v867 = vpack.c.b16 %v849, %v847
      %v868 = vpack.c.b16 %v850, %v848
      %v869 = vpack.c.b16 %v853, %v851
      %v870 = vpack.c.b16 %v854, %v852
      %887 = vmatprep.subr.bf16.mxu0 %v856
      %888 = vmatpush1.bf16.msra.mxu0 %v855
      %889 = vmatprep.subr.bf16.mxu0 %v858
      %890 = vmatpush1.bf16.msra.mxu0 %v857
      %891 = vmatprep.subr.bf16.mxu0 %v860
      %892 = vmatpush1.bf16.msra.mxu0 %v859
      %893 = vmatprep.subr.bf16.mxu0 %v862
      %894 = vmatpush1.bf16.msra.mxu0 %v861
      %895 = vmatprep.subr.bf16.mxu0 %v864
      %896 = vmatpush1.bf16.msra.mxu0 %v863
      %897 = vmatprep.subr.bf16.mxu0 %v866
      %898 = vmatpush1.bf16.msra.mxu0 %v865
      %899 = vmatprep.subr.bf16.mxu0 %v868
      %900 = vmatpush1.bf16.msra.mxu0 %v867
      %901 = vmatprep.subr.bf16.mxu0 %v870
      %902 = vmatpush1.bf16.msra.mxu0 %v869
      %903 = vmatprep.subr.bf16.mxu0 0
      %904 = vmatpush1.bf16.msra.mxu0 0
      %905 = vmatprep.subr.bf16.mxu0 0
      %906 = vmatpush1.bf16.msra.mxu0 0
      %907 = vmatprep.subr.bf16.mxu0 0
      %908 = vmatpush1.bf16.msra.mxu0 0
      %909 = vmatprep.subr.bf16.mxu0 0
      %910 = vmatpush1.bf16.msra.mxu0 0
      %911 = vmatprep.subr.bf16.mxu0 0
      %912 = vmatpush1.bf16.msra.mxu0 0
      %913 = vmatprep.subr.bf16.mxu0 0
      %914 = vmatpush1.bf16.msra.mxu0 0
      %915 = vmatprep.subr.bf16.mxu0 0
      %916 = vmatpush1.bf16.msra.mxu0 0
      %917 = vmatprep.subr.bf16.mxu0 0
      %918 = vmatpush1.bf16.msra.mxu0 0
      %919 = vmatprep.mubr.bf16.mxu0 0
      %920 = vmatmul.mubr.bf16.gmra.mrb[0].mxu0 %v233
      %v921 = vpop.f32.mrb[0].mxu0
      %v922 = vadd.f32 0.0, %v921
      %v923 = vpop.f32.mrb[0].mxu0
      %v924 = vadd.f32 0.0, %v923
      %v925 = vpop.f32.mrb[0].mxu0
      %v926 = vadd.f32 0.0, %v925
      %v927 = vpop.f32.mrb[0].mxu0
      %v928 = vadd.f32 0.0, %v927
      %929 = vdwg.mxu0
      %v930 = vmax.f32 %v786, %v922
      %v931 = vmax.f32 %v787, %v924
      %v932 = vmax.f32 %v788, %v926
      %v933 = vmax.f32 %v789, %v928
      %s934 = scalar_lea.vmem %s198, 640
      %v935 = vld [vmem:[%s934] sm:$0xff]
      %v936 = vld [vmem:[%s934 + $0x8] sm:$0xff]
      %v937 = vld [vmem:[%s934 + $0x10] sm:$0xff]
      %v938 = vld [vmem:[%s934 + $0x18] sm:$0xff]
      %v939 = vld [vmem:[%s934 + $0x20] sm:$0xff]
      %v940 = vld [vmem:[%s934 + $0x28] sm:$0xff]
      %v941 = vld [vmem:[%s934 + $0x30] sm:$0xff]
      %v942 = vld [vmem:[%s934 + $0x38] sm:$0xff]
      %v943 = vld [vmem:[%s934 + $0x40] sm:$0xff]
      %v944 = vld [vmem:[%s934 + $0x48] sm:$0xff]
      %v945 = vld [vmem:[%s934 + $0x50] sm:$0xff]
      %v946 = vld [vmem:[%s934 + $0x58] sm:$0xff]
      %v947 = vld [vmem:[%s934 + $0x60] sm:$0xff]
      %v948 = vld [vmem:[%s934 + $0x68] sm:$0xff]
      %v949 = vld [vmem:[%s934 + $0x70] sm:$0xff]
      %v950 = vld [vmem:[%s934 + $0x78] sm:$0xff]
      %v967 = vunpack.c.l.b16 %v935
      %v968 = vunpack.c.h.b16 %v935
      %v969 = vunpack.c.l.b16 %v936
      %v970 = vunpack.c.h.b16 %v936
      %v971 = vunpack.c.l.b16 %v937
      %v972 = vunpack.c.h.b16 %v937
      %v973 = vunpack.c.l.b16 %v938
      %v974 = vunpack.c.h.b16 %v938
      %v975 = vunpack.c.l.b16 %v939
      %v976 = vunpack.c.h.b16 %v939
      %v977 = vunpack.c.l.b16 %v940
      %v978 = vunpack.c.h.b16 %v940
      %v979 = vunpack.c.l.b16 %v941
      %v980 = vunpack.c.h.b16 %v941
      %v981 = vunpack.c.l.b16 %v942
      %v982 = vunpack.c.h.b16 %v942
      %v983 = vunpack.c.l.b16 %v943
      %v984 = vunpack.c.h.b16 %v943
      %v985 = vunpack.c.l.b16 %v944
      %v986 = vunpack.c.h.b16 %v944
      %v987 = vunpack.c.l.b16 %v945
      %v988 = vunpack.c.h.b16 %v945
      %v989 = vunpack.c.l.b16 %v946
      %v990 = vunpack.c.h.b16 %v946
      %v991 = vunpack.c.l.b16 %v947
      %v992 = vunpack.c.h.b16 %v947
      %v993 = vunpack.c.l.b16 %v948
      %v994 = vunpack.c.h.b16 %v948
      %v995 = vunpack.c.l.b16 %v949
      %v996 = vunpack.c.h.b16 %v949
      %v997 = vunpack.c.l.b16 %v950
      %v998 = vunpack.c.h.b16 %v950
      %v999 = vpack.c.b16 %v969, %v967
      %v1000 = vpack.c.b16 %v970, %v968
      %v1001 = vpack.c.b16 %v973, %v971
      %v1002 = vpack.c.b16 %v974, %v972
      %v1003 = vpack.c.b16 %v977, %v975
      %v1004 = vpack.c.b16 %v978, %v976
      %v1005 = vpack.c.b16 %v981, %v979
      %v1006 = vpack.c.b16 %v982, %v980
      %v1007 = vpack.c.b16 %v985, %v983
      %v1008 = vpack.c.b16 %v986, %v984
      %v1009 = vpack.c.b16 %v989, %v987
      %v1010 = vpack.c.b16 %v990, %v988
      %v1011 = vpack.c.b16 %v993, %v991
      %v1012 = vpack.c.b16 %v994, %v992
      %v1013 = vpack.c.b16 %v997, %v995
      %v1014 = vpack.c.b16 %v998, %v996
      %1031 = vmatprep.subr.bf16.mxu0 %v1000
      %1032 = vmatpush1.bf16.msra.mxu0 %v999
      %1033 = vmatprep.subr.bf16.mxu0 %v1002
      %1034 = vmatpush1.bf16.msra.mxu0 %v1001
      %1035 = vmatprep.subr.bf16.mxu0 %v1004
      %1036 = vmatpush1.bf16.msra.mxu0 %v1003
      %1037 = vmatprep.subr.bf16.mxu0 %v1006
      %1038 = vmatpush1.bf16.msra.mxu0 %v1005
      %1039 = vmatprep.subr.bf16.mxu0 %v1008
      %1040 = vmatpush1.bf16.msra.mxu0 %v1007
      %1041 = vmatprep.subr.bf16.mxu0 %v1010
      %1042 = vmatpush1.bf16.msra.mxu0 %v1009
      %1043 = vmatprep.subr.bf16.mxu0 %v1012
      %1044 = vmatpush1.bf16.msra.mxu0 %v1011
      %1045 = vmatprep.subr.bf16.mxu0 %v1014
      %1046 = vmatpush1.bf16.msra.mxu0 %v1013
      %1047 = vmatprep.subr.bf16.mxu0 0
      %1048 = vmatpush1.bf16.msra.mxu0 0
      %1049 = vmatprep.subr.bf16.mxu0 0
      %1050 = vmatpush1.bf16.msra.mxu0 0
      %1051 = vmatprep.subr.bf16.mxu0 0
      %1052 = vmatpush1.bf16.msra.mxu0 0
      %1053 = vmatprep.subr.bf16.mxu0 0
      %1054 = vmatpush1.bf16.msra.mxu0 0
      %1055 = vmatprep.subr.bf16.mxu0 0
      %1056 = vmatpush1.bf16.msra.mxu0 0
      %1057 = vmatprep.subr.bf16.mxu0 0
      %1058 = vmatpush1.bf16.msra.mxu0 0
      %1059 = vmatprep.subr.bf16.mxu0 0
      %1060 = vmatpush1.bf16.msra.mxu0 0
      %1061 = vmatprep.subr.bf16.mxu0 0
      %1062 = vmatpush1.bf16.msra.mxu0 0
      %1063 = vmatprep.mubr.bf16.mxu0 0
      %1064 = vmatmul.mubr.bf16.gmra.mrb[0].mxu0 %v233
      %v1065 = vpop.f32.mrb[0].mxu0
      %v1066 = vadd.f32 0.0, %v1065
      %v1067 = vpop.f32.mrb[0].mxu0
      %v1068 = vadd.f32 0.0, %v1067
      %v1069 = vpop.f32.mrb[0].mxu0
      %v1070 = vadd.f32 0.0, %v1069
      %v1071 = vpop.f32.mrb[0].mxu0
      %v1072 = vadd.f32 0.0, %v1071
      %1073 = vdwg.mxu0
      %v1074 = vmax.f32 %v930, %v1066
      %v1075 = vmax.f32 %v931, %v1068
      %v1076 = vmax.f32 %v932, %v1070
      %v1077 = vmax.f32 %v933, %v1072
      %s1078 = scalar_lea.vmem %s198, 768
      %v1079 = vld [vmem:[%s1078] sm:$0xff]
      %v1080 = vld [vmem:[%s1078 + $0x8] sm:$0xff]
      %v1081 = vld [vmem:[%s1078 + $0x10] sm:$0xff]
      %v1082 = vld [vmem:[%s1078 + $0x18] sm:$0xff]
      %v1083 = vld [vmem:[%s1078 + $0x20] sm:$0xff]
      %v1084 = vld [vmem:[%s1078 + $0x28] sm:$0xff]
      %v1085 = vld [vmem:[%s1078 + $0x30] sm:$0xff]
      %v1086 = vld [vmem:[%s1078 + $0x38] sm:$0xff]
      %v1087 = vld [vmem:[%s1078 + $0x40] sm:$0xff]
      %v1088 = vld [vmem:[%s1078 + $0x48] sm:$0xff]
      %v1089 = vld [vmem:[%s1078 + $0x50] sm:$0xff]
      %v1090 = vld [vmem:[%s1078 + $0x58] sm:$0xff]
      %v1091 = vld [vmem:[%s1078 + $0x60] sm:$0xff]
      %v1092 = vld [vmem:[%s1078 + $0x68] sm:$0xff]
      %v1093 = vld [vmem:[%s1078 + $0x70] sm:$0xff]
      %v1094 = vld [vmem:[%s1078 + $0x78] sm:$0xff]
      %v1111 = vunpack.c.l.b16 %v1079
      %v1112 = vunpack.c.h.b16 %v1079
      %v1113 = vunpack.c.l.b16 %v1080
      %v1114 = vunpack.c.h.b16 %v1080
      %v1115 = vunpack.c.l.b16 %v1081
      %v1116 = vunpack.c.h.b16 %v1081
      %v1117 = vunpack.c.l.b16 %v1082
      %v1118 = vunpack.c.h.b16 %v1082
      %v1119 = vunpack.c.l.b16 %v1083
      %v1120 = vunpack.c.h.b16 %v1083
      %v1121 = vunpack.c.l.b16 %v1084
      %v1122 = vunpack.c.h.b16 %v1084
      %v1123 = vunpack.c.l.b16 %v1085
      %v1124 = vunpack.c.h.b16 %v1085
      %v1125 = vunpack.c.l.b16 %v1086
      %v1126 = vunpack.c.h.b16 %v1086
      %v1127 = vunpack.c.l.b16 %v1087
      %v1128 = vunpack.c.h.b16 %v1087
      %v1129 = vunpack.c.l.b16 %v1088
      %v1130 = vunpack.c.h.b16 %v1088
      %v1131 = vunpack.c.l.b16 %v1089
      %v1132 = vunpack.c.h.b16 %v1089
      %v1133 = vunpack.c.l.b16 %v1090
      %v1134 = vunpack.c.h.b16 %v1090
      %v1135 = vunpack.c.l.b16 %v1091
      %v1136 = vunpack.c.h.b16 %v1091
      %v1137 = vunpack.c.l.b16 %v1092
      %v1138 = vunpack.c.h.b16 %v1092
      %v1139 = vunpack.c.l.b16 %v1093
      %v1140 = vunpack.c.h.b16 %v1093
      %v1141 = vunpack.c.l.b16 %v1094
      %v1142 = vunpack.c.h.b16 %v1094
      %v1143 = vpack.c.b16 %v1113, %v1111
      %v1144 = vpack.c.b16 %v1114, %v1112
      %v1145 = vpack.c.b16 %v1117, %v1115
      %v1146 = vpack.c.b16 %v1118, %v1116
      %v1147 = vpack.c.b16 %v1121, %v1119
      %v1148 = vpack.c.b16 %v1122, %v1120
      %v1149 = vpack.c.b16 %v1125, %v1123
      %v1150 = vpack.c.b16 %v1126, %v1124
      %v1151 = vpack.c.b16 %v1129, %v1127
      %v1152 = vpack.c.b16 %v1130, %v1128
      %v1153 = vpack.c.b16 %v1133, %v1131
      %v1154 = vpack.c.b16 %v1134, %v1132
      %v1155 = vpack.c.b16 %v1137, %v1135
      %v1156 = vpack.c.b16 %v1138, %v1136
      %v1157 = vpack.c.b16 %v1141, %v1139
      %v1158 = vpack.c.b16 %v1142, %v1140
      %1175 = vmatprep.subr.bf16.mxu0 %v1144
      %1176 = vmatpush1.bf16.msra.mxu0 %v1143
      %1177 = vmatprep.subr.bf16.mxu0 %v1146
      %1178 = vmatpush1.bf16.msra.mxu0 %v1145
      %1179 = vmatprep.subr.bf16.mxu0 %v1148
      %1180 = vmatpush1.bf16.msra.mxu0 %v1147
      %1181 = vmatprep.subr.bf16.mxu0 %v1150
      %1182 = vmatpush1.bf16.msra.mxu0 %v1149
      %1183 = vmatprep.subr.bf16.mxu0 %v1152
      %1184 = vmatpush1.bf16.msra.mxu0 %v1151
      %1185 = vmatprep.subr.bf16.mxu0 %v1154
      %1186 = vmatpush1.bf16.msra.mxu0 %v1153
      %1187 = vmatprep.subr.bf16.mxu0 %v1156
      %1188 = vmatpush1.bf16.msra.mxu0 %v1155
      %1189 = vmatprep.subr.bf16.mxu0 %v1158
      %1190 = vmatpush1.bf16.msra.mxu0 %v1157
      %1191 = vmatprep.subr.bf16.mxu0 0
      %1192 = vmatpush1.bf16.msra.mxu0 0
      %1193 = vmatprep.subr.bf16.mxu0 0
      %1194 = vmatpush1.bf16.msra.mxu0 0
      %1195 = vmatprep.subr.bf16.mxu0 0
      %1196 = vmatpush1.bf16.msra.mxu0 0
      %1197 = vmatprep.subr.bf16.mxu0 0
      %1198 = vmatpush1.bf16.msra.mxu0 0
      %1199 = vmatprep.subr.bf16.mxu0 0
      %1200 = vmatpush1.bf16.msra.mxu0 0
      %1201 = vmatprep.subr.bf16.mxu0 0
      %1202 = vmatpush1.bf16.msra.mxu0 0
      %1203 = vmatprep.subr.bf16.mxu0 0
      %1204 = vmatpush1.bf16.msra.mxu0 0
      %1205 = vmatprep.subr.bf16.mxu0 0
      %1206 = vmatpush1.bf16.msra.mxu0 0
      %1207 = vmatprep.mubr.bf16.mxu0 0
      %1208 = vmatmul.mubr.bf16.gmra.mrb[0].mxu0 %v233
      %v1209 = vpop.f32.mrb[0].mxu0
      %v1210 = vadd.f32 0.0, %v1209
      %v1211 = vpop.f32.mrb[0].mxu0
      %v1212 = vadd.f32 0.0, %v1211
      %v1213 = vpop.f32.mrb[0].mxu0
      %v1214 = vadd.f32 0.0, %v1213
      %v1215 = vpop.f32.mrb[0].mxu0
      %v1216 = vadd.f32 0.0, %v1215
      %1217 = vdwg.mxu0
      %v1218 = vmax.f32 %v1074, %v1210
      %v1219 = vmax.f32 %v1075, %v1212
      %v1220 = vmax.f32 %v1076, %v1214
      %v1221 = vmax.f32 %v1077, %v1216
      %s1222 = scalar_lea.vmem %s198, 896
      %v1223 = vld [vmem:[%s1222] sm:$0xff]
      %v1224 = vld [vmem:[%s1222 + $0x8] sm:$0xff]
      %v1225 = vld [vmem:[%s1222 + $0x10] sm:$0xff]
      %v1226 = vld [vmem:[%s1222 + $0x18] sm:$0xff]
      %v1227 = vld [vmem:[%s1222 + $0x20] sm:$0xff]
      %v1228 = vld [vmem:[%s1222 + $0x28] sm:$0xff]
      %v1229 = vld [vmem:[%s1222 + $0x30] sm:$0xff]
      %v1230 = vld [vmem:[%s1222 + $0x38] sm:$0xff]
      %v1231 = vld [vmem:[%s1222 + $0x40] sm:$0xff]
      %v1232 = vld [vmem:[%s1222 + $0x48] sm:$0xff]
      %v1233 = vld [vmem:[%s1222 + $0x50] sm:$0xff]
      %v1234 = vld [vmem:[%s1222 + $0x58] sm:$0xff]
      %v1235 = vld [vmem:[%s1222 + $0x60] sm:$0xff]
      %v1236 = vld [vmem:[%s1222 + $0x68] sm:$0xff]
      %v1237 = vld [vmem:[%s1222 + $0x70] sm:$0xff]
      %v1238 = vld [vmem:[%s1222 + $0x78] sm:$0xff]
      %v1255 = vunpack.c.l.b16 %v1223
      %v1256 = vunpack.c.h.b16 %v1223
      %v1257 = vunpack.c.l.b16 %v1224
      %v1258 = vunpack.c.h.b16 %v1224
      %v1259 = vunpack.c.l.b16 %v1225
      %v1260 = vunpack.c.h.b16 %v1225
      %v1261 = vunpack.c.l.b16 %v1226
      %v1262 = vunpack.c.h.b16 %v1226
      %v1263 = vunpack.c.l.b16 %v1227
      %v1264 = vunpack.c.h.b16 %v1227
      %v1265 = vunpack.c.l.b16 %v1228
      %v1266 = vunpack.c.h.b16 %v1228
      %v1267 = vunpack.c.l.b16 %v1229
      %v1268 = vunpack.c.h.b16 %v1229
      %v1269 = vunpack.c.l.b16 %v1230
      %v1270 = vunpack.c.h.b16 %v1230
      %v1271 = vunpack.c.l.b16 %v1231
      %v1272 = vunpack.c.h.b16 %v1231
      %v1273 = vunpack.c.l.b16 %v1232
      %v1274 = vunpack.c.h.b16 %v1232
      %v1275 = vunpack.c.l.b16 %v1233
      %v1276 = vunpack.c.h.b16 %v1233
      %v1277 = vunpack.c.l.b16 %v1234
      %v1278 = vunpack.c.h.b16 %v1234
      %v1279 = vunpack.c.l.b16 %v1235
      %v1280 = vunpack.c.h.b16 %v1235
      %v1281 = vunpack.c.l.b16 %v1236
      %v1282 = vunpack.c.h.b16 %v1236
      %v1283 = vunpack.c.l.b16 %v1237
      %v1284 = vunpack.c.h.b16 %v1237
      %v1285 = vunpack.c.l.b16 %v1238
      %v1286 = vunpack.c.h.b16 %v1238
      %v1287 = vpack.c.b16 %v1257, %v1255
      %v1288 = vpack.c.b16 %v1258, %v1256
      %v1289 = vpack.c.b16 %v1261, %v1259
      %v1290 = vpack.c.b16 %v1262, %v1260
      %v1291 = vpack.c.b16 %v1265, %v1263
      %v1292 = vpack.c.b16 %v1266, %v1264
      %v1293 = vpack.c.b16 %v1269, %v1267
      %v1294 = vpack.c.b16 %v1270, %v1268
      %v1295 = vpack.c.b16 %v1273, %v1271
      %v1296 = vpack.c.b16 %v1274, %v1272
      %v1297 = vpack.c.b16 %v1277, %v1275
      %v1298 = vpack.c.b16 %v1278, %v1276
      %v1299 = vpack.c.b16 %v1281, %v1279
      %v1300 = vpack.c.b16 %v1282, %v1280
      %v1301 = vpack.c.b16 %v1285, %v1283
      %v1302 = vpack.c.b16 %v1286, %v1284
      %1319 = vmatprep.subr.bf16.mxu0 %v1288
      %1320 = vmatpush1.bf16.msra.mxu0 %v1287
      %1321 = vmatprep.subr.bf16.mxu0 %v1290
      %1322 = vmatpush1.bf16.msra.mxu0 %v1289
      %1323 = vmatprep.subr.bf16.mxu0 %v1292
      %1324 = vmatpush1.bf16.msra.mxu0 %v1291
      %1325 = vmatprep.subr.bf16.mxu0 %v1294
      %1326 = vmatpush1.bf16.msra.mxu0 %v1293
      %1327 = vmatprep.subr.bf16.mxu0 %v1296
      %1328 = vmatpush1.bf16.msra.mxu0 %v1295
      %1329 = vmatprep.subr.bf16.mxu0 %v1298
      %1330 = vmatpush1.bf16.msra.mxu0 %v1297
      %1331 = vmatprep.subr.bf16.mxu0 %v1300
      %1332 = vmatpush1.bf16.msra.mxu0 %v1299
      %1333 = vmatprep.subr.bf16.mxu0 %v1302
      %1334 = vmatpush1.bf16.msra.mxu0 %v1301
      %1335 = vmatprep.subr.bf16.mxu0 0
      %1336 = vmatpush1.bf16.msra.mxu0 0
      %1337 = vmatprep.subr.bf16.mxu0 0
      %1338 = vmatpush1.bf16.msra.mxu0 0
      %1339 = vmatprep.subr.bf16.mxu0 0
      %1340 = vmatpush1.bf16.msra.mxu0 0
      %1341 = vmatprep.subr.bf16.mxu0 0
      %1342 = vmatpush1.bf16.msra.mxu0 0
      %1343 = vmatprep.subr.bf16.mxu0 0
      %1344 = vmatpush1.bf16.msra.mxu0 0
      %1345 = vmatprep.subr.bf16.mxu0 0
      %1346 = vmatpush1.bf16.msra.mxu0 0
      %1347 = vmatprep.subr.bf16.mxu0 0
      %1348 = vmatpush1.bf16.msra.mxu0 0
      %1349 = vmatprep.subr.bf16.mxu0 0
      %1350 = vmatpush1.bf16.msra.mxu0 0
      %1351 = vmatprep.mubr.bf16.mxu0 0
      %1352 = vmatmul.mubr.bf16.gmra.mrb[0].mxu0 %v233
      %v1353 = vpop.f32.mrb[0].mxu0
      %v1354 = vadd.f32 0.0, %v1353
      %v1355 = vpop.f32.mrb[0].mxu0
      %v1356 = vadd.f32 0.0, %v1355
      %v1357 = vpop.f32.mrb[0].mxu0
      %v1358 = vadd.f32 0.0, %v1357
      %v1359 = vpop.f32.mrb[0].mxu0
      %v1360 = vadd.f32 0.0, %v1359
      %1361 = vdwg.mxu0
      %v1362 = vmax.f32 %v1218, %v1354
      %v1363 = vmax.f32 %v1219, %v1356
      %v1364 = vmax.f32 %v1220, %v1358
      %v1365 = vmax.f32 %v1221, %v1360
      %v1366 = vld [vmem:[%s2] sm:$0xff]
      %v1367 = vld [vmem:[%s2 + $0x8] sm:$0xff]
      %1369 = vset.pattern.permute.xlu0 0
      %1370 = vperm.xlu0 %1369, %v1366
      %v1371 = vpop.permute.xlu0 %1370
      %1374 = vset.pattern.permute.xlu0 0
      %1375 = vperm.xlu0 %1374, %v1367
      %v1376 = vpop.permute.xlu0 %1375
      %v1378 = vadd.f32 %v1362, %v1371
      %v1379 = vadd.f32 %v1363, %v1371
      %v1380 = vadd.f32 %v1364, %v1376
      %v1381 = vadd.f32 %v1365, %v1376
      %v1382 = vmax.f32 %v1378, 0.0
      %v1383 = vmax.f32 %v1379, 0.0
      %v1384 = vmax.f32 %v1380, 0.0
      %v1385 = vmax.f32 %v1381, 0.0
      %v1386 = vpack.c.bf16 %v1384, %v1382
      %v1387 = vpack.c.bf16 %v1385, %v1383
      %v1390 = vunpack.c.l.b16 %v1386
      %v1391 = vunpack.c.l.b16 %v1387
      %v1392 = vunpack.c.h.b16 %v1386
      %v1393 = vunpack.c.h.b16 %v1387
      %v1394 = vpack.c.b16 %v1391, %v1390
      %v1395 = vpack.c.b16 %v1393, %v1392
      %1398 = vst [vmem:[%s208] sm:$0xff] %v1394
      %1399 = vst [vmem:[%s208 + $0x8] sm:$0xff] %v1395
      %s1400 = smul.u32 2, %s19
      %p1401 = scmp.lt.s32.totalorder %s18, 1
      %s1402 = scalar_select %p1401, %s18, 1
      %p1403 = scmp.lt.s32.totalorder %s1400, 1
      %s1404 = scalar_select %p1403, %s1400, 1
      %s1405 = smul.addr %s1402, 4
      %s1406 = sadd.s32 %s1404, %s1405
      %s1407 = smul.addr %s1406, 4
      %s1408 = scalar_lea.vmem %s3, %s1407
      // Predicated region
      $region33: #{perception_net_forward.2} parent=31 // pred_check
        %p1409 = pneg %p116
      $region34: #{perception_net_forward.2} parent=31 // pred_check_branch
        %1411 = sbr.rel (%p1409) target = $region36
      $region35: #{perception_net_forward.2} parent=31 // pred_region
        %s1412 = smul.u32 2, %s19
      $region36: #{perception_net_forward.2} parent=31 // pred_fallthru
        _
    $region32: #{perception_net_forward.2} parent=5 // pred_fallthru
      _
    %p1413 = scmp.le.s32.totalorder 2, %s9
    // Predicated region
    $region37: #{perception_net_forward.2} parent=5 // pred_check
      %p1414 = pneg %p1413
    $region38: #{perception_net_forward.2} parent=5 // pred_check_branch
      %1416 = sbr.rel (%p1414) target = $region40
    $region39: #{perception_net_forward.2} parent=5 // pred_region
      %s1417 = ssub.s32 %s9, 2
      // Predicated region
      $region41: #{perception_net_forward.2} parent=39 // pred_check
        %p1418 = pneg %p122
      $region42: #{perception_net_forward.2} parent=39 // pred_check_branch
        %1420 = sbr.rel (%p1418) target = $region44
      $region43: #{perception_net_forward.2} parent=39 // pred_region
        %s1421 = smul.u32 2, %s21
        %p1422 = scmp.lt.s32.totalorder %s20, 1
        %s1423 = scalar_select %p1422, %s20, 1
        %p1424 = scmp.lt.s32.totalorder %s1421, 1
        %s1425 = scalar_select %p1424, %s1421, 1
        %s1426 = smul.addr %s1423, 4
        %s1427 = sadd.s32 %s1425, %s1426
        %s1428 = smul.addr %s1427, 4
        %s1429 = scalar_lea.vmem %s3, %s1428
      $region44: #{perception_net_forward.2} parent=39 // pred_fallthru
        _
    $region40: #{perception_net_forward.2} parent=5 // pred_fallthru
      _
  $region6: #{perception_net_forward.2} parent=0 // loop_footer
    %s13 = sadd.s32 1, %s9
  $region7: #{perception_net_forward.2} parent=0 // loop_footer_branch
    %8 = sbr.rel target = $region3
  $region8: #{perception_net_forward.2} parent=0 // loop_exit
    _

// kernel: perception_net_forward.3
$region0: #{perception_net_forward.3}
  #allocation0 [shape = 'u32[]', space=smem, size = 0x4, offset = 0x4, fixed_abs, tag = 'smem constant byte address 0x4 - core index']
  #allocation1 [shape = 'u32[144,128]{1,0:T(1,128)}', space=vmem, size = 0x12000, scoped, tag = 'internal scratch']
  %s0 = inlined_call_operand.vmem [shape: bf16[2,8,512,128], index: 0, kind: input, shape index: {}]
  %s1 = inlined_call_operand.vmem [shape: bf16[32,512], index: 1, kind: input, shape index: {}]
  %s2 = inlined_call_operand.vmem [shape: f32[32,1], index: 2, kind: input, shape index: {}]
  %s3 = inlined_call_operand.vmem [shape: f32[2,32,128], index: 3, kind: output, shape index: {}]
  %s4 = sld [smem:[#allocation0]]
  $region45: #{perception_net_forward.3} parent=0
    _
  %s6 = ssub.s32 1, %s4
  %s7 = scalar_select 0, %s6, %s4
  loop: start=0, step=1, limit=4
  $region2: #{perception_net_forward.3} parent=0 // loop_pre_header
    _
  $region3: #{perception_net_forward.3} parent=0 // loop_header
    %s9 = sphi 0, %s13
    %p10 = scmp.ge.s32.totalorder %s9, 4
    %s16 = sphi 0, %s28
    %s17 = sphi 0, %s24
    %s18 = sphi 0, %s16
    %s19 = sphi 0, %s17
    %s20 = sphi 0, %s18
    %s21 = sphi 0, %s19
    %s33 = sphi 0, %s35
    %s36 = sphi 0, %s33
    %s37 = sphi 0, %s36
    %s53 = sphi 0, %s37
    %s57 = sphi 0, %s57
    %s59 = sphi 0, %s57
    %s60 = sphi 0, %s59
    %s74 = sphi 0, %s60
    %s78 = sphi 0, %s78
    %s80 = sphi 0, %s78
    %s81 = sphi 0, %s80
    %s95 = sphi 0, %s81
    %s103 = sphi 0, %s105
    %s106 = sphi 0, %s103
    %s107 = sphi 0, %s106
    %s123 = sphi 0, %s107
  $region4: #{perception_net_forward.3} parent=0 // loop_header_branch
    %12 = sbr.rel (%p10) target = $region8
  $region5: #{perception_net_forward.3} parent=0 // loop_body
    %s14 = ssub.s32 %s9, 1
    %s15 = ssub.s32 %s9, 2
    %s22 = sadd.s32 1, %s17
    %p23 = scmp.ge.s32.totalorder %s22, 1
    %s24 = scalar_select %p23, 0, %s22
    %s25 = sadd.s32 1, %s16
    %s26 = scalar_select %p23, %s25, %s16
    %p27 = scmp.ge.s32.totalorder %s26, 2
    %s28 = scalar_select %p27, 0, %s26
    %s29 = ssub.s32 %s16, %s28
    %s30 = ssub.s32 %s17, %s24
    %s31 = sor.u32 %s29, %s30
    %p32 = scmp.eq.s32.totalorder %s31, 0
    %s34 = sadd.s32 %s33, 1
    %s35 = scalar_select %p32, %s33, %s34
    %p38 = pneg %p32
    %p39 = scmp.eq.s32.totalorder %s9, 1
    %p40 = por %p38, %p39
    %p41 = scmp.ne.s32.totalorder %s33, %s36
    %p42 = scmp.eq.s32.totalorder %s9, 0
    %p43 = por %p41, %p42
    %p44 = scmp.ne.s32.totalorder %s33, %s36
    %p45 = scmp.eq.s32.totalorder %s14, 1
    %p46 = por %p44, %p45
    %p47 = scmp.ne.s32.totalorder %s36, %s37
    %p48 = scmp.eq.s32.totalorder %s14, 0
    %p49 = por %p47, %p48
    %p50 = scmp.ne.s32.totalorder %s36, %s37
    %p51 = scmp.eq.s32.totalorder %s15, 1
    %p52 = por %p50, %p51
    %p54 = scmp.ne.s32.totalorder %s37, %s53
    %p55 = scmp.eq.s32.totalorder %s15, 0
    %p56 = por %p54, %p55
    %s58 = sadd.s32 %s57, 1
    %p61 = scmp.eq.s32.totalorder %s9, 1
    %p62 = scmp.ne.s32.totalorder %s57, %s59
    %p63 = scmp.eq.s32.totalorder %s9, 0
    %p64 = por %p62, %p63
    %p65 = scmp.ne.s32.totalorder %s57, %s59
    %p66 = scmp.eq.s32.totalorder %s14, 1
    %p67 = por %p65, %p66
    %p68 = scmp.ne.s32.totalorder %s59, %s60
    %p69 = scmp.eq.s32.totalorder %s14, 0
    %p70 = por %p68, %p69
    %p71 = scmp.ne.s32.totalorder %s59, %s60
    %p72 = scmp.eq.s32.totalorder %s15, 1
    %p73 = por %p71, %p72
    %p75 = scmp.ne.s32.totalorder %s60, %s74
    %p76 = scmp.eq.s32.totalorder %s15, 0
    %p77 = por %p75, %p76
    %s79 = sadd.s32 %s78, 1
    %p82 = scmp.eq.s32.totalorder %s9, 1
    %p83 = scmp.ne.s32.totalorder %s78, %s80
    %p84 = scmp.eq.s32.totalorder %s9, 0
    %p85 = por %p83, %p84
    %p86 = scmp.ne.s32.totalorder %s78, %s80
    %p87 = scmp.eq.s32.totalorder %s14, 1
    %p88 = por %p86, %p87
    %p89 = scmp.ne.s32.totalorder %s80, %s81
    %p90 = scmp.eq.s32.totalorder %s14, 0
    %p91 = por %p89, %p90
    %p92 = scmp.ne.s32.totalorder %s80, %s81
    %p93 = scmp.eq.s32.totalorder %s15, 1
    %p94 = por %p92, %p93
    %p96 = scmp.ne.s32.totalorder %s81, %s95
    %p97 = scmp.eq.s32.totalorder %s15, 0
    %p98 = por %p96, %p97
    %s99 = ssub.s32 %s16, %s28
    %s100 = ssub.s32 %s17, %s24
    %s101 = sor.u32 %s99, %s100
    %p102 = scmp.eq.s32.totalorder %s101, 0
    %s104 = sadd.s32 %s103, 1
    %s105 = scalar_select %p102, %s103, %s104
    %p108 = pneg %p102
    %p109 = scmp.eq.s32.totalorder %s9, 1
    %p110 = por %p108, %p109
    %p111 = scmp.ne.s32.totalorder %s103, %s106
    %p112 = scmp.eq.s32.totalorder %s9, 0
    %p113 = por %p111, %p112
    %p114 = scmp.ne.s32.totalorder %s103, %s106
    %p115 = scmp.eq.s32.totalorder %s14, 1
    %p116 = por %p114, %p115
    %p117 = scmp.ne.s32.totalorder %s106, %s107
    %p118 = scmp.eq.s32.totalorder %s14, 0
    %p119 = por %p117, %p118
    %p120 = scmp.ne.s32.totalorder %s106, %s107
    %p121 = scmp.eq.s32.totalorder %s15, 1
    %p122 = por %p120, %p121
    %p124 = scmp.ne.s32.totalorder %s107, %s123
    %p125 = scmp.eq.s32.totalorder %s15, 0
    %p126 = por %p124, %p125
    %p127 = scmp.le.s32.totalorder 1, %s9
    %p128 = scmp.lt.s32.totalorder %s9, 3
    %p129 = pnand %p127, %p128
    %p130 = pneg %p129
    // Predicated region
    $region9: #{perception_net_forward.3} parent=5 // pred_check
      _
    $region10: #{perception_net_forward.3} parent=5 // pred_check_branch
      %132 = sbr.rel (%p129) target = $region12
    $region11: #{perception_net_forward.3} parent=5 // pred_region
      %s133 = ssub.s32 %s9, 1
      // Predicated region
      $region13: #{perception_net_forward.3} parent=11 // pred_check
        %p134 = pneg %p70
      $region14: #{perception_net_forward.3} parent=11 // pred_check_branch
        %136 = sbr.rel (%p134) target = $region16
      $region15: #{perception_net_forward.3} parent=11 // pred_region
        _
      $region16: #{perception_net_forward.3} parent=11 // pred_fallthru
        _
      // Predicated region
      $region17: #{perception_net_forward.3} parent=11 // pred_check
        %p137 = pneg %p91
      $region18: #{perception_net_forward.3} parent=11 // pred_check_branch
        %139 = sbr.rel (%p137) target = $region20
      $region19: #{perception_net_forward.3} parent=11 // pred_region
        _
      $region20: #{perception_net_forward.3} parent=11 // pred_fallthru
        _
    $region12: #{perception_net_forward.3} parent=5 // pred_fallthru
      _
    %p140 = scmp.lt.s32.totalorder %s9, 2
    // Predicated region
    $region21: #{perception_net_forward.3} parent=5 // pred_check
      %p141 = pneg %p140
    $region22: #{perception_net_forward.3} parent=5 // pred_check_branch
      %143 = sbr.rel (%p141) target = $region24
    $region23: #{perception_net_forward.3} parent=5 // pred_region
      // Predicated region
      $region25: #{perception_net_forward.3} parent=23 // pred_check
        %p144 = pneg %p43
      $region26: #{perception_net_forward.3} parent=23 // pred_check_branch
        %146 = sbr.rel (%p144) target = $region28
      $region27: #{perception_net_forward.3} parent=23 // pred_region
        %p147 = scmp.lt.s32.totalorder %s16, 1
        %s148 = scalar_select %p147, %s16, 1
        %p149 = scmp.lt.s32.totalorder %s17, 0
        %s150 = scalar_select %p149, %s17, 0
        %s151 = smul.addr %s148, 512
        %s152 = sadd.s32 %s150, %s151
        %s153 = smul.addr %s152, 4
        %s154 = scalar_lea.vmem %s0, %s153
      $region28: #{perception_net_forward.3} parent=23 // pred_fallthru
        _
    $region24: #{perception_net_forward.3} parent=5 // pred_fallthru
      _
    %p155 = scmp.le.s32.totalorder 1, %s9
    %p156 = scmp.lt.s32.totalorder %s9, 3
    %p157 = pnand %p155, %p156
    %p158 = pneg %p157
    // Predicated region
    $region29: #{perception_net_forward.3} parent=5 // pred_check
      _
    $region30: #{perception_net_forward.3} parent=5 // pred_check_branch
      %160 = sbr.rel (%p157) target = $region32
    $region31: #{perception_net_forward.3} parent=5 // pred_region
      %s161 = ssub.s32 %s9, 1
      %p162 = scmp.lt.s32.totalorder %s18, 1
      %s163 = scalar_select %p162, %s18, 1
      %p164 = scmp.lt.s32.totalorder %s19, 0
      %s165 = scalar_select %p164, %s19, 0
      %s166 = smul.addr %s163, 512
      %s167 = sadd.s32 %s165, %s166
      %s168 = smul.addr %s167, 4
      %s169 = scalar_lea.vmem %s0, %s168
      %p170 = pneg %p49
      %p171 = pneg %p46
      %p172 = pneg %p70
      %p173 = pneg %p67
      %p174 = pneg %p91
      %p175 = pneg %p88
      %p176 = pneg %p119
      %p177 = pneg %p116
      %p178 = scmp.lt.s32.totalorder %s18, 1
      %s179 = scalar_select %p178, %s18, 1
      %p180 = scmp.lt.s32.totalorder %s19, 0
      %s181 = scalar_select %p180, %s19, 0
      %s182 = smul.addr %s179, 4
      %s183 = sadd.s32 %s181, %s182
      %s184 = smul.addr %s183, 8
      %s185 = scalar_lea.vmem %s3, %s184
      %p186 = scmp.lt.s32.totalorder %s18, 1
      %s187 = scalar_select %p186, %s18, 1
      %p188 = scmp.lt.s32.totalorder %s19, 0
      %s189 = scalar_select %p188, %s19, 0
      %s190 = smul.addr %s187, 512
      %s191 = sadd.s32 %s189, %s190
      %s192 = smul.addr %s191, 4
      %s193 = scalar_lea.vmem %s0, %s192
      %p194 = scmp.lt.s32.totalorder %s18, 1
      %s195 = scalar_select %p194, %s18, 1
      %p196 = scmp.lt.s32.totalorder %s19, 0
      %s197 = scalar_select %p196, %s19, 0
      %s198 = smul.addr %s195, 4
      %s199 = sadd.s32 %s197, %s198
      %s200 = smul.addr %s199, 8
      %s201 = scalar_lea.vmem %s3, %s200
      %v203 = vld [vmem:[%s1] sm:$0xff]
      %v204 = vld [vmem:[%s1 + $0x8] sm:$0xff]
      %v205 = vld [vmem:[%s1 + $0x10] sm:$0xff]
      %v206 = vld [vmem:[%s1 + $0x18] sm:$0xff]
      %v207 = vld [vmem:[%s1 + $0x20] sm:$0xff]
      %v208 = vld [vmem:[%s1 + $0x28] sm:$0xff]
      %v209 = vld [vmem:[%s1 + $0x30] sm:$0xff]
      %v210 = vld [vmem:[%s1 + $0x38] sm:$0xff]
      %v211 = vld [vmem:[%s193] sm:$0xf]
      %v212 = vld [vmem:[%s193 + $0x4] sm:$0xf]
      %v213 = vld [vmem:[%s193 + $0x8] sm:$0xf]
      %v214 = vld [vmem:[%s193 + $0xc] sm:$0xf]
      %v215 = vld [vmem:[%s193 + $0x10] sm:$0xf]
      %v216 = vld [vmem:[%s193 + $0x14] sm:$0xf]
      %v217 = vld [vmem:[%s193 + $0x18] sm:$0xf]
      %v218 = vld [vmem:[%s193 + $0x1c] sm:$0xf]
      %v219 = vld [vmem:[%s193 + $0x20] sm:$0xf]
      %v220 = vld [vmem:[%s193 + $0x24] sm:$0xf]
      %v221 = vld [vmem:[%s193 + $0x28] sm:$0xf]
      %v222 = vld [vmem:[%s193 + $0x2c] sm:$0xf]
      %v223 = vld [vmem:[%s193 + $0x30] sm:$0xf]
      %v224 = vld [vmem:[%s193 + $0x34] sm:$0xf]
      %v225 = vld [vmem:[%s193 + $0x38] sm:$0xf]
      %v226 = vld [vmem:[%s193 + $0x3c] sm:$0xf]
      %v227 = vld [vmem:[%s193 + $0x40] sm:$0xf]
      %v228 = vld [vmem:[%s193 + $0x44] sm:$0xf]
      %v229 = vld [vmem:[%s193 + $0x48] sm:$0xf]
      %v230 = vld [vmem:[%s193 + $0x4c] sm:$0xf]
      %v231 = vld [vmem:[%s193 + $0x50] sm:$0xf]
      %v232 = vld [vmem:[%s193 + $0x54] sm:$0xf]
      %v233 = vld [vmem:[%s193 + $0x58] sm:$0xf]
      %v234 = vld [vmem:[%s193 + $0x5c] sm:$0xf]
      %v235 = vld [vmem:[%s193 + $0x60] sm:$0xf]
      %v236 = vld [vmem:[%s193 + $0x64] sm:$0xf]
      %v237 = vld [vmem:[%s193 + $0x68] sm:$0xf]
      %v238 = vld [vmem:[%s193 + $0x6c] sm:$0xf]
      %v239 = vld [vmem:[%s193 + $0x70] sm:$0xf]
      %v240 = vld [vmem:[%s193 + $0x74] sm:$0xf]
      %v241 = vld [vmem:[%s193 + $0x78] sm:$0xf]
      %v242 = vld [vmem:[%s193 + $0x7c] sm:$0xf]
      %v243 = vld [vmem:[%s193 + $0x80] sm:$0xf]
      %v244 = vld [vmem:[%s193 + $0x84] sm:$0xf]
      %v245 = vld [vmem:[%s193 + $0x88] sm:$0xf]
      %v246 = vld [vmem:[%s193 + $0x8c] sm:$0xf]
      %v247 = vld [vmem:[%s193 + $0x90] sm:$0xf]
      %v248 = vld [vmem:[%s193 + $0x94] sm:$0xf]
      %v249 = vld [vmem:[%s193 + $0x98] sm:$0xf]
      %v250 = vld [vmem:[%s193 + $0x9c] sm:$0xf]
      %v251 = vld [vmem:[%s193 + $0xa0] sm:$0xf]
      %v252 = vld [vmem:[%s193 + $0xa4] sm:$0xf]
      %v253 = vld [vmem:[%s193 + $0xa8] sm:$0xf]
      %v254 = vld [vmem:[%s193 + $0xac] sm:$0xf]
      %v255 = vld [vmem:[%s193 + $0xb0] sm:$0xf]
      %v256 = vld [vmem:[%s193 + $0xb4] sm:$0xf]
      %v257 = vld [vmem:[%s193 + $0xb8] sm:$0xf]
      %v258 = vld [vmem:[%s193 + $0xbc] sm:$0xf]
      %v259 = vld [vmem:[%s193 + $0xc0] sm:$0xf]
      %v260 = vld [vmem:[%s193 + $0xc4] sm:$0xf]
      %v261 = vld [vmem:[%s193 + $0xc8] sm:$0xf]
      %v262 = vld [vmem:[%s193 + $0xcc] sm:$0xf]
      %v263 = vld [vmem:[%s193 + $0xd0] sm:$0xf]
      %v264 = vld [vmem:[%s193 + $0xd4] sm:$0xf]
      %v265 = vld [vmem:[%s193 + $0xd8] sm:$0xf]
      %v266 = vld [vmem:[%s193 + $0xdc] sm:$0xf]
      %v267 = vld [vmem:[%s193 + $0xe0] sm:$0xf]
      %v268 = vld [vmem:[%s193 + $0xe4] sm:$0xf]
      %v269 = vld [vmem:[%s193 + $0xe8] sm:$0xf]
      %v270 = vld [vmem:[%s193 + $0xec] sm:$0xf]
      %v271 = vld [vmem:[%s193 + $0xf0] sm:$0xf]
      %v272 = vld [vmem:[%s193 + $0xf4] sm:$0xf]
      %v273 = vld [vmem:[%s193 + $0xf8] sm:$0xf]
      %v274 = vld [vmem:[%s193 + $0xfc] sm:$0xf]
      %v283 = vunpack.c.l.b16 %v203
      %v284 = vunpack.c.h.b16 %v203
      %v285 = vunpack.c.l.b16 %v204
      %v286 = vunpack.c.h.b16 %v204
      %v287 = vunpack.c.l.b16 %v205
      %v288 = vunpack.c.h.b16 %v205
      %v289 = vunpack.c.l.b16 %v206
      %v290 = vunpack.c.h.b16 %v206
      %v291 = vunpack.c.l.b16 %v207
      %v292 = vunpack.c.h.b16 %v207
      %v293 = vunpack.c.l.b16 %v208
      %v294 = vunpack.c.h.b16 %v208
      %v295 = vunpack.c.l.b16 %v209
      %v296 = vunpack.c.h.b16 %v209
      %v297 = vunpack.c.l.b16 %v210
      %v298 = vunpack.c.h.b16 %v210
      %v299 = vpack.c.b16 %v287, %v283
      %v300 = vpack.c.b16 %v288, %v284
      %v301 = vpack.c.b16 %v289, %v285
      %v302 = vpack.c.b16 %v290, %v286
      %v303 = vpack.c.b16 %v295, %v291
      %v304 = vpack.c.b16 %v296, %v292
      %v305 = vpack.c.b16 %v297, %v293
      %v306 = vpack.c.b16 %v298, %v294
      %v379 = vunpack.c.l.b16 %v211
      %v380 = vunpack.c.l.b16 %v212
      %v381 = vunpack.c.l.b16 %v213
      %v382 = vunpack.c.l.b16 %v214
      %v383 = vunpack.c.l.b16 %v215
      %v384 = vunpack.c.l.b16 %v216
      %v385 = vunpack.c.l.b16 %v217
      %v386 = vunpack.c.l.b16 %v218
      %v387 = vunpack.c.l.b16 %v219
      %v388 = vunpack.c.l.b16 %v220
      %v389 = vunpack.c.l.b16 %v221
      %v390 = vunpack.c.l.b16 %v222
      %v391 = vunpack.c.l.b16 %v223
      %v392 = vunpack.c.l.b16 %v224
      %v393 = vunpack.c.l.b16 %v225
      %v394 = vunpack.c.l.b16 %v226
      %v395 = vunpack.c.l.b16 %v227
      %v396 = vunpack.c.l.b16 %v228
      %v397 = vunpack.c.l.b16 %v229
      %v398 = vunpack.c.l.b16 %v230
      %v399 = vunpack.c.l.b16 %v231
      %v400 = vunpack.c.l.b16 %v232
      %v401 = vunpack.c.l.b16 %v233
      %v402 = vunpack.c.l.b16 %v234
      %v403 = vunpack.c.l.b16 %v235
      %v404 = vunpack.c.l.b16 %v236
      %v405 = vunpack.c.l.b16 %v237
      %v406 = vunpack.c.l.b16 %v238
      %v407 = vunpack.c.l.b16 %v239
      %v408 = vunpack.c.l.b16 %v240
      %v409 = vunpack.c.l.b16 %v241
      %v410 = vunpack.c.l.b16 %v242
      %v411 = vunpack.c.l.b16 %v243
      %v412 = vunpack.c.l.b16 %v244
      %v413 = vunpack.c.l.b16 %v245
      %v414 = vunpack.c.l.b16 %v246
      %v415 = vunpack.c.l.b16 %v247
      %v416 = vunpack.c.l.b16 %v248
      %v417 = vunpack.c.l.b16 %v249
      %v418 = vunpack.c.l.b16 %v250
      %v419 = vunpack.c.l.b16 %v251
      %v420 = vunpack.c.l.b16 %v252
      %v421 = vunpack.c.l.b16 %v253
      %v422 = vunpack.c.l.b16 %v254
      %v423 = vunpack.c.l.b16 %v255
      %v424 = vunpack.c.l.b16 %v256
      %v425 = vunpack.c.l.b16 %v257
      %v426 = vunpack.c.l.b16 %v258
      %v427 = vunpack.c.l.b16 %v259
      %v428 = vunpack.c.l.b16 %v260
      %v429 = vunpack.c.l.b16 %v261
      %v430 = vunpack.c.l.b16 %v262
      %v431 = vunpack.c.l.b16 %v263
      %v432 = vunpack.c.l.b16 %v264
      %v433 = vunpack.c.l.b16 %v265
      %v434 = vunpack.c.l.b16 %v266
      %v435 = vunpack.c.l.b16 %v267
      %v436 = vunpack.c.l.b16 %v268
      %v437 = vunpack.c.l.b16 %v269
      %v438 = vunpack.c.l.b16 %v270
      %v439 = vunpack.c.l.b16 %v271
      %v440 = vunpack.c.l.b16 %v272
      %v441 = vunpack.c.l.b16 %v273
      %v442 = vunpack.c.l.b16 %v274
      %v443 = vpack.c.b16 %v380, %v379
      %v444 = vpack.c.b16 %v382, %v381
      %v445 = vpack.c.b16 %v384, %v383
      %v446 = vpack.c.b16 %v386, %v385
      %v447 = vpack.c.b16 %v388, %v387
      %v448 = vpack.c.b16 %v390, %v389
      %v449 = vpack.c.b16 %v392, %v391
      %v450 = vpack.c.b16 %v394, %v393
      %v451 = vpack.c.b16 %v396, %v395
      %v452 = vpack.c.b16 %v398, %v397
      %v453 = vpack.c.b16 %v400, %v399
      %v454 = vpack.c.b16 %v402, %v401
      %v455 = vpack.c.b16 %v404, %v403
      %v456 = vpack.c.b16 %v406, %v405
      %v457 = vpack.c.b16 %v408, %v407
      %v458 = vpack.c.b16 %v410, %v409
      %v459 = vpack.c.b16 %v412, %v411
      %v460 = vpack.c.b16 %v414, %v413
      %v461 = vpack.c.b16 %v416, %v415
      %v462 = vpack.c.b16 %v418, %v417
      %v463 = vpack.c.b16 %v420, %v419
      %v464 = vpack.c.b16 %v422, %v421
      %v465 = vpack.c.b16 %v424, %v423
      %v466 = vpack.c.b16 %v426, %v425
      %v467 = vpack.c.b16 %v428, %v427
      %v468 = vpack.c.b16 %v430, %v429
      %v469 = vpack.c.b16 %v432, %v431
      %v470 = vpack.c.b16 %v434, %v433
      %v471 = vpack.c.b16 %v436, %v435
      %v472 = vpack.c.b16 %v438, %v437
      %v473 = vpack.c.b16 %v440, %v439
      %v474 = vpack.c.b16 %v442, %v441
      %507 = vmatprep.subr.bf16.mxu0 0
      %508 = vmatpush1.bf16.msra.mxu0 %v443
      %509 = vmatprep.subr.bf16.mxu0 0
      %510 = vmatpush1.bf16.msra.mxu0 %v444
      %511 = vmatprep.subr.bf16.mxu0 0
      %512 = vmatpush1.bf16.msra.mxu0 %v445
      %513 = vmatprep.subr.bf16.mxu0 0
      %514 = vmatpush1.bf16.msra.mxu0 %v446
      %515 = vmatprep.subr.bf16.mxu0 0
      %516 = vmatpush1.bf16.msra.mxu0 %v447
      %517 = vmatprep.subr.bf16.mxu0 0
      %518 = vmatpush1.bf16.msra.mxu0 %v448
      %519 = vmatprep.subr.bf16.mxu0 0
      %520 = vmatpush1.bf16.msra.mxu0 %v449
      %521 = vmatprep.subr.bf16.mxu0 0
      %522 = vmatpush1.bf16.msra.mxu0 %v450
      %523 = vmatprep.subr.bf16.mxu0 0
      %524 = vmatpush1.bf16.msra.mxu0 %v451
      %525 = vmatprep.subr.bf16.mxu0 0
      %526 = vmatpush1.bf16.msra.mxu0 %v452
      %527 = vmatprep.subr.bf16.mxu0 0
      %528 = vmatpush1.bf16.msra.mxu0 %v453
      %529 = vmatprep.subr.bf16.mxu0 0
      %530 = vmatpush1.bf16.msra.mxu0 %v454
      %531 = vmatprep.subr.bf16.mxu0 0
      %532 = vmatpush1.bf16.msra.mxu0 %v455
      %533 = vmatprep.subr.bf16.mxu0 0
      %534 = vmatpush1.bf16.msra.mxu0 %v456
      %535 = vmatprep.subr.bf16.mxu0 0
      %536 = vmatpush1.bf16.msra.mxu0 %v457
      %537 = vmatprep.subr.bf16.mxu0 0
      %538 = vmatpush1.bf16.msra.mxu0 %v458
      %539 = vmatprep.mubr.bf16.mxu0 %v300
      %540 = vmatmul.mubr.bf16.gmra.mrb[0].mxu0 %v299
      %v541 = vpop.f32.mrb[0].mxu0
      %v542 = vadd.f32 0.0, %v541
      %v543 = vpop.f32.mrb[0].mxu0
      %v544 = vpop.f32.mrb[0].mxu0
      %v545 = vadd.f32 0.0, %v544
      %v546 = vpop.f32.mrb[0].mxu0
      %547 = vmatprep.mubr.bf16.mxu0 %v304
      %548 = vmatmul.mubr.bf16.gmra.mrb[0].mxu0 %v303
      %v549 = vpop.f32.mrb[0].mxu0
      %v550 = vadd.f32 0.0, %v549
      %v551 = vpop.f32.mrb[0].mxu0
      %v552 = vpop.f32.mrb[0].mxu0
      %v553 = vadd.f32 0.0, %v552
      %v554 = vpop.f32.mrb[0].mxu0
      %555 = vdwg.mxu0
      %556 = vmatprep.subr.bf16.mxu0 0
      %557 = vmatpush1.bf16.msra.mxu0 %v459
      %558 = vmatprep.subr.bf16.mxu0 0
      %559 = vmatpush1.bf16.msra.mxu0 %v460
      %560 = vmatprep.subr.bf16.mxu0 0
      %561 = vmatpush1.bf16.msra.mxu0 %v461
      %562 = vmatprep.subr.bf16.mxu0 0
      %563 = vmatpush1.bf16.msra.mxu0 %v462
      %564 = vmatprep.subr.bf16.mxu0 0
      %565 = vmatpush1.bf16.msra.mxu0 %v463
      %566 = vmatprep.subr.bf16.mxu0 0
      %567 = vmatpush1.bf16.msra.mxu0 %v464
      %568 = vmatprep.subr.bf16.mxu0 0
      %569 = vmatpush1.bf16.msra.mxu0 %v465
      %570 = vmatprep.subr.bf16.mxu0 0
      %571 = vmatpush1.bf16.msra.mxu0 %v466
      %572 = vmatprep.subr.bf16.mxu0 0
      %573 = vmatpush1.bf16.msra.mxu0 %v467
      %574 = vmatprep.subr.bf16.mxu0 0
      %575 = vmatpush1.bf16.msra.mxu0 %v468
      %576 = vmatprep.subr.bf16.mxu0 0
      %577 = vmatpush1.bf16.msra.mxu0 %v469
      %578 = vmatprep.subr.bf16.mxu0 0
      %579 = vmatpush1.bf16.msra.mxu0 %v470
      %580 = vmatprep.subr.bf16.mxu0 0
      %581 = vmatpush1.bf16.msra.mxu0 %v471
      %582 = vmatprep.subr.bf16.mxu0 0
      %583 = vmatpush1.bf16.msra.mxu0 %v472
      %584 = vmatprep.subr.bf16.mxu0 0
      %585 = vmatpush1.bf16.msra.mxu0 %v473
      %586 = vmatprep.subr.bf16.mxu0 0
      %587 = vmatpush1.bf16.msra.mxu0 %v474
      %588 = vmatprep.mubr.bf16.mxu0 %v302
      %589 = vmatmul.mubr.bf16.gmra.mrb[0].mxu0 %v301
      %v590 = vpop.f32.mrb[0].mxu0
      %v591 = vadd.f32 %v542, %v590
      %v592 = vpop.f32.mrb[0].mxu0
      %v593 = vpop.f32.mrb[0].mxu0
      %v594 = vadd.f32 %v545, %v593
      %v595 = vpop.f32.mrb[0].mxu0
      %596 = vmatprep.mubr.bf16.mxu0 %v306
      %597 = vmatmul.mubr.bf16.gmra.mrb[0].mxu0 %v305
      %v598 = vpop.f32.mrb[0].mxu0
      %v599 = vadd.f32 %v550, %v598
      %v600 = vpop.f32.mrb[0].mxu0
      %v601 = vpop.f32.mrb[0].mxu0
      %v602 = vadd.f32 %v553, %v601
      %v603 = vpop.f32.mrb[0].mxu0
      %604 = vdwg.mxu0
      %s605 = scalar_lea.vmem %s193, 256
      %v606 = vld [vmem:[%s605] sm:$0xf]
      %v607 = vld [vmem:[%s605 + $0x4] sm:$0xf]
      %v608 = vld [vmem:[%s605 + $0x8] sm:$0xf]
      %v609 = vld [vmem:[%s605 + $0xc] sm:$0xf]
      %v610 = vld [vmem:[%s605 + $0x10] sm:$0xf]
      %v611 = vld [vmem:[%s605 + $0x14] sm:$0xf]
      %v612 = vld [vmem:[%s605 + $0x18] sm:$0xf]
      %v613 = vld [vmem:[%s605 + $0x1c] sm:$0xf]
      %v614 = vld [vmem:[%s605 + $0x20] sm:$0xf]
      %v615 = vld [vmem:[%s605 + $0x24] sm:$0xf]
      %v616 = vld [vmem:[%s605 + $0x28] sm:$0xf]
      %v617 = vld [vmem:[%s605 + $0x2c] sm:$0xf]
      %v618 = vld [vmem:[%s605 + $0x30] sm:$0xf]
      %v619 = vld [vmem:[%s605 + $0x34] sm:$0xf]
      %v620 = vld [vmem:[%s605 + $0x38] sm:$0xf]
      %v621 = vld [vmem:[%s605 + $0x3c] sm:$0xf]
      %v622 = vld [vmem:[%s605 + $0x40] sm:$0xf]
      %v623 = vld [vmem:[%s605 + $0x44] sm:$0xf]
      %v624 = vld [vmem:[%s605 + $0x48] sm:$0xf]
      %v625 = vld [vmem:[%s605 + $0x4c] sm:$0xf]
      %v626 = vld [vmem:[%s605 + $0x50] sm:$0xf]
      %v627 = vld [vmem:[%s605 + $0x54] sm:$0xf]
      %v628 = vld [vmem:[%s605 + $0x58] sm:$0xf]
      %v629 = vld [vmem:[%s605 + $0x5c] sm:$0xf]
      %v630 = vld [vmem:[%s605 + $0x60] sm:$0xf]
      %v631 = vld [vmem:[%s605 + $0x64] sm:$0xf]
      %v632 = vld [vmem:[%s605 + $0x68] sm:$0xf]
      %v633 = vld [vmem:[%s605 + $0x6c] sm:$0xf]
      %v634 = vld [vmem:[%s605 + $0x70] sm:$0xf]
      %v635 = vld [vmem:[%s605 + $0x74] sm:$0xf]
      %v636 = vld [vmem:[%s605 + $0x78] sm:$0xf]
      %v637 = vld [vmem:[%s605 + $0x7c] sm:$0xf]
      %v638 = vld [vmem:[%s605 + $0x80] sm:$0xf]
      %v639 = vld [vmem:[%s605 + $0x84] sm:$0xf]
      %v640 = vld [vmem:[%s605 + $0x88] sm:$0xf]
      %v641 = vld [vmem:[%s605 + $0x8c] sm:$0xf]
      %v642 = vld [vmem:[%s605 + $0x90] sm:$0xf]
      %v643 = vld [vmem:[%s605 + $0x94] sm:$0xf]
      %v644 = vld [vmem:[%s605 + $0x98] sm:$0xf]
      %v645 = vld [vmem:[%s605 + $0x9c] sm:$0xf]
      %v646 = vld [vmem:[%s605 + $0xa0] sm:$0xf]
      %v647 = vld [vmem:[%s605 + $0xa4] sm:$0xf]
      %v648 = vld [vmem:[%s605 + $0xa8] sm:$0xf]
      %v649 = vld [vmem:[%s605 + $0xac] sm:$0xf]
      %v650 = vld [vmem:[%s605 + $0xb0] sm:$0xf]
      %v651 = vld [vmem:[%s605 + $0xb4] sm:$0xf]
      %v652 = vld [vmem:[%s605 + $0xb8] sm:$0xf]
      %v653 = vld [vmem:[%s605 + $0xbc] sm:$0xf]
      %v654 = vld [vmem:[%s605 + $0xc0] sm:$0xf]
      %v655 = vld [vmem:[%s605 + $0xc4] sm:$0xf]
      %v656 = vld [vmem:[%s605 + $0xc8] sm:$0xf]
      %v657 = vld [vmem:[%s605 + $0xcc] sm:$0xf]
      %v658 = vld [vmem:[%s605 + $0xd0] sm:$0xf]
      %v659 = vld [vmem:[%s605 + $0xd4] sm:$0xf]
      %v660 = vld [vmem:[%s605 + $0xd8] sm:$0xf]
      %v661 = vld [vmem:[%s605 + $0xdc] sm:$0xf]
      %v662 = vld [vmem:[%s605 + $0xe0] sm:$0xf]
      %v663 = vld [vmem:[%s605 + $0xe4] sm:$0xf]
      %v664 = vld [vmem:[%s605 + $0xe8] sm:$0xf]
      %v665 = vld [vmem:[%s605 + $0xec] sm:$0xf]
      %v666 = vld [vmem:[%s605 + $0xf0] sm:$0xf]
      %v667 = vld [vmem:[%s605 + $0xf4] sm:$0xf]
      %v668 = vld [vmem:[%s605 + $0xf8] sm:$0xf]
      %v669 = vld [vmem:[%s605 + $0xfc] sm:$0xf]
      %v734 = vunpack.c.l.b16 %v606
      %v735 = vunpack.c.l.b16 %v607
      %v736 = vunpack.c.l.b16 %v608
      %v737 = vunpack.c.l.b16 %v609
      %v738 = vunpack.c.l.b16 %v610
      %v739 = vunpack.c.l.b16 %v611
      %v740 = vunpack.c.l.b16 %v612
      %v741 = vunpack.c.l.b16 %v613
      %v742 = vunpack.c.l.b16 %v614
      %v743 = vunpack.c.l.b16 %v615
      %v744 = vunpack.c.l.b16 %v616
      %v745 = vunpack.c.l.b16 %v617
      %v746 = vunpack.c.l.b16 %v618
      %v747 = vunpack.c.l.b16 %v619
      %v748 = vunpack.c.l.b16 %v620
      %v749 = vunpack.c.l.b16 %v621
      %v750 = vunpack.c.l.b16 %v622
      %v751 = vunpack.c.l.b16 %v623
      %v752 = vunpack.c.l.b16 %v624
      %v753 = vunpack.c.l.b16 %v625
      %v754 = vunpack.c.l.b16 %v626
      %v755 = vunpack.c.l.b16 %v627
      %v756 = vunpack.c.l.b16 %v628
      %v757 = vunpack.c.l.b16 %v629
      %v758 = vunpack.c.l.b16 %v630
      %v759 = vunpack.c.l.b16 %v631
      %v760 = vunpack.c.l.b16 %v632
      %v761 = vunpack.c.l.b16 %v633
      %v762 = vunpack.c.l.b16 %v634
      %v763 = vunpack.c.l.b16 %v635
      %v764 = vunpack.c.l.b16 %v636
      %v765 = vunpack.c.l.b16 %v637
      %v766 = vunpack.c.l.b16 %v638
      %v767 = vunpack.c.l.b16 %v639
      %v768 = vunpack.c.l.b16 %v640
      %v769 = vunpack.c.l.b16 %v641
      %v770 = vunpack.c.l.b16 %v642
      %v771 = vunpack.c.l.b16 %v643
      %v772 = vunpack.c.l.b16 %v644
      %v773 = vunpack.c.l.b16 %v645
      %v774 = vunpack.c.l.b16 %v646
      %v775 = vunpack.c.l.b16 %v647
      %v776 = vunpack.c.l.b16 %v648
      %v777 = vunpack.c.l.b16 %v649
      %v778 = vunpack.c.l.b16 %v650
      %v779 = vunpack.c.l.b16 %v651
      %v780 = vunpack.c.l.b16 %v652
      %v781 = vunpack.c.l.b16 %v653
      %v782 = vunpack.c.l.b16 %v654
      %v783 = vunpack.c.l.b16 %v655
      %v784 = vunpack.c.l.b16 %v656
      %v785 = vunpack.c.l.b16 %v657
      %v786 = vunpack.c.l.b16 %v658
      %v787 = vunpack.c.l.b16 %v659
      %v788 = vunpack.c.l.b16 %v660
      %v789 = vunpack.c.l.b16 %v661
      %v790 = vunpack.c.l.b16 %v662
      %v791 = vunpack.c.l.b16 %v663
      %v792 = vunpack.c.l.b16 %v664
      %v793 = vunpack.c.l.b16 %v665
      %v794 = vunpack.c.l.b16 %v666
      %v795 = vunpack.c.l.b16 %v667
      %v796 = vunpack.c.l.b16 %v668
      %v797 = vunpack.c.l.b16 %v669
      %v798 = vpack.c.b16 %v735, %v734
      %v799 = vpack.c.b16 %v737, %v736
      %v800 = vpack.c.b16 %v739, %v738
      %v801 = vpack.c.b16 %v741, %v740
      %v802 = vpack.c.b16 %v743, %v742
      %v803 = vpack.c.b16 %v745, %v744
      %v804 = vpack.c.b16 %v747, %v746
      %v805 = vpack.c.b16 %v749, %v748
      %v806 = vpack.c.b16 %v751, %v750
      %v807 = vpack.c.b16 %v753, %v752
      %v808 = vpack.c.b16 %v755, %v754
      %v809 = vpack.c.b16 %v757, %v756
      %v810 = vpack.c.b16 %v759, %v758
      %v811 = vpack.c.b16 %v761, %v760
      %v812 = vpack.c.b16 %v763, %v762
      %v813 = vpack.c.b16 %v765, %v764
      %v814 = vpack.c.b16 %v767, %v766
      %v815 = vpack.c.b16 %v769, %v768
      %v816 = vpack.c.b16 %v771, %v770
      %v817 = vpack.c.b16 %v773, %v772
      %v818 = vpack.c.b16 %v775, %v774
      %v819 = vpack.c.b16 %v777, %v776
      %v820 = vpack.c.b16 %v779, %v778
      %v821 = vpack.c.b16 %v781, %v780
      %v822 = vpack.c.b16 %v783, %v782
      %v823 = vpack.c.b16 %v785, %v784
      %v824 = vpack.c.b16 %v787, %v786
      %v825 = vpack.c.b16 %v789, %v788
      %v826 = vpack.c.b16 %v791, %v790
      %v827 = vpack.c.b16 %v793, %v792
      %v828 = vpack.c.b16 %v795, %v794
      %v829 = vpack.c.b16 %v797, %v796
      %862 = vmatprep.subr.bf16.mxu0 0
      %863 = vmatpush1.bf16.msra.mxu0 %v798
      %864 = vmatprep.subr.bf16.mxu0 0
      %865 = vmatpush1.bf16.msra.mxu0 %v799
      %866 = vmatprep.subr.bf16.mxu0 0
      %867 = vmatpush1.bf16.msra.mxu0 %v800
      %868 = vmatprep.subr.bf16.mxu0 0
      %869 = vmatpush1.bf16.msra.mxu0 %v801
      %870 = vmatprep.subr.bf16.mxu0 0
      %871 = vmatpush1.bf16.msra.mxu0 %v802
      %872 = vmatprep.subr.bf16.mxu0 0
      %873 = vmatpush1.bf16.msra.mxu0 %v803
      %874 = vmatprep.subr.bf16.mxu0 0
      %875 = vmatpush1.bf16.msra.mxu0 %v804
      %876 = vmatprep.subr.bf16.mxu0 0
      %877 = vmatpush1.bf16.msra.mxu0 %v805
      %878 = vmatprep.subr.bf16.mxu0 0
      %879 = vmatpush1.bf16.msra.mxu0 %v806
      %880 = vmatprep.subr.bf16.mxu0 0
      %881 = vmatpush1.bf16.msra.mxu0 %v807
      %882 = vmatprep.subr.bf16.mxu0 0
      %883 = vmatpush1.bf16.msra.mxu0 %v808
      %884 = vmatprep.subr.bf16.mxu0 0
      %885 = vmatpush1.bf16.msra.mxu0 %v809
      %886 = vmatprep.subr.bf16.mxu0 0
      %887 = vmatpush1.bf16.msra.mxu0 %v810
      %888 = vmatprep.subr.bf16.mxu0 0
      %889 = vmatpush1.bf16.msra.mxu0 %v811
      %890 = vmatprep.subr.bf16.mxu0 0
      %891 = vmatpush1.bf16.msra.mxu0 %v812
      %892 = vmatprep.subr.bf16.mxu0 0
      %893 = vmatpush1.bf16.msra.mxu0 %v813
      %894 = vmatprep.mubr.bf16.mxu0 %v300
      %895 = vmatmul.mubr.bf16.gmra.mrb[0].mxu0 %v299
      %v896 = vpop.f32.mrb[0].mxu0
      %v897 = vadd.f32 0.0, %v896
      %v898 = vpop.f32.mrb[0].mxu0
      %v899 = vpop.f32.mrb[0].mxu0
      %v900 = vadd.f32 0.0, %v899
      %v901 = vpop.f32.mrb[0].mxu0
      %902 = vmatprep.mubr.bf16.mxu0 %v304
      %903 = vmatmul.mubr.bf16.gmra.mrb[0].mxu0 %v303
      %v904 = vpop.f32.mrb[0].mxu0
      %v905 = vadd.f32 0.0, %v904
      %v906 = vpop.f32.mrb[0].mxu0
      %v907 = vpop.f32.mrb[0].mxu0
      %v908 = vadd.f32 0.0, %v907
      %v909 = vpop.f32.mrb[0].mxu0
      %910 = vdwg.mxu0
      %911 = vmatprep.subr.bf16.mxu0 0
      %912 = vmatpush1.bf16.msra.mxu0 %v814
      %913 = vmatprep.subr.bf16.mxu0 0
      %914 = vmatpush1.bf16.msra.mxu0 %v815
      %915 = vmatprep.subr.bf16.mxu0 0
      %916 = vmatpush1.bf16.msra.mxu0 %v816
      %917 = vmatprep.subr.bf16.mxu0 0
      %918 = vmatpush1.bf16.msra.mxu0 %v817
      %919 = vmatprep.subr.bf16.mxu0 0
      %920 = vmatpush1.bf16.msra.mxu0 %v818
      %921 = vmatprep.subr.bf16.mxu0 0
      %922 = vmatpush1.bf16.msra.mxu0 %v819
      %923 = vmatprep.subr.bf16.mxu0 0
      %924 = vmatpush1.bf16.msra.mxu0 %v820
      %925 = vmatprep.subr.bf16.mxu0 0
      %926 = vmatpush1.bf16.msra.mxu0 %v821
      %927 = vmatprep.subr.bf16.mxu0 0
      %928 = vmatpush1.bf16.msra.mxu0 %v822
      %929 = vmatprep.subr.bf16.mxu0 0
      %930 = vmatpush1.bf16.msra.mxu0 %v823
      %931 = vmatprep.subr.bf16.mxu0 0
      %932 = vmatpush1.bf16.msra.mxu0 %v824
      %933 = vmatprep.subr.bf16.mxu0 0
      %934 = vmatpush1.bf16.msra.mxu0 %v825
      %935 = vmatprep.subr.bf16.mxu0 0
      %936 = vmatpush1.bf16.msra.mxu0 %v826
      %937 = vmatprep.subr.bf16.mxu0 0
      %938 = vmatpush1.bf16.msra.mxu0 %v827
      %939 = vmatprep.subr.bf16.mxu0 0
      %940 = vmatpush1.bf16.msra.mxu0 %v828
      %941 = vmatprep.subr.bf16.mxu0 0
      %942 = vmatpush1.bf16.msra.mxu0 %v829
      %943 = vmatprep.mubr.bf16.mxu0 %v302
      %944 = vmatmul.mubr.bf16.gmra.mrb[0].mxu0 %v301
      %v945 = vpop.f32.mrb[0].mxu0
      %v946 = vadd.f32 %v897, %v945
      %v947 = vpop.f32.mrb[0].mxu0
      %v948 = vpop.f32.mrb[0].mxu0
      %v949 = vadd.f32 %v900, %v948
      %v950 = vpop.f32.mrb[0].mxu0
      %951 = vmatprep.mubr.bf16.mxu0 %v306
      %952 = vmatmul.mubr.bf16.gmra.mrb[0].mxu0 %v305
      %v953 = vpop.f32.mrb[0].mxu0
      %v954 = vadd.f32 %v905, %v953
      %v955 = vpop.f32.mrb[0].mxu0
      %v956 = vpop.f32.mrb[0].mxu0
      %v957 = vadd.f32 %v908, %v956
      %v958 = vpop.f32.mrb[0].mxu0
      %959 = vdwg.mxu0
      %v960 = vmax.f32 %v591, %v946
      %v961 = vmax.f32 %v594, %v949
      %v962 = vmax.f32 %v599, %v954
      %v963 = vmax.f32 %v602, %v957
      %s964 = scalar_lea.vmem %s193, 512
      %v965 = vld [vmem:[%s964] sm:$0xf]
      %v966 = vld [vmem:[%s964 + $0x4] sm:$0xf]
      %v967 = vld [vmem:[%s964 + $0x8] sm:$0xf]
      %v968 = vld [vmem:[%s964 + $0xc] sm:$0xf]
      %v969 = vld [vmem:[%s964 + $0x10] sm:$0xf]
      %v970 = vld [vmem:[%s964 + $0x14] sm:$0xf]
      %v971 = vld [vmem:[%s964 + $0x18] sm:$0xf]
      %v972 = vld [vmem:[%s964 + $0x1c] sm:$0xf]
      %v973 = vld [vmem:[%s964 + $0x20] sm:$0xf]
      %v974 = vld [vmem:[%s964 + $0x24] sm:$0xf]
      %v975 = vld [vmem:[%s964 + $0x28] sm:$0xf]
      %v976 = vld [vmem:[%s964 + $0x2c] sm:$0xf]
      %v977 = vld [vmem:[%s964 + $0x30] sm:$0xf]
      %v978 = vld [vmem:[%s964 + $0x34] sm:$0xf]
      %v979 = vld [vmem:[%s964 + $0x38] sm:$0xf]
      %v980 = vld [vmem:[%s964 + $0x3c] sm:$0xf]
      %v981 = vld [vmem:[%s964 + $0x40] sm:$0xf]
      %v982 = vld [vmem:[%s964 + $0x44] sm:$0xf]
      %v983 = vld [vmem:[%s964 + $0x48] sm:$0xf]
      %v984 = vld [vmem:[%s964 + $0x4c] sm:$0xf]
      %v985 = vld [vmem:[%s964 + $0x50] sm:$0xf]
      %v986 = vld [vmem:[%s964 + $0x54] sm:$0xf]
      %v987 = vld [vmem:[%s964 + $0x58] sm:$0xf]
      %v988 = vld [vmem:[%s964 + $0x5c] sm:$0xf]
      %v989 = vld [vmem:[%s964 + $0x60] sm:$0xf]
      %v990 = vld [vmem:[%s964 + $0x64] sm:$0xf]
      %v991 = vld [vmem:[%s964 + $0x68] sm:$0xf]
      %v992 = vld [vmem:[%s964 + $0x6c] sm:$0xf]
      %v993 = vld [vmem:[%s964 + $0x70] sm:$0xf]
      %v994 = vld [vmem:[%s964 + $0x74] sm:$0xf]
      %v995 = vld [vmem:[%s964 + $0x78] sm:$0xf]
      %v996 = vld [vmem:[%s964 + $0x7c] sm:$0xf]
      %v997 = vld [vmem:[%s964 + $0x80] sm:$0xf]
      %v998 = vld [vmem:[%s964 + $0x84] sm:$0xf]
      %v999 = vld [vmem:[%s964 + $0x88] sm:$0xf]
      %v1000 = vld [vmem:[%s964 + $0x8c] sm:$0xf]
      %v1001 = vld [vmem:[%s964 + $0x90] sm:$0xf]
      %v1002 = vld [vmem:[%s964 + $0x94] sm:$0xf]
      %v1003 = vld [vmem:[%s964 + $0x98] sm:$0xf]
      %v1004 = vld [vmem:[%s964 + $0x9c] sm:$0xf]
      %v1005 = vld [vmem:[%s964 + $0xa0] sm:$0xf]
      %v1006 = vld [vmem:[%s964 + $0xa4] sm:$0xf]
      %v1007 = vld [vmem:[%s964 + $0xa8] sm:$0xf]
      %v1008 = vld [vmem:[%s964 + $0xac] sm:$0xf]
      %v1009 = vld [vmem:[%s964 + $0xb0] sm:$0xf]
      %v1010 = vld [vmem:[%s964 + $0xb4] sm:$0xf]
      %v1011 = vld [vmem:[%s964 + $0xb8] sm:$0xf]
      %v1012 = vld [vmem:[%s964 + $0xbc] sm:$0xf]
      %v1013 = vld [vmem:[%s964 + $0xc0] sm:$0xf]
      %v1014 = vld [vmem:[%s964 + $0xc4] sm:$0xf]
      %v1015 = vld [vmem:[%s964 + $0xc8] sm:$0xf]
      %v1016 = vld [vmem:[%s964 + $0xcc] sm:$0xf]
      %v1017 = vld [vmem:[%s964 + $0xd0] sm:$0xf]
      %v1018 = vld [vmem:[%s964 + $0xd4] sm:$0xf]
      %v1019 = vld [vmem:[%s964 + $0xd8] sm:$0xf]
      %v1020 = vld [vmem:[%s964 + $0xdc] sm:$0xf]
      %v1021 = vld [vmem:[%s964 + $0xe0] sm:$0xf]
      %v1022 = vld [vmem:[%s964 + $0xe4] sm:$0xf]
      %v1023 = vld [vmem:[%s964 + $0xe8] sm:$0xf]
      %v1024 = vld [vmem:[%s964 + $0xec] sm:$0xf]
      %v1025 = vld [vmem:[%s964 + $0xf0] sm:$0xf]
      %v1026 = vld [vmem:[%s964 + $0xf4] sm:$0xf]
      %v1027 = vld [vmem:[%s964 + $0xf8] sm:$0xf]
      %v1028 = vld [vmem:[%s964 + $0xfc] sm:$0xf]
      %v1093 = vunpack.c.l.b16 %v965
      %v1094 = vunpack.c.l.b16 %v966
      %v1095 = vunpack.c.l.b16 %v967
      %v1096 = vunpack.c.l.b16 %v968
      %v1097 = vunpack.c.l.b16 %v969
      %v1098 = vunpack.c.l.b16 %v970
      %v1099 = vunpack.c.l.b16 %v971
      %v1100 = vunpack.c.l.b16 %v972
      %v1101 = vunpack.c.l.b16 %v973
      %v1102 = vunpack.c.l.b16 %v974
      %v1103 = vunpack.c.l.b16 %v975
      %v1104 = vunpack.c.l.b16 %v976
      %v1105 = vunpack.c.l.b16 %v977
      %v1106 = vunpack.c.l.b16 %v978
      %v1107 = vunpack.c.l.b16 %v979
      %v1108 = vunpack.c.l.b16 %v980
      %v1109 = vunpack.c.l.b16 %v981
      %v1110 = vunpack.c.l.b16 %v982
      %v1111 = vunpack.c.l.b16 %v983
      %v1112 = vunpack.c.l.b16 %v984
      %v1113 = vunpack.c.l.b16 %v985
      %v1114 = vunpack.c.l.b16 %v986
      %v1115 = vunpack.c.l.b16 %v987
      %v1116 = vunpack.c.l.b16 %v988
      %v1117 = vunpack.c.l.b16 %v989
      %v1118 = vunpack.c.l.b16 %v990
      %v1119 = vunpack.c.l.b16 %v991
      %v1120 = vunpack.c.l.b16 %v992
      %v1121 = vunpack.c.l.b16 %v993
      %v1122 = vunpack.c.l.b16 %v994
      %v1123 = vunpack.c.l.b16 %v995
      %v1124 = vunpack.c.l.b16 %v996
      %v1125 = vunpack.c.l.b16 %v997
      %v1126 = vunpack.c.l.b16 %v998
      %v1127 = vunpack.c.l.b16 %v999
      %v1128 = vunpack.c.l.b16 %v1000
      %v1129 = vunpack.c.l.b16 %v1001
      %v1130 = vunpack.c.l.b16 %v1002
      %v1131 = vunpack.c.l.b16 %v1003
      %v1132 = vunpack.c.l.b16 %v1004
      %v1133 = vunpack.c.l.b16 %v1005
      %v1134 = vunpack.c.l.b16 %v1006
      %v1135 = vunpack.c.l.b16 %v1007
      %v1136 = vunpack.c.l.b16 %v1008
      %v1137 = vunpack.c.l.b16 %v1009
      %v1138 = vunpack.c.l.b16 %v1010
      %v1139 = vunpack.c.l.b16 %v1011
      %v1140 = vunpack.c.l.b16 %v1012
      %v1141 = vunpack.c.l.b16 %v1013
      %v1142 = vunpack.c.l.b16 %v1014
      %v1143 = vunpack.c.l.b16 %v1015
      %v1144 = vunpack.c.l.b16 %v1016
      %v1145 = vunpack.c.l.b16 %v1017
      %v1146 = vunpack.c.l.b16 %v1018
      %v1147 = vunpack.c.l.b16 %v1019
      %v1148 = vunpack.c.l.b16 %v1020
      %v1149 = vunpack.c.l.b16 %v1021
      %v1150 = vunpack.c.l.b16 %v1022
      %v1151 = vunpack.c.l.b16 %v1023
      %v1152 = vunpack.c.l.b16 %v1024
      %v1153 = vunpack.c.l.b16 %v1025
      %v1154 = vunpack.c.l.b16 %v1026
      %v1155 = vunpack.c.l.b16 %v1027
      %v1156 = vunpack.c.l.b16 %v1028
      %v1157 = vpack.c.b16 %v1094, %v1093
      %v1158 = vpack.c.b16 %v1096, %v1095
      %v1159 = vpack.c.b16 %v1098, %v1097
      %v1160 = vpack.c.b16 %v1100, %v1099
      %v1161 = vpack.c.b16 %v1102, %v1101
      %v1162 = vpack.c.b16 %v1104, %v1103
      %v1163 = vpack.c.b16 %v1106, %v1105
      %v1164 = vpack.c.b16 %v1108, %v1107
      %v1165 = vpack.c.b16 %v1110, %v1109
      %v1166 = vpack.c.b16 %v1112, %v1111
      %v1167 = vpack.c.b16 %v1114, %v1113
      %v1168 = vpack.c.b16 %v1116, %v1115
      %v1169 = vpack.c.b16 %v1118, %v1117
      %v1170 = vpack.c.b16 %v1120, %v1119
      %v1171 = vpack.c.b16 %v1122, %v1121
      %v1172 = vpack.c.b16 %v1124, %v1123
      %v1173 = vpack.c.b16 %v1126, %v1125
      %v1174 = vpack.c.b16 %v1128, %v1127
      %v1175 = vpack.c.b16 %v1130, %v1129
      %v1176 = vpack.c.b16 %v1132, %v1131
      %v1177 = vpack.c.b16 %v1134, %v1133
      %v1178 = vpack.c.b16 %v1136, %v1135
      %v1179 = vpack.c.b16 %v1138, %v1137
      %v1180 = vpack.c.b16 %v1140, %v1139
      %v1181 = vpack.c.b16 %v1142, %v1141
      %v1182 = vpack.c.b16 %v1144, %v1143
      %v1183 = vpack.c.b16 %v1146, %v1145
      %v1184 = vpack.c.b16 %v1148, %v1147
      %v1185 = vpack.c.b16 %v1150, %v1149
      %v1186 = vpack.c.b16 %v1152, %v1151
      %v1187 = vpack.c.b16 %v1154, %v1153
      %v1188 = vpack.c.b16 %v1156, %v1155
      %1221 = vmatprep.subr.bf16.mxu0 0
      %1222 = vmatpush1.bf16.msra.mxu0 %v1157
      %1223 = vmatprep.subr.bf16.mxu0 0
      %1224 = vmatpush1.bf16.msra.mxu0 %v1158
      %1225 = vmatprep.subr.bf16.mxu0 0
      %1226 = vmatpush1.bf16.msra.mxu0 %v1159
      %1227 = vmatprep.subr.bf16.mxu0 0
      %1228 = vmatpush1.bf16.msra.mxu0 %v1160
      %1229 = vmatprep.subr.bf16.mxu0 0
      %1230 = vmatpush1.bf16.msra.mxu0 %v1161
      %1231 = vmatprep.subr.bf16.mxu0 0
      %1232 = vmatpush1.bf16.msra.mxu0 %v1162
      %1233 = vmatprep.subr.bf16.mxu0 0
      %1234 = vmatpush1.bf16.msra.mxu0 %v1163
      %1235 = vmatprep.subr.bf16.mxu0 0
      %1236 = vmatpush1.bf16.msra.mxu0 %v1164
      %1237 = vmatprep.subr.bf16.mxu0 0
      %1238 = vmatpush1.bf16.msra.mxu0 %v1165
      %1239 = vmatprep.subr.bf16.mxu0 0
      %1240 = vmatpush1.bf16.msra.mxu0 %v1166
      %1241 = vmatprep.subr.bf16.mxu0 0
      %1242 = vmatpush1.bf16.msra.mxu0 %v1167
      %1243 = vmatprep.subr.bf16.mxu0 0
      %1244 = vmatpush1.bf16.msra.mxu0 %v1168
      %1245 = vmatprep.subr.bf16.mxu0 0
      %1246 = vmatpush1.bf16.msra.mxu0 %v1169
      %1247 = vmatprep.subr.bf16.mxu0 0
      %1248 = vmatpush1.bf16.msra.mxu0 %v1170
      %1249 = vmatprep.subr.bf16.mxu0 0
      %1250 = vmatpush1.bf16.msra.mxu0 %v1171
      %1251 = vmatprep.subr.bf16.mxu0 0
      %1252 = vmatpush1.bf16.msra.mxu0 %v1172
      %1253 = vmatprep.mubr.bf16.mxu0 %v300
      %1254 = vmatmul.mubr.bf16.gmra.mrb[0].mxu0 %v299
      %v1255 = vpop.f32.mrb[0].mxu0
      %v1256 = vadd.f32 0.0, %v1255
      %v1257 = vpop.f32.mrb[0].mxu0
      %v1258 = vpop.f32.mrb[0].mxu0
      %v1259 = vadd.f32 0.0, %v1258
      %v1260 = vpop.f32.mrb[0].mxu0
      %1261 = vmatprep.mubr.bf16.mxu0 %v304
      %1262 = vmatmul.mubr.bf16.gmra.mrb[0].mxu0 %v303
      %v1263 = vpop.f32.mrb[0].mxu0
      %v1264 = vadd.f32 0.0, %v1263
      %v1265 = vpop.f32.mrb[0].mxu0
      %v1266 = vpop.f32.mrb[0].mxu0
      %v1267 = vadd.f32 0.0, %v1266
      %v1268 = vpop.f32.mrb[0].mxu0
      %1269 = vdwg.mxu0
      %1270 = vmatprep.subr.bf16.mxu0 0
      %1271 = vmatpush1.bf16.msra.mxu0 %v1173
      %1272 = vmatprep.subr.bf16.mxu0 0
      %1273 = vmatpush1.bf16.msra.mxu0 %v1174
      %1274 = vmatprep.subr.bf16.mxu0 0
      %1275 = vmatpush1.bf16.msra.mxu0 %v1175
      %1276 = vmatprep.subr.bf16.mxu0 0
      %1277 = vmatpush1.bf16.msra.mxu0 %v1176
      %1278 = vmatprep.subr.bf16.mxu0 0
      %1279 = vmatpush1.bf16.msra.mxu0 %v1177
      %1280 = vmatprep.subr.bf16.mxu0 0
      %1281 = vmatpush1.bf16.msra.mxu0 %v1178
      %1282 = vmatprep.subr.bf16.mxu0 0
      %1283 = vmatpush1.bf16.msra.mxu0 %v1179
      %1284 = vmatprep.subr.bf16.mxu0 0
      %1285 = vmatpush1.bf16.msra.mxu0 %v1180
      %1286 = vmatprep.subr.bf16.mxu0 0
      %1287 = vmatpush1.bf16.msra.mxu0 %v1181
      %1288 = vmatprep.subr.bf16.mxu0 0
      %1289 = vmatpush1.bf16.msra.mxu0 %v1182
      %1290 = vmatprep.subr.bf16.mxu0 0
      %1291 = vmatpush1.bf16.msra.mxu0 %v1183
      %1292 = vmatprep.subr.bf16.mxu0 0
      %1293 = vmatpush1.bf16.msra.mxu0 %v1184
      %1294 = vmatprep.subr.bf16.mxu0 0
      %1295 = vmatpush1.bf16.msra.mxu0 %v1185
      %1296 = vmatprep.subr.bf16.mxu0 0
      %1297 = vmatpush1.bf16.msra.mxu0 %v1186
      %1298 = vmatprep.subr.bf16.mxu0 0
      %1299 = vmatpush1.bf16.msra.mxu0 %v1187
      %1300 = vmatprep.subr.bf16.mxu0 0
      %1301 = vmatpush1.bf16.msra.mxu0 %v1188
      %1302 = vmatprep.mubr.bf16.mxu0 %v302
      %1303 = vmatmul.mubr.bf16.gmra.mrb[0].mxu0 %v301
      %v1304 = vpop.f32.mrb[0].mxu0
      %v1305 = vadd.f32 %v1256, %v1304
      %v1306 = vpop.f32.mrb[0].mxu0
      %v1307 = vpop.f32.mrb[0].mxu0
      %v1308 = vadd.f32 %v1259, %v1307
      %v1309 = vpop.f32.mrb[0].mxu0
      %1310 = vmatprep.mubr.bf16.mxu0 %v306
      %1311 = vmatmul.mubr.bf16.gmra.mrb[0].mxu0 %v305
      %v1312 = vpop.f32.mrb[0].mxu0
      %v1313 = vadd.f32 %v1264, %v1312
      %v1314 = vpop.f32.mrb[0].mxu0
      %v1315 = vpop.f32.mrb[0].mxu0
      %v1316 = vadd.f32 %v1267, %v1315
      %v1317 = vpop.f32.mrb[0].mxu0
      %1318 = vdwg.mxu0
      %v1319 = vmax.f32 %v960, %v1305
      %v1320 = vmax.f32 %v961, %v1308
      %v1321 = vmax.f32 %v962, %v1313
      %v1322 = vmax.f32 %v963, %v1316
      %s1323 = scalar_lea.vmem %s193, 768
      %v1324 = vld [vmem:[%s1323] sm:$0xf]
      %v1325 = vld [vmem:[%s1323 + $0x4] sm:$0xf]
      %v1326 = vld [vmem:[%s1323 + $0x8] sm:$0xf]
      %v1327 = vld [vmem:[%s1323 + $0xc] sm:$0xf]
      %v1328 = vld [vmem:[%s1323 + $0x10] sm:$0xf]
      %v1329 = vld [vmem:[%s1323 + $0x14] sm:$0xf]
      %v1330 = vld [vmem:[%s1323 + $0x18] sm:$0xf]
      %v1331 = vld [vmem:[%s1323 + $0x1c] sm:$0xf]
      %v1332 = vld [vmem:[%s1323 + $0x20] sm:$0xf]
      %v1333 = vld [vmem:[%s1323 + $0x24] sm:$0xf]
      %v1334 = vld [vmem:[%s1323 + $0x28] sm:$0xf]
      %v1335 = vld [vmem:[%s1323 + $0x2c] sm:$0xf]
      %v1336 = vld [vmem:[%s1323 + $0x30] sm:$0xf]
      %v1337 = vld [vmem:[%s1323 + $0x34] sm:$0xf]
      %v1338 = vld [vmem:[%s1323 + $0x38] sm:$0xf]
      %v1339 = vld [vmem:[%s1323 + $0x3c] sm:$0xf]
      %v1340 = vld [vmem:[%s1323 + $0x40] sm:$0xf]
      %v1341 = vld [vmem:[%s1323 + $0x44] sm:$0xf]
      %v1342 = vld [vmem:[%s1323 + $0x48] sm:$0xf]
      %v1343 = vld [vmem:[%s1323 + $0x4c] sm:$0xf]
      %v1344 = vld [vmem:[%s1323 + $0x50] sm:$0xf]
      %v1345 = vld [vmem:[%s1323 + $0x54] sm:$0xf]
      %v1346 = vld [vmem:[%s1323 + $0x58] sm:$0xf]
      %v1347 = vld [vmem:[%s1323 + $0x5c] sm:$0xf]
      %v1348 = vld [vmem:[%s1323 + $0x60] sm:$0xf]
      %v1349 = vld [vmem:[%s1323 + $0x64] sm:$0xf]
      %v1350 = vld [vmem:[%s1323 + $0x68] sm:$0xf]
      %v1351 = vld [vmem:[%s1323 + $0x6c] sm:$0xf]
      %v1352 = vld [vmem:[%s1323 + $0x70] sm:$0xf]
      %v1353 = vld [vmem:[%s1323 + $0x74] sm:$0xf]
      %v1354 = vld [vmem:[%s1323 + $0x78] sm:$0xf]
      %v1355 = vld [vmem:[%s1323 + $0x7c] sm:$0xf]
      %v1356 = vld [vmem:[%s1323 + $0x80] sm:$0xf]
      %v1357 = vld [vmem:[%s1323 + $0x84] sm:$0xf]
      %v1358 = vld [vmem:[%s1323 + $0x88] sm:$0xf]
      %v1359 = vld [vmem:[%s1323 + $0x8c] sm:$0xf]
      %v1360 = vld [vmem:[%s1323 + $0x90] sm:$0xf]
      %v1361 = vld [vmem:[%s1323 + $0x94] sm:$0xf]
      %v1362 = vld [vmem:[%s1323 + $0x98] sm:$0xf]
      %v1363 = vld [vmem:[%s1323 + $0x9c] sm:$0xf]
      %v1364 = vld [vmem:[%s1323 + $0xa0] sm:$0xf]
      %v1365 = vld [vmem:[%s1323 + $0xa4] sm:$0xf]
      %v1366 = vld [vmem:[%s1323 + $0xa8] sm:$0xf]
      %v1367 = vld [vmem:[%s1323 + $0xac] sm:$0xf]
      %v1368 = vld [vmem:[%s1323 + $0xb0] sm:$0xf]
      %v1369 = vld [vmem:[%s1323 + $0xb4] sm:$0xf]
      %v1370 = vld [vmem:[%s1323 + $0xb8] sm:$0xf]
      %v1371 = vld [vmem:[%s1323 + $0xbc] sm:$0xf]
      %v1372 = vld [vmem:[%s1323 + $0xc0] sm:$0xf]
      %v1373 = vld [vmem:[%s1323 + $0xc4] sm:$0xf]
      %v1374 = vld [vmem:[%s1323 + $0xc8] sm:$0xf]
      %v1375 = vld [vmem:[%s1323 + $0xcc] sm:$0xf]
      %v1376 = vld [vmem:[%s1323 + $0xd0] sm:$0xf]
      %v1377 = vld [vmem:[%s1323 + $0xd4] sm:$0xf]
      %v1378 = vld [vmem:[%s1323 + $0xd8] sm:$0xf]
      %v1379 = vld [vmem:[%s1323 + $0xdc] sm:$0xf]
      %v1380 = vld [vmem:[%s1323 + $0xe0] sm:$0xf]
      %v1381 = vld [vmem:[%s1323 + $0xe4] sm:$0xf]
      %v1382 = vld [vmem:[%s1323 + $0xe8] sm:$0xf]
      %v1383 = vld [vmem:[%s1323 + $0xec] sm:$0xf]
      %v1384 = vld [vmem:[%s1323 + $0xf0] sm:$0xf]
      %v1385 = vld [vmem:[%s1323 + $0xf4] sm:$0xf]
      %v1386 = vld [vmem:[%s1323 + $0xf8] sm:$0xf]
      %v1387 = vld [vmem:[%s1323 + $0xfc] sm:$0xf]
      %v1452 = vunpack.c.l.b16 %v1324
      %v1453 = vunpack.c.l.b16 %v1325
      %v1454 = vunpack.c.l.b16 %v1326
      %v1455 = vunpack.c.l.b16 %v1327
      %v1456 = vunpack.c.l.b16 %v1328
      %v1457 = vunpack.c.l.b16 %v1329
      %v1458 = vunpack.c.l.b16 %v1330
      %v1459 = vunpack.c.l.b16 %v1331
      %v1460 = vunpack.c.l.b16 %v1332
      %v1461 = vunpack.c.l.b16 %v1333
      %v1462 = vunpack.c.l.b16 %v1334
      %v1463 = vunpack.c.l.b16 %v1335
      %v1464 = vunpack.c.l.b16 %v1336
      %v1465 = vunpack.c.l.b16 %v1337
      %v1466 = vunpack.c.l.b16 %v1338
      %v1467 = vunpack.c.l.b16 %v1339
      %v1468 = vunpack.c.l.b16 %v1340
      %v1469 = vunpack.c.l.b16 %v1341
      %v1470 = vunpack.c.l.b16 %v1342
      %v1471 = vunpack.c.l.b16 %v1343
      %v1472 = vunpack.c.l.b16 %v1344
      %v1473 = vunpack.c.l.b16 %v1345
      %v1474 = vunpack.c.l.b16 %v1346
      %v1475 = vunpack.c.l.b16 %v1347
      %v1476 = vunpack.c.l.b16 %v1348
      %v1477 = vunpack.c.l.b16 %v1349
      %v1478 = vunpack.c.l.b16 %v1350
      %v1479 = vunpack.c.l.b16 %v1351
      %v1480 = vunpack.c.l.b16 %v1352
      %v1481 = vunpack.c.l.b16 %v1353
      %v1482 = vunpack.c.l.b16 %v1354
      %v1483 = vunpack.c.l.b16 %v1355
      %v1484 = vunpack.c.l.b16 %v1356
      %v1485 = vunpack.c.l.b16 %v1357
      %v1486 = vunpack.c.l.b16 %v1358
      %v1487 = vunpack.c.l.b16 %v1359
      %v1488 = vunpack.c.l.b16 %v1360
      %v1489 = vunpack.c.l.b16 %v1361
      %v1490 = vunpack.c.l.b16 %v1362
      %v1491 = vunpack.c.l.b16 %v1363
      %v1492 = vunpack.c.l.b16 %v1364
      %v1493 = vunpack.c.l.b16 %v1365
      %v1494 = vunpack.c.l.b16 %v1366
      %v1495 = vunpack.c.l.b16 %v1367
      %v1496 = vunpack.c.l.b16 %v1368
      %v1497 = vunpack.c.l.b16 %v1369
      %v1498 = vunpack.c.l.b16 %v1370
      %v1499 = vunpack.c.l.b16 %v1371
      %v1500 = vunpack.c.l.b16 %v1372
      %v1501 = vunpack.c.l.b16 %v1373
      %v1502 = vunpack.c.l.b16 %v1374
      %v1503 = vunpack.c.l.b16 %v1375
      %v1504 = vunpack.c.l.b16 %v1376
      %v1505 = vunpack.c.l.b16 %v1377
      %v1506 = vunpack.c.l.b16 %v1378
      %v1507 = vunpack.c.l.b16 %v1379
      %v1508 = vunpack.c.l.b16 %v1380
      %v1509 = vunpack.c.l.b16 %v1381
      %v1510 = vunpack.c.l.b16 %v1382
      %v1511 = vunpack.c.l.b16 %v1383
      %v1512 = vunpack.c.l.b16 %v1384
      %v1513 = vunpack.c.l.b16 %v1385
      %v1514 = vunpack.c.l.b16 %v1386
      %v1515 = vunpack.c.l.b16 %v1387
      %v1516 = vpack.c.b16 %v1453, %v1452
      %v1517 = vpack.c.b16 %v1455, %v1454
      %v1518 = vpack.c.b16 %v1457, %v1456
      %v1519 = vpack.c.b16 %v1459, %v1458
      %v1520 = vpack.c.b16 %v1461, %v1460
      %v1521 = vpack.c.b16 %v1463, %v1462
      %v1522 = vpack.c.b16 %v1465, %v1464
      %v1523 = vpack.c.b16 %v1467, %v1466
      %v1524 = vpack.c.b16 %v1469, %v1468
      %v1525 = vpack.c.b16 %v1471, %v1470
      %v1526 = vpack.c.b16 %v1473, %v1472
      %v1527 = vpack.c.b16 %v1475, %v1474
      %v1528 = vpack.c.b16 %v1477, %v1476
      %v1529 = vpack.c.b16 %v1479, %v1478
      %v1530 = vpack.c.b16 %v1481, %v1480
      %v1531 = vpack.c.b16 %v1483, %v1482
      %v1532 = vpack.c.b16 %v1485, %v1484
      %v1533 = vpack.c.b16 %v1487, %v1486
      %v1534 = vpack.c.b16 %v1489, %v1488
      %v1535 = vpack.c.b16 %v1491, %v1490
      %v1536 = vpack.c.b16 %v1493, %v1492
      %v1537 = vpack.c.b16 %v1495, %v1494
      %v1538 = vpack.c.b16 %v1497, %v1496
      %v1539 = vpack.c.b16 %v1499, %v1498
      %v1540 = vpack.c.b16 %v1501, %v1500
      %v1541 = vpack.c.b16 %v1503, %v1502
      %v1542 = vpack.c.b16 %v1505, %v1504
      %v1543 = vpack.c.b16 %v1507, %v1506
      %v1544 = vpack.c.b16 %v1509, %v1508
      %v1545 = vpack.c.b16 %v1511, %v1510
      %v1546 = vpack.c.b16 %v1513, %v1512
      %v1547 = vpack.c.b16 %v1515, %v1514
      %1580 = vmatprep.subr.bf16.mxu0 0
      %1581 = vmatpush1.bf16.msra.mxu0 %v1516
      %1582 = vmatprep.subr.bf16.mxu0 0
      %1583 = vmatpush1.bf16.msra.mxu0 %v1517
      %1584 = vmatprep.subr.bf16.mxu0 0
      %1585 = vmatpush1.bf16.msra.mxu0 %v1518
      %1586 = vmatprep.subr.bf16.mxu0 0
      %1587 = vmatpush1.bf16.msra.mxu0 %v1519
      %1588 = vmatprep.subr.bf16.mxu0 0
      %1589 = vmatpush1.bf16.msra.mxu0 %v1520
      %1590 = vmatprep.subr.bf16.mxu0 0
      %1591 = vmatpush1.bf16.msra.mxu0 %v1521
      %1592 = vmatprep.subr.bf16.mxu0 0
      %1593 = vmatpush1.bf16.msra.mxu0 %v1522
      %1594 = vmatprep.subr.bf16.mxu0 0
      %1595 = vmatpush1.bf16.msra.mxu0 %v1523
      %1596 = vmatprep.subr.bf16.mxu0 0
      %1597 = vmatpush1.bf16.msra.mxu0 %v1524
      %1598 = vmatprep.subr.bf16.mxu0 0
      %1599 = vmatpush1.bf16.msra.mxu0 %v1525
      %1600 = vmatprep.subr.bf16.mxu0 0
      %1601 = vmatpush1.bf16.msra.mxu0 %v1526
      %1602 = vmatprep.subr.bf16.mxu0 0
      %1603 = vmatpush1.bf16.msra.mxu0 %v1527
      %1604 = vmatprep.subr.bf16.mxu0 0
      %1605 = vmatpush1.bf16.msra.mxu0 %v1528
      %1606 = vmatprep.subr.bf16.mxu0 0
      %1607 = vmatpush1.bf16.msra.mxu0 %v1529
      %1608 = vmatprep.subr.bf16.mxu0 0
      %1609 = vmatpush1.bf16.msra.mxu0 %v1530
      %1610 = vmatprep.subr.bf16.mxu0 0
      %1611 = vmatpush1.bf16.msra.mxu0 %v1531
      %1612 = vmatprep.mubr.bf16.mxu0 %v300
      %1613 = vmatmul.mubr.bf16.gmra.mrb[0].mxu0 %v299
      %v1614 = vpop.f32.mrb[0].mxu0
      %v1615 = vadd.f32 0.0, %v1614
      %v1616 = vpop.f32.mrb[0].mxu0
      %v1617 = vpop.f32.mrb[0].mxu0
      %v1618 = vadd.f32 0.0, %v1617
      %v1619 = vpop.f32.mrb[0].mxu0
      %1620 = vmatprep.mubr.bf16.mxu0 %v304
      %1621 = vmatmul.mubr.bf16.gmra.mrb[0].mxu0 %v303
      %v1622 = vpop.f32.mrb[0].mxu0
      %v1623 = vadd.f32 0.0, %v1622
      %v1624 = vpop.f32.mrb[0].mxu0
      %v1625 = vpop.f32.mrb[0].mxu0
      %v1626 = vadd.f32 0.0, %v1625
      %v1627 = vpop.f32.mrb[0].mxu0
      %1628 = vdwg.mxu0
      %1629 = vmatprep.subr.bf16.mxu0 0
      %1630 = vmatpush1.bf16.msra.mxu0 %v1532
      %1631 = vmatprep.subr.bf16.mxu0 0
      %1632 = vmatpush1.bf16.msra.mxu0 %v1533
      %1633 = vmatprep.subr.bf16.mxu0 0
      %1634 = vmatpush1.bf16.msra.mxu0 %v1534
      %1635 = vmatprep.subr.bf16.mxu0 0
      %1636 = vmatpush1.bf16.msra.mxu0 %v1535
      %1637 = vmatprep.subr.bf16.mxu0 0
      %1638 = vmatpush1.bf16.msra.mxu0 %v1536
      %1639 = vmatprep.subr.bf16.mxu0 0
      %1640 = vmatpush1.bf16.msra.mxu0 %v1537
      %1641 = vmatprep.subr.bf16.mxu0 0
      %1642 = vmatpush1.bf16.msra.mxu0 %v1538
      %1643 = vmatprep.subr.bf16.mxu0 0
      %1644 = vmatpush1.bf16.msra.mxu0 %v1539
      %1645 = vmatprep.subr.bf16.mxu0 0
      %1646 = vmatpush1.bf16.msra.mxu0 %v1540
      %1647 = vmatprep.subr.bf16.mxu0 0
      %1648 = vmatpush1.bf16.msra.mxu0 %v1541
      %1649 = vmatprep.subr.bf16.mxu0 0
      %1650 = vmatpush1.bf16.msra.mxu0 %v1542
      %1651 = vmatprep.subr.bf16.mxu0 0
      %1652 = vmatpush1.bf16.msra.mxu0 %v1543
      %1653 = vmatprep.subr.bf16.mxu0 0
      %1654 = vmatpush1.bf16.msra.mxu0 %v1544
      %1655 = vmatprep.subr.bf16.mxu0 0
      %1656 = vmatpush1.bf16.msra.mxu0 %v1545
      %1657 = vmatprep.subr.bf16.mxu0 0
      %1658 = vmatpush1.bf16.msra.mxu0 %v1546
      %1659 = vmatprep.subr.bf16.mxu0 0
      %1660 = vmatpush1.bf16.msra.mxu0 %v1547
      %1661 = vmatprep.mubr.bf16.mxu0 %v302
      %1662 = vmatmul.mubr.bf16.gmra.mrb[0].mxu0 %v301
      %v1663 = vpop.f32.mrb[0].mxu0
      %v1664 = vadd.f32 %v1615, %v1663
      %v1665 = vpop.f32.mrb[0].mxu0
      %v1666 = vpop.f32.mrb[0].mxu0
      %v1667 = vadd.f32 %v1618, %v1666
      %v1668 = vpop.f32.mrb[0].mxu0
      %1669 = vmatprep.mubr.bf16.mxu0 %v306
      %1670 = vmatmul.mubr.bf16.gmra.mrb[0].mxu0 %v305
      %v1671 = vpop.f32.mrb[0].mxu0
      %v1672 = vadd.f32 %v1623, %v1671
      %v1673 = vpop.f32.mrb[0].mxu0
      %v1674 = vpop.f32.mrb[0].mxu0
      %v1675 = vadd.f32 %v1626, %v1674
      %v1676 = vpop.f32.mrb[0].mxu0
      %1677 = vdwg.mxu0
      %v1678 = vmax.f32 %v1319, %v1664
      %v1679 = vmax.f32 %v1320, %v1667
      %v1680 = vmax.f32 %v1321, %v1672
      %v1681 = vmax.f32 %v1322, %v1675
      %s1682 = scalar_lea.vmem %s193, 1024
      %v1683 = vld [vmem:[%s1682] sm:$0xf]
      %v1684 = vld [vmem:[%s1682 + $0x4] sm:$0xf]
      %v1685 = vld [vmem:[%s1682 + $0x8] sm:$0xf]
      %v1686 = vld [vmem:[%s1682 + $0xc] sm:$0xf]
      %v1687 = vld [vmem:[%s1682 + $0x10] sm:$0xf]
      %v1688 = vld [vmem:[%s1682 + $0x14] sm:$0xf]
      %v1689 = vld [vmem:[%s1682 + $0x18] sm:$0xf]
      %v1690 = vld [vmem:[%s1682 + $0x1c] sm:$0xf]
      %v1691 = vld [vmem:[%s1682 + $0x20] sm:$0xf]
      %v1692 = vld [vmem:[%s1682 + $0x24] sm:$0xf]
      %v1693 = vld [vmem:[%s1682 + $0x28] sm:$0xf]
      %v1694 = vld [vmem:[%s1682 + $0x2c] sm:$0xf]
      %v1695 = vld [vmem:[%s1682 + $0x30] sm:$0xf]
      %v1696 = vld [vmem:[%s1682 + $0x34] sm:$0xf]
      %v1697 = vld [vmem:[%s1682 + $0x38] sm:$0xf]
      %v1698 = vld [vmem:[%s1682 + $0x3c] sm:$0xf]
      %v1699 = vld [vmem:[%s1682 + $0x40] sm:$0xf]
      %v1700 = vld [vmem:[%s1682 + $0x44] sm:$0xf]
      %v1701 = vld [vmem:[%s1682 + $0x48] sm:$0xf]
      %v1702 = vld [vmem:[%s1682 + $0x4c] sm:$0xf]
      %v1703 = vld [vmem:[%s1682 + $0x50] sm:$0xf]
      %v1704 = vld [vmem:[%s1682 + $0x54] sm:$0xf]
      %v1705 = vld [vmem:[%s1682 + $0x58] sm:$0xf]
      %v1706 = vld [vmem:[%s1682 + $0x5c] sm:$0xf]
      %v1707 = vld [vmem:[%s1682 + $0x60] sm:$0xf]
      %v1708 = vld [vmem:[%s1682 + $0x64] sm:$0xf]
      %v1709 = vld [vmem:[%s1682 + $0x68] sm:$0xf]
      %v1710 = vld [vmem:[%s1682 + $0x6c] sm:$0xf]
      %v1711 = vld [vmem:[%s1682 + $0x70] sm:$0xf]
      %v1712 = vld [vmem:[%s1682 + $0x74] sm:$0xf]
      %v1713 = vld [vmem:[%s1682 + $0x78] sm:$0xf]
      %v1714 = vld [vmem:[%s1682 + $0x7c] sm:$0xf]
      %v1715 = vld [vmem:[%s1682 + $0x80] sm:$0xf]
      %v1716 = vld [vmem:[%s1682 + $0x84] sm:$0xf]
      %v1717 = vld [vmem:[%s1682 + $0x88] sm:$0xf]
      %v1718 = vld [vmem:[%s1682 + $0x8c] sm:$0xf]
      %v1719 = vld [vmem:[%s1682 + $0x90] sm:$0xf]
      %v1720 = vld [vmem:[%s1682 + $0x94] sm:$0xf]
      %v1721 = vld [vmem:[%s1682 + $0x98] sm:$0xf]
      %v1722 = vld [vmem:[%s1682 + $0x9c] sm:$0xf]
      %v1723 = vld [vmem:[%s1682 + $0xa0] sm:$0xf]
      %v1724 = vld [vmem:[%s1682 + $0xa4] sm:$0xf]
      %v1725 = vld [vmem:[%s1682 + $0xa8] sm:$0xf]
      %v1726 = vld [vmem:[%s1682 + $0xac] sm:$0xf]
      %v1727 = vld [vmem:[%s1682 + $0xb0] sm:$0xf]
      %v1728 = vld [vmem:[%s1682 + $0xb4] sm:$0xf]
      %v1729 = vld [vmem:[%s1682 + $0xb8] sm:$0xf]
      %v1730 = vld [vmem:[%s1682 + $0xbc] sm:$0xf]
      %v1731 = vld [vmem:[%s1682 + $0xc0] sm:$0xf]
      %v1732 = vld [vmem:[%s1682 + $0xc4] sm:$0xf]
      %v1733 = vld [vmem:[%s1682 + $0xc8] sm:$0xf]
      %v1734 = vld [vmem:[%s1682 + $0xcc] sm:$0xf]
      %v1735 = vld [vmem:[%s1682 + $0xd0] sm:$0xf]
      %v1736 = vld [vmem:[%s1682 + $0xd4] sm:$0xf]
      %v1737 = vld [vmem:[%s1682 + $0xd8] sm:$0xf]
      %v1738 = vld [vmem:[%s1682 + $0xdc] sm:$0xf]
      %v1739 = vld [vmem:[%s1682 + $0xe0] sm:$0xf]
      %v1740 = vld [vmem:[%s1682 + $0xe4] sm:$0xf]
      %v1741 = vld [vmem:[%s1682 + $0xe8] sm:$0xf]
      %v1742 = vld [vmem:[%s1682 + $0xec] sm:$0xf]
      %v1743 = vld [vmem:[%s1682 + $0xf0] sm:$0xf]
      %v1744 = vld [vmem:[%s1682 + $0xf4] sm:$0xf]
      %v1745 = vld [vmem:[%s1682 + $0xf8] sm:$0xf]
      %v1746 = vld [vmem:[%s1682 + $0xfc] sm:$0xf]
      %v1811 = vunpack.c.l.b16 %v1683
      %v1812 = vunpack.c.l.b16 %v1684
      %v1813 = vunpack.c.l.b16 %v1685
      %v1814 = vunpack.c.l.b16 %v1686
      %v1815 = vunpack.c.l.b16 %v1687
      %v1816 = vunpack.c.l.b16 %v1688
      %v1817 = vunpack.c.l.b16 %v1689
      %v1818 = vunpack.c.l.b16 %v1690
      %v1819 = vunpack.c.l.b16 %v1691
      %v1820 = vunpack.c.l.b16 %v1692
      %v1821 = vunpack.c.l.b16 %v1693
      %v1822 = vunpack.c.l.b16 %v1694
      %v1823 = vunpack.c.l.b16 %v1695
      %v1824 = vunpack.c.l.b16 %v1696
      %v1825 = vunpack.c.l.b16 %v1697
      %v1826 = vunpack.c.l.b16 %v1698
      %v1827 = vunpack.c.l.b16 %v1699
      %v1828 = vunpack.c.l.b16 %v1700
      %v1829 = vunpack.c.l.b16 %v1701
      %v1830 = vunpack.c.l.b16 %v1702
      %v1831 = vunpack.c.l.b16 %v1703
      %v1832 = vunpack.c.l.b16 %v1704
      %v1833 = vunpack.c.l.b16 %v1705
      %v1834 = vunpack.c.l.b16 %v1706
      %v1835 = vunpack.c.l.b16 %v1707
      %v1836 = vunpack.c.l.b16 %v1708
      %v1837 = vunpack.c.l.b16 %v1709
      %v1838 = vunpack.c.l.b16 %v1710
      %v1839 = vunpack.c.l.b16 %v1711
      %v1840 = vunpack.c.l.b16 %v1712
      %v1841 = vunpack.c.l.b16 %v1713
      %v1842 = vunpack.c.l.b16 %v1714
      %v1843 = vunpack.c.l.b16 %v1715
      %v1844 = vunpack.c.l.b16 %v1716
      %v1845 = vunpack.c.l.b16 %v1717
      %v1846 = vunpack.c.l.b16 %v1718
      %v1847 = vunpack.c.l.b16 %v1719
      %v1848 = vunpack.c.l.b16 %v1720
      %v1849 = vunpack.c.l.b16 %v1721
      %v1850 = vunpack.c.l.b16 %v1722
      %v1851 = vunpack.c.l.b16 %v1723
      %v1852 = vunpack.c.l.b16 %v1724
      %v1853 = vunpack.c.l.b16 %v1725
      %v1854 = vunpack.c.l.b16 %v1726
      %v1855 = vunpack.c.l.b16 %v1727
      %v1856 = vunpack.c.l.b16 %v1728
      %v1857 = vunpack.c.l.b16 %v1729
      %v1858 = vunpack.c.l.b16 %v1730
      %v1859 = vunpack.c.l.b16 %v1731
      %v1860 = vunpack.c.l.b16 %v1732
      %v1861 = vunpack.c.l.b16 %v1733
      %v1862 = vunpack.c.l.b16 %v1734
      %v1863 = vunpack.c.l.b16 %v1735
      %v1864 = vunpack.c.l.b16 %v1736
      %v1865 = vunpack.c.l.b16 %v1737
      %v1866 = vunpack.c.l.b16 %v1738
      %v1867 = vunpack.c.l.b16 %v1739
      %v1868 = vunpack.c.l.b16 %v1740
      %v1869 = vunpack.c.l.b16 %v1741
      %v1870 = vunpack.c.l.b16 %v1742
      %v1871 = vunpack.c.l.b16 %v1743
      %v1872 = vunpack.c.l.b16 %v1744
      %v1873 = vunpack.c.l.b16 %v1745
      %v1874 = vunpack.c.l.b16 %v1746
      %v1875 = vpack.c.b16 %v1812, %v1811
      %v1876 = vpack.c.b16 %v1814, %v1813
      %v1877 = vpack.c.b16 %v1816, %v1815
      %v1878 = vpack.c.b16 %v1818, %v1817
      %v1879 = vpack.c.b16 %v1820, %v1819
      %v1880 = vpack.c.b16 %v1822, %v1821
      %v1881 = vpack.c.b16 %v1824, %v1823
      %v1882 = vpack.c.b16 %v1826, %v1825
      %v1883 = vpack.c.b16 %v1828, %v1827
      %v1884 = vpack.c.b16 %v1830, %v1829
      %v1885 = vpack.c.b16 %v1832, %v1831
      %v1886 = vpack.c.b16 %v1834, %v1833
      %v1887 = vpack.c.b16 %v1836, %v1835
      %v1888 = vpack.c.b16 %v1838, %v1837
      %v1889 = vpack.c.b16 %v1840, %v1839
      %v1890 = vpack.c.b16 %v1842, %v1841
      %v1891 = vpack.c.b16 %v1844, %v1843
      %v1892 = vpack.c.b16 %v1846, %v1845
      %v1893 = vpack.c.b16 %v1848, %v1847
      %v1894 = vpack.c.b16 %v1850, %v1849
      %v1895 = vpack.c.b16 %v1852, %v1851
      %v1896 = vpack.c.b16 %v1854, %v1853
      %v1897 = vpack.c.b16 %v1856, %v1855
      %v1898 = vpack.c.b16 %v1858, %v1857
      %v1899 = vpack.c.b16 %v1860, %v1859
      %v1900 = vpack.c.b16 %v1862, %v1861
      %v1901 = vpack.c.b16 %v1864, %v1863
      %v1902 = vpack.c.b16 %v1866, %v1865
      %v1903 = vpack.c.b16 %v1868, %v1867
      %v1904 = vpack.c.b16 %v1870, %v1869
      %v1905 = vpack.c.b16 %v1872, %v1871
      %v1906 = vpack.c.b16 %v1874, %v1873
      %1939 = vmatprep.subr.bf16.mxu0 0
      %1940 = vmatpush1.bf16.msra.mxu0 %v1875
      %1941 = vmatprep.subr.bf16.mxu0 0
      %1942 = vmatpush1.bf16.msra.mxu0 %v1876
      %1943 = vmatprep.subr.bf16.mxu0 0
      %1944 = vmatpush1.bf16.msra.mxu0 %v1877
      %1945 = vmatprep.subr.bf16.mxu0 0
      %1946 = vmatpush1.bf16.msra.mxu0 %v1878
      %1947 = vmatprep.subr.bf16.mxu0 0
      %1948 = vmatpush1.bf16.msra.mxu0 %v1879
      %1949 = vmatprep.subr.bf16.mxu0 0
      %1950 = vmatpush1.bf16.msra.mxu0 %v1880
      %1951 = vmatprep.subr.bf16.mxu0 0
      %1952 = vmatpush1.bf16.msra.mxu0 %v1881
      %1953 = vmatprep.subr.bf16.mxu0 0
      %1954 = vmatpush1.bf16.msra.mxu0 %v1882
      %1955 = vmatprep.subr.bf16.mxu0 0
      %1956 = vmatpush1.bf16.msra.mxu0 %v1883
      %1957 = vmatprep.subr.bf16.mxu0 0
      %1958 = vmatpush1.bf16.msra.mxu0 %v1884
      %1959 = vmatprep.subr.bf16.mxu0 0
      %1960 = vmatpush1.bf16.msra.mxu0 %v1885
      %1961 = vmatprep.subr.bf16.mxu0 0
      %1962 = vmatpush1.bf16.msra.mxu0 %v1886
      %1963 = vmatprep.subr.bf16.mxu0 0
      %1964 = vmatpush1.bf16.msra.mxu0 %v1887
      %1965 = vmatprep.subr.bf16.mxu0 0
      %1966 = vmatpush1.bf16.msra.mxu0 %v1888
      %1967 = vmatprep.subr.bf16.mxu0 0
      %1968 = vmatpush1.bf16.msra.mxu0 %v1889
      %1969 = vmatprep.subr.bf16.mxu0 0
      %1970 = vmatpush1.bf16.msra.mxu0 %v1890
      %1971 = vmatprep.mubr.bf16.mxu0 %v300
      %1972 = vmatmul.mubr.bf16.gmra.mrb[0].mxu0 %v299
      %v1973 = vpop.f32.mrb[0].mxu0
      %v1974 = vadd.f32 0.0, %v1973
      %v1975 = vpop.f32.mrb[0].mxu0
      %v1976 = vpop.f32.mrb[0].mxu0
      %v1977 = vadd.f32 0.0, %v1976
      %v1978 = vpop.f32.mrb[0].mxu0
      %1979 = vmatprep.mubr.bf16.mxu0 %v304
      %1980 = vmatmul.mubr.bf16.gmra.mrb[0].mxu0 %v303
      %v1981 = vpop.f32.mrb[0].mxu0
      %v1982 = vadd.f32 0.0, %v1981
      %v1983 = vpop.f32.mrb[0].mxu0
      %v1984 = vpop.f32.mrb[0].mxu0
      %v1985 = vadd.f32 0.0, %v1984
      %v1986 = vpop.f32.mrb[0].mxu0
      %1987 = vdwg.mxu0
      %1988 = vmatprep.subr.bf16.mxu0 0
      %1989 = vmatpush1.bf16.msra.mxu0 %v1891
      %1990 = vmatprep.subr.bf16.mxu0 0
      %1991 = vmatpush1.bf16.msra.mxu0 %v1892
      %1992 = vmatprep.subr.bf16.mxu0 0
      %1993 = vmatpush1.bf16.msra.mxu0 %v1893
      %1994 = vmatprep.subr.bf16.mxu0 0
      %1995 = vmatpush1.bf16.msra.mxu0 %v1894
      %1996 = vmatprep.subr.bf16.mxu0 0
      %1997 = vmatpush1.bf16.msra.mxu0 %v1895
      %1998 = vmatprep.subr.bf16.mxu0 0
      %1999 = vmatpush1.bf16.msra.mxu0 %v1896
      %2000 = vmatprep.subr.bf16.mxu0 0
      %2001 = vmatpush1.bf16.msra.mxu0 %v1897
      %2002 = vmatprep.subr.bf16.mxu0 0
      %2003 = vmatpush1.bf16.msra.mxu0 %v1898
      %2004 = vmatprep.subr.bf16.mxu0 0
      %2005 = vmatpush1.bf16.msra.mxu0 %v1899
      %2006 = vmatprep.subr.bf16.mxu0 0
      %2007 = vmatpush1.bf16.msra.mxu0 %v1900
      %2008 = vmatprep.subr.bf16.mxu0 0
      %2009 = vmatpush1.bf16.msra.mxu0 %v1901
      %2010 = vmatprep.subr.bf16.mxu0 0
      %2011 = vmatpush1.bf16.msra.mxu0 %v1902
      %2012 = vmatprep.subr.bf16.mxu0 0
      %2013 = vmatpush1.bf16.msra.mxu0 %v1903
      %2014 = vmatprep.subr.bf16.mxu0 0
      %2015 = vmatpush1.bf16.msra.mxu0 %v1904
      %2016 = vmatprep.subr.bf16.mxu0 0
      %2017 = vmatpush1.bf16.msra.mxu0 %v1905
      %2018 = vmatprep.subr.bf16.mxu0 0
      %2019 = vmatpush1.bf16.msra.mxu0 %v1906
      %2020 = vmatprep.mubr.bf16.mxu0 %v302
      %2021 = vmatmul.mubr.bf16.gmra.mrb[0].mxu0 %v301
      %v2022 = vpop.f32.mrb[0].mxu0
      %v2023 = vadd.f32 %v1974, %v2022
      %v2024 = vpop.f32.mrb[0].mxu0
      %v2025 = vpop.f32.mrb[0].mxu0
      %v2026 = vadd.f32 %v1977, %v2025
      %v2027 = vpop.f32.mrb[0].mxu0
      %2028 = vmatprep.mubr.bf16.mxu0 %v306
      %2029 = vmatmul.mubr.bf16.gmra.mrb[0].mxu0 %v305
      %v2030 = vpop.f32.mrb[0].mxu0
      %v2031 = vadd.f32 %v1982, %v2030
      %v2032 = vpop.f32.mrb[0].mxu0
      %v2033 = vpop.f32.mrb[0].mxu0
      %v2034 = vadd.f32 %v1985, %v2033
      %v2035 = vpop.f32.mrb[0].mxu0
      %2036 = vdwg.mxu0
      %v2037 = vmax.f32 %v1678, %v2023
      %v2038 = vmax.f32 %v1679, %v2026
      %v2039 = vmax.f32 %v1680, %v2031
      %v2040 = vmax.f32 %v1681, %v2034
      %s2041 = scalar_lea.vmem %s193, 1280
      %v2042 = vld [vmem:[%s2041] sm:$0xf]
      %v2043 = vld [vmem:[%s2041 + $0x4] sm:$0xf]
      %v2044 = vld [vmem:[%s2041 + $0x8] sm:$0xf]
      %v2045 = vld [vmem:[%s2041 + $0xc] sm:$0xf]
      %v2046 = vld [vmem:[%s2041 + $0x10] sm:$0xf]
      %v2047 = vld [vmem:[%s2041 + $0x14] sm:$0xf]
      %v2048 = vld [vmem:[%s2041 + $0x18] sm:$0xf]
      %v2049 = vld [vmem:[%s2041 + $0x1c] sm:$0xf]
      %v2050 = vld [vmem:[%s2041 + $0x20] sm:$0xf]
      %v2051 = vld [vmem:[%s2041 + $0x24] sm:$0xf]
      %v2052 = vld [vmem:[%s2041 + $0x28] sm:$0xf]
      %v2053 = vld [vmem:[%s2041 + $0x2c] sm:$0xf]
      %v2054 = vld [vmem:[%s2041 + $0x30] sm:$0xf]
      %v2055 = vld [vmem:[%s2041 + $0x34] sm:$0xf]
      %v2056 = vld [vmem:[%s2041 + $0x38] sm:$0xf]
      %v2057 = vld [vmem:[%s2041 + $0x3c] sm:$0xf]
      %v2058 = vld [vmem:[%s2041 + $0x40] sm:$0xf]
      %v2059 = vld [vmem:[%s2041 + $0x44] sm:$0xf]
      %v2060 = vld [vmem:[%s2041 + $0x48] sm:$0xf]
      %v2061 = vld [vmem:[%s2041 + $0x4c] sm:$0xf]
      %v2062 = vld [vmem:[%s2041 + $0x50] sm:$0xf]
      %v2063 = vld [vmem:[%s2041 + $0x54] sm:$0xf]
      %v2064 = vld [vmem:[%s2041 + $0x58] sm:$0xf]
      %v2065 = vld [vmem:[%s2041 + $0x5c] sm:$0xf]
      %v2066 = vld [vmem:[%s2041 + $0x60] sm:$0xf]
      %v2067 = vld [vmem:[%s2041 + $0x64] sm:$0xf]
      %v2068 = vld [vmem:[%s2041 + $0x68] sm:$0xf]
      %v2069 = vld [vmem:[%s2041 + $0x6c] sm:$0xf]
      %v2070 = vld [vmem:[%s2041 + $0x70] sm:$0xf]
      %v2071 = vld [vmem:[%s2041 + $0x74] sm:$0xf]
      %v2072 = vld [vmem:[%s2041 + $0x78] sm:$0xf]
      %v2073 = vld [vmem:[%s2041 + $0x7c] sm:$0xf]
      %v2074 = vld [vmem:[%s2041 + $0x80] sm:$0xf]
      %v2075 = vld [vmem:[%s2041 + $0x84] sm:$0xf]
      %v2076 = vld [vmem:[%s2041 + $0x88] sm:$0xf]
      %v2077 = vld [vmem:[%s2041 + $0x8c] sm:$0xf]
      %v2078 = vld [vmem:[%s2041 + $0x90] sm:$0xf]
      %v2079 = vld [vmem:[%s2041 + $0x94] sm:$0xf]
      %v2080 = vld [vmem:[%s2041 + $0x98] sm:$0xf]
      %v2081 = vld [vmem:[%s2041 + $0x9c] sm:$0xf]
      %v2082 = vld [vmem:[%s2041 + $0xa0] sm:$0xf]
      %v2083 = vld [vmem:[%s2041 + $0xa4] sm:$0xf]
      %v2084 = vld [vmem:[%s2041 + $0xa8] sm:$0xf]
      %v2085 = vld [vmem:[%s2041 + $0xac] sm:$0xf]
      %v2086 = vld [vmem:[%s2041 + $0xb0] sm:$0xf]
      %v2087 = vld [vmem:[%s2041 + $0xb4] sm:$0xf]
      %v2088 = vld [vmem:[%s2041 + $0xb8] sm:$0xf]
      %v2089 = vld [vmem:[%s2041 + $0xbc] sm:$0xf]
      %v2090 = vld [vmem:[%s2041 + $0xc0] sm:$0xf]
      %v2091 = vld [vmem:[%s2041 + $0xc4] sm:$0xf]
      %v2092 = vld [vmem:[%s2041 + $0xc8] sm:$0xf]
      %v2093 = vld [vmem:[%s2041 + $0xcc] sm:$0xf]
      %v2094 = vld [vmem:[%s2041 + $0xd0] sm:$0xf]
      %v2095 = vld [vmem:[%s2041 + $0xd4] sm:$0xf]
      %v2096 = vld [vmem:[%s2041 + $0xd8] sm:$0xf]
      %v2097 = vld [vmem:[%s2041 + $0xdc] sm:$0xf]
      %v2098 = vld [vmem:[%s2041 + $0xe0] sm:$0xf]
      %v2099 = vld [vmem:[%s2041 + $0xe4] sm:$0xf]
      %v2100 = vld [vmem:[%s2041 + $0xe8] sm:$0xf]
      %v2101 = vld [vmem:[%s2041 + $0xec] sm:$0xf]
      %v2102 = vld [vmem:[%s2041 + $0xf0] sm:$0xf]
      %v2103 = vld [vmem:[%s2041 + $0xf4] sm:$0xf]
      %v2104 = vld [vmem:[%s2041 + $0xf8] sm:$0xf]
      %v2105 = vld [vmem:[%s2041 + $0xfc] sm:$0xf]
      %v2170 = vunpack.c.l.b16 %v2042
      %v2171 = vunpack.c.l.b16 %v2043
      %v2172 = vunpack.c.l.b16 %v2044
      %v2173 = vunpack.c.l.b16 %v2045
      %v2174 = vunpack.c.l.b16 %v2046
      %v2175 = vunpack.c.l.b16 %v2047
      %v2176 = vunpack.c.l.b16 %v2048
      %v2177 = vunpack.c.l.b16 %v2049
      %v2178 = vunpack.c.l.b16 %v2050
      %v2179 = vunpack.c.l.b16 %v2051
      %v2180 = vunpack.c.l.b16 %v2052
      %v2181 = vunpack.c.l.b16 %v2053
      %v2182 = vunpack.c.l.b16 %v2054
      %v2183 = vunpack.c.l.b16 %v2055
      %v2184 = vunpack.c.l.b16 %v2056
      %v2185 = vunpack.c.l.b16 %v2057
      %v2186 = vunpack.c.l.b16 %v2058
      %v2187 = vunpack.c.l.b16 %v2059
      %v2188 = vunpack.c.l.b16 %v2060
      %v2189 = vunpack.c.l.b16 %v2061
      %v2190 = vunpack.c.l.b16 %v2062
      %v2191 = vunpack.c.l.b16 %v2063
      %v2192 = vunpack.c.l.b16 %v2064
      %v2193 = vunpack.c.l.b16 %v2065
      %v2194 = vunpack.c.l.b16 %v2066
      %v2195 = vunpack.c.l.b16 %v2067
      %v2196 = vunpack.c.l.b16 %v2068
      %v2197 = vunpack.c.l.b16 %v2069
      %v2198 = vunpack.c.l.b16 %v2070
      %v2199 = vunpack.c.l.b16 %v2071
      %v2200 = vunpack.c.l.b16 %v2072
      %v2201 = vunpack.c.l.b16 %v2073
      %v2202 = vunpack.c.l.b16 %v2074
      %v2203 = vunpack.c.l.b16 %v2075
      %v2204 = vunpack.c.l.b16 %v2076
      %v2205 = vunpack.c.l.b16 %v2077
      %v2206 = vunpack.c.l.b16 %v2078
      %v2207 = vunpack.c.l.b16 %v2079
      %v2208 = vunpack.c.l.b16 %v2080
      %v2209 = vunpack.c.l.b16 %v2081
      %v2210 = vunpack.c.l.b16 %v2082
      %v2211 = vunpack.c.l.b16 %v2083
      %v2212 = vunpack.c.l.b16 %v2084
      %v2213 = vunpack.c.l.b16 %v2085
      %v2214 = vunpack.c.l.b16 %v2086
      %v2215 = vunpack.c.l.b16 %v2087
      %v2216 = vunpack.c.l.b16 %v2088
      %v2217 = vunpack.c.l.b16 %v2089
      %v2218 = vunpack.c.l.b16 %v2090
      %v2219 = vunpack.c.l.b16 %v2091
      %v2220 = vunpack.c.l.b16 %v2092
      %v2221 = vunpack.c.l.b16 %v2093
      %v2222 = vunpack.c.l.b16 %v2094
      %v2223 = vunpack.c.l.b16 %v2095
      %v2224 = vunpack.c.l.b16 %v2096
      %v2225 = vunpack.c.l.b16 %v2097
      %v2226 = vunpack.c.l.b16 %v2098
      %v2227 = vunpack.c.l.b16 %v2099
      %v2228 = vunpack.c.l.b16 %v2100
      %v2229 = vunpack.c.l.b16 %v2101
      %v2230 = vunpack.c.l.b16 %v2102
      %v2231 = vunpack.c.l.b16 %v2103
      %v2232 = vunpack.c.l.b16 %v2104
      %v2233 = vunpack.c.l.b16 %v2105
      %v2234 = vpack.c.b16 %v2171, %v2170
      %v2235 = vpack.c.b16 %v2173, %v2172
      %v2236 = vpack.c.b16 %v2175, %v2174
      %v2237 = vpack.c.b16 %v2177, %v2176
      %v2238 = vpack.c.b16 %v2179, %v2178
      %v2239 = vpack.c.b16 %v2181, %v2180
      %v2240 = vpack.c.b16 %v2183, %v2182
      %v2241 = vpack.c.b16 %v2185, %v2184
      %v2242 = vpack.c.b16 %v2187, %v2186
      %v2243 = vpack.c.b16 %v2189, %v2188
      %v2244 = vpack.c.b16 %v2191, %v2190
      %v2245 = vpack.c.b16 %v2193, %v2192
      %v2246 = vpack.c.b16 %v2195, %v2194
      %v2247 = vpack.c.b16 %v2197, %v2196
      %v2248 = vpack.c.b16 %v2199, %v2198
      %v2249 = vpack.c.b16 %v2201, %v2200
      %v2250 = vpack.c.b16 %v2203, %v2202
      %v2251 = vpack.c.b16 %v2205, %v2204
      %v2252 = vpack.c.b16 %v2207, %v2206
      %v2253 = vpack.c.b16 %v2209, %v2208
      %v2254 = vpack.c.b16 %v2211, %v2210
      %v2255 = vpack.c.b16 %v2213, %v2212
      %v2256 = vpack.c.b16 %v2215, %v2214
      %v2257 = vpack.c.b16 %v2217, %v2216
      %v2258 = vpack.c.b16 %v2219, %v2218
      %v2259 = vpack.c.b16 %v2221, %v2220
      %v2260 = vpack.c.b16 %v2223, %v2222
      %v2261 = vpack.c.b16 %v2225, %v2224
      %v2262 = vpack.c.b16 %v2227, %v2226
      %v2263 = vpack.c.b16 %v2229, %v2228
      %v2264 = vpack.c.b16 %v2231, %v2230
      %v2265 = vpack.c.b16 %v2233, %v2232
      %2298 = vmatprep.subr.bf16.mxu0 0
      %2299 = vmatpush1.bf16.msra.mxu0 %v2234
      %2300 = vmatprep.subr.bf16.mxu0 0
      %2301 = vmatpush1.bf16.msra.mxu0 %v2235
      %2302 = vmatprep.subr.bf16.mxu0 0
      %2303 = vmatpush1.bf16.msra.mxu0 %v2236
      %2304 = vmatprep.subr.bf16.mxu0 0
      %2305 = vmatpush1.bf16.msra.mxu0 %v2237
      %2306 = vmatprep.subr.bf16.mxu0 0
      %2307 = vmatpush1.bf16.msra.mxu0 %v2238
      %2308 = vmatprep.subr.bf16.mxu0 0
      %2309 = vmatpush1.bf16.msra.mxu0 %v2239
      %2310 = vmatprep.subr.bf16.mxu0 0
      %2311 = vmatpush1.bf16.msra.mxu0 %v2240
      %2312 = vmatprep.subr.bf16.mxu0 0
      %2313 = vmatpush1.bf16.msra.mxu0 %v2241
      %2314 = vmatprep.subr.bf16.mxu0 0
      %2315 = vmatpush1.bf16.msra.mxu0 %v2242
      %2316 = vmatprep.subr.bf16.mxu0 0
      %2317 = vmatpush1.bf16.msra.mxu0 %v2243
      %2318 = vmatprep.subr.bf16.mxu0 0
      %2319 = vmatpush1.bf16.msra.mxu0 %v2244
      %2320 = vmatprep.subr.bf16.mxu0 0
      %2321 = vmatpush1.bf16.msra.mxu0 %v2245
      %2322 = vmatprep.subr.bf16.mxu0 0
      %2323 = vmatpush1.bf16.msra.mxu0 %v2246
      %2324 = vmatprep.subr.bf16.mxu0 0
      %2325 = vmatpush1.bf16.msra.mxu0 %v2247
      %2326 = vmatprep.subr.bf16.mxu0 0
      %2327 = vmatpush1.bf16.msra.mxu0 %v2248
      %2328 = vmatprep.subr.bf16.mxu0 0
      %2329 = vmatpush1.bf16.msra.mxu0 %v2249
      %2330 = vmatprep.mubr.bf16.mxu0 %v300
      %2331 = vmatmul.mubr.bf16.gmra.mrb[0].mxu0 %v299
      %v2332 = vpop.f32.mrb[0].mxu0
      %v2333 = vadd.f32 0.0, %v2332
      %v2334 = vpop.f32.mrb[0].mxu0
      %v2335 = vpop.f32.mrb[0].mxu0
      %v2336 = vadd.f32 0.0, %v2335
      %v2337 = vpop.f32.mrb[0].mxu0
      %2338 = vmatprep.mubr.bf16.mxu0 %v304
      %2339 = vmatmul.mubr.bf16.gmra.mrb[0].mxu0 %v303
      %v2340 = vpop.f32.mrb[0].mxu0
      %v2341 = vadd.f32 0.0, %v2340
      %v2342 = vpop.f32.mrb[0].mxu0
      %v2343 = vpop.f32.mrb[0].mxu0
      %v2344 = vadd.f32 0.0, %v2343
      %v2345 = vpop.f32.mrb[0].mxu0
      %2346 = vdwg.mxu0
      %2347 = vmatprep.subr.bf16.mxu0 0
      %2348 = vmatpush1.bf16.msra.mxu0 %v2250
      %2349 = vmatprep.subr.bf16.mxu0 0
      %2350 = vmatpush1.bf16.msra.mxu0 %v2251
      %2351 = vmatprep.subr.bf16.mxu0 0
      %2352 = vmatpush1.bf16.msra.mxu0 %v2252
      %2353 = vmatprep.subr.bf16.mxu0 0
      %2354 = vmatpush1.bf16.msra.mxu0 %v2253
      %2355 = vmatprep.subr.bf16.mxu0 0
      %2356 = vmatpush1.bf16.msra.mxu0 %v2254
      %2357 = vmatprep.subr.bf16.mxu0 0
      %2358 = vmatpush1.bf16.msra.mxu0 %v2255
      %2359 = vmatprep.subr.bf16.mxu0 0
      %2360 = vmatpush1.bf16.msra.mxu0 %v2256
      %2361 = vmatprep.subr.bf16.mxu0 0
      %2362 = vmatpush1.bf16.msra.mxu0 %v2257
      %2363 = vmatprep.subr.bf16.mxu0 0
      %2364 = vmatpush1.bf16.msra.mxu0 %v2258
      %2365 = vmatprep.subr.bf16.mxu0 0
      %2366 = vmatpush1.bf16.msra.mxu0 %v2259
      %2367 = vmatprep.subr.bf16.mxu0 0
      %2368 = vmatpush1.bf16.msra.mxu0 %v2260
      %2369 = vmatprep.subr.bf16.mxu0 0
      %2370 = vmatpush1.bf16.msra.mxu0 %v2261
      %2371 = vmatprep.subr.bf16.mxu0 0
      %2372 = vmatpush1.bf16.msra.mxu0 %v2262
      %2373 = vmatprep.subr.bf16.mxu0 0
      %2374 = vmatpush1.bf16.msra.mxu0 %v2263
      %2375 = vmatprep.subr.bf16.mxu0 0
      %2376 = vmatpush1.bf16.msra.mxu0 %v2264
      %2377 = vmatprep.subr.bf16.mxu0 0
      %2378 = vmatpush1.bf16.msra.mxu0 %v2265
      %2379 = vmatprep.mubr.bf16.mxu0 %v302
      %2380 = vmatmul.mubr.bf16.gmra.mrb[0].mxu0 %v301
      %v2381 = vpop.f32.mrb[0].mxu0
      %v2382 = vadd.f32 %v2333, %v2381
      %v2383 = vpop.f32.mrb[0].mxu0
      %v2384 = vpop.f32.mrb[0].mxu0
      %v2385 = vadd.f32 %v2336, %v2384
      %v2386 = vpop.f32.mrb[0].mxu0
      %2387 = vmatprep.mubr.bf16.mxu0 %v306
      %2388 = vmatmul.mubr.bf16.gmra.mrb[0].mxu0 %v305
      %v2389 = vpop.f32.mrb[0].mxu0
      %v2390 = vadd.f32 %v2341, %v2389
      %v2391 = vpop.f32.mrb[0].mxu0
      %v2392 = vpop.f32.mrb[0].mxu0
      %v2393 = vadd.f32 %v2344, %v2392
      %v2394 = vpop.f32.mrb[0].mxu0
      %2395 = vdwg.mxu0
      %v2396 = vmax.f32 %v2037, %v2382
      %v2397 = vmax.f32 %v2038, %v2385
      %v2398 = vmax.f32 %v2039, %v2390
      %v2399 = vmax.f32 %v2040, %v2393
      %s2400 = scalar_lea.vmem %s193, 1536
      %v2401 = vld [vmem:[%s2400] sm:$0xf]
      %v2402 = vld [vmem:[%s2400 + $0x4] sm:$0xf]
      %v2403 = vld [vmem:[%s2400 + $0x8] sm:$0xf]
      %v2404 = vld [vmem:[%s2400 + $0xc] sm:$0xf]
      %v2405 = vld [vmem:[%s2400 + $0x10] sm:$0xf]
      %v2406 = vld [vmem:[%s2400 + $0x14] sm:$0xf]
      %v2407 = vld [vmem:[%s2400 + $0x18] sm:$0xf]
      %v2408 = vld [vmem:[%s2400 + $0x1c] sm:$0xf]
      %v2409 = vld [vmem:[%s2400 + $0x20] sm:$0xf]
      %v2410 = vld [vmem:[%s2400 + $0x24] sm:$0xf]
      %v2411 = vld [vmem:[%s2400 + $0x28] sm:$0xf]
      %v2412 = vld [vmem:[%s2400 + $0x2c] sm:$0xf]
      %v2413 = vld [vmem:[%s2400 + $0x30] sm:$0xf]
      %v2414 = vld [vmem:[%s2400 + $0x34] sm:$0xf]
      %v2415 = vld [vmem:[%s2400 + $0x38] sm:$0xf]
      %v2416 = vld [vmem:[%s2400 + $0x3c] sm:$0xf]
      %v2417 = vld [vmem:[%s2400 + $0x40] sm:$0xf]
      %v2418 = vld [vmem:[%s2400 + $0x44] sm:$0xf]
      %v2419 = vld [vmem:[%s2400 + $0x48] sm:$0xf]
      %v2420 = vld [vmem:[%s2400 + $0x4c] sm:$0xf]
      %v2421 = vld [vmem:[%s2400 + $0x50] sm:$0xf]
      %v2422 = vld [vmem:[%s2400 + $0x54] sm:$0xf]
      %v2423 = vld [vmem:[%s2400 + $0x58] sm:$0xf]
      %v2424 = vld [vmem:[%s2400 + $0x5c] sm:$0xf]
      %v2425 = vld [vmem:[%s2400 + $0x60] sm:$0xf]
      %v2426 = vld [vmem:[%s2400 + $0x64] sm:$0xf]
      %v2427 = vld [vmem:[%s2400 + $0x68] sm:$0xf]
      %v2428 = vld [vmem:[%s2400 + $0x6c] sm:$0xf]
      %v2429 = vld [vmem:[%s2400 + $0x70] sm:$0xf]
      %v2430 = vld [vmem:[%s2400 + $0x74] sm:$0xf]
      %v2431 = vld [vmem:[%s2400 + $0x78] sm:$0xf]
      %v2432 = vld [vmem:[%s2400 + $0x7c] sm:$0xf]
      %v2433 = vld [vmem:[%s2400 + $0x80] sm:$0xf]
      %v2434 = vld [vmem:[%s2400 + $0x84] sm:$0xf]
      %v2435 = vld [vmem:[%s2400 + $0x88] sm:$0xf]
      %v2436 = vld [vmem:[%s2400 + $0x8c] sm:$0xf]
      %v2437 = vld [vmem:[%s2400 + $0x90] sm:$0xf]
      %v2438 = vld [vmem:[%s2400 + $0x94] sm:$0xf]
      %v2439 = vld [vmem:[%s2400 + $0x98] sm:$0xf]
      %v2440 = vld [vmem:[%s2400 + $0x9c] sm:$0xf]
      %v2441 = vld [vmem:[%s2400 + $0xa0] sm:$0xf]
      %v2442 = vld [vmem:[%s2400 + $0xa4] sm:$0xf]
      %v2443 = vld [vmem:[%s2400 + $0xa8] sm:$0xf]
      %v2444 = vld [vmem:[%s2400 + $0xac] sm:$0xf]
      %v2445 = vld [vmem:[%s2400 + $0xb0] sm:$0xf]
      %v2446 = vld [vmem:[%s2400 + $0xb4] sm:$0xf]
      %v2447 = vld [vmem:[%s2400 + $0xb8] sm:$0xf]
      %v2448 = vld [vmem:[%s2400 + $0xbc] sm:$0xf]
      %v2449 = vld [vmem:[%s2400 + $0xc0] sm:$0xf]
      %v2450 = vld [vmem:[%s2400 + $0xc4] sm:$0xf]
      %v2451 = vld [vmem:[%s2400 + $0xc8] sm:$0xf]
      %v2452 = vld [vmem:[%s2400 + $0xcc] sm:$0xf]
      %v2453 = vld [vmem:[%s2400 + $0xd0] sm:$0xf]
      %v2454 = vld [vmem:[%s2400 + $0xd4] sm:$0xf]
      %v2455 = vld [vmem:[%s2400 + $0xd8] sm:$0xf]
      %v2456 = vld [vmem:[%s2400 + $0xdc] sm:$0xf]
      %v2457 = vld [vmem:[%s2400 + $0xe0] sm:$0xf]
      %v2458 = vld [vmem:[%s2400 + $0xe4] sm:$0xf]
      %v2459 = vld [vmem:[%s2400 + $0xe8] sm:$0xf]
      %v2460 = vld [vmem:[%s2400 + $0xec] sm:$0xf]
      %v2461 = vld [vmem:[%s2400 + $0xf0] sm:$0xf]
      %v2462 = vld [vmem:[%s2400 + $0xf4] sm:$0xf]
      %v2463 = vld [vmem:[%s2400 + $0xf8] sm:$0xf]
      %v2464 = vld [vmem:[%s2400 + $0xfc] sm:$0xf]
      %v2529 = vunpack.c.l.b16 %v2401
      %v2530 = vunpack.c.l.b16 %v2402
      %v2531 = vunpack.c.l.b16 %v2403
      %v2532 = vunpack.c.l.b16 %v2404
      %v2533 = vunpack.c.l.b16 %v2405
      %v2534 = vunpack.c.l.b16 %v2406
      %v2535 = vunpack.c.l.b16 %v2407
      %v2536 = vunpack.c.l.b16 %v2408
      %v2537 = vunpack.c.l.b16 %v2409
      %v2538 = vunpack.c.l.b16 %v2410
      %v2539 = vunpack.c.l.b16 %v2411
      %v2540 = vunpack.c.l.b16 %v2412
      %v2541 = vunpack.c.l.b16 %v2413
      %v2542 = vunpack.c.l.b16 %v2414
      %v2543 = vunpack.c.l.b16 %v2415
      %v2544 = vunpack.c.l.b16 %v2416
      %v2545 = vunpack.c.l.b16 %v2417
      %v2546 = vunpack.c.l.b16 %v2418
      %v2547 = vunpack.c.l.b16 %v2419
      %v2548 = vunpack.c.l.b16 %v2420
      %v2549 = vunpack.c.l.b16 %v2421
      %v2550 = vunpack.c.l.b16 %v2422
      %v2551 = vunpack.c.l.b16 %v2423
      %v2552 = vunpack.c.l.b16 %v2424
      %v2553 = vunpack.c.l.b16 %v2425
      %v2554 = vunpack.c.l.b16 %v2426
      %v2555 = vunpack.c.l.b16 %v2427
      %v2556 = vunpack.c.l.b16 %v2428
      %v2557 = vunpack.c.l.b16 %v2429
      %v2558 = vunpack.c.l.b16 %v2430
      %v2559 = vunpack.c.l.b16 %v2431
      %v2560 = vunpack.c.l.b16 %v2432
      %v2561 = vunpack.c.l.b16 %v2433
      %v2562 = vunpack.c.l.b16 %v2434
      %v2563 = vunpack.c.l.b16 %v2435
      %v2564 = vunpack.c.l.b16 %v2436
      %v2565 = vunpack.c.l.b16 %v2437
      %v2566 = vunpack.c.l.b16 %v2438
      %v2567 = vunpack.c.l.b16 %v2439
      %v2568 = vunpack.c.l.b16 %v2440
      %v2569 = vunpack.c.l.b16 %v2441
      %v2570 = vunpack.c.l.b16 %v2442
      %v2571 = vunpack.c.l.b16 %v2443
      %v2572 = vunpack.c.l.b16 %v2444
      %v2573 = vunpack.c.l.b16 %v2445
      %v2574 = vunpack.c.l.b16 %v2446
      %v2575 = vunpack.c.l.b16 %v2447
      %v2576 = vunpack.c.l.b16 %v2448
      %v2577 = vunpack.c.l.b16 %v2449
      %v2578 = vunpack.c.l.b16 %v2450
      %v2579 = vunpack.c.l.b16 %v2451
      %v2580 = vunpack.c.l.b16 %v2452
      %v2581 = vunpack.c.l.b16 %v2453
      %v2582 = vunpack.c.l.b16 %v2454
      %v2583 = vunpack.c.l.b16 %v2455
      %v2584 = vunpack.c.l.b16 %v2456
      %v2585 = vunpack.c.l.b16 %v2457
      %v2586 = vunpack.c.l.b16 %v2458
      %v2587 = vunpack.c.l.b16 %v2459
      %v2588 = vunpack.c.l.b16 %v2460
      %v2589 = vunpack.c.l.b16 %v2461
      %v2590 = vunpack.c.l.b16 %v2462
      %v2591 = vunpack.c.l.b16 %v2463
      %v2592 = vunpack.c.l.b16 %v2464
      %v2593 = vpack.c.b16 %v2530, %v2529
      %v2594 = vpack.c.b16 %v2532, %v2531
      %v2595 = vpack.c.b16 %v2534, %v2533
      %v2596 = vpack.c.b16 %v2536, %v2535
      %v2597 = vpack.c.b16 %v2538, %v2537
      %v2598 = vpack.c.b16 %v2540, %v2539
      %v2599 = vpack.c.b16 %v2542, %v2541
      %v2600 = vpack.c.b16 %v2544, %v2543
      %v2601 = vpack.c.b16 %v2546, %v2545
      %v2602 = vpack.c.b16 %v2548, %v2547
      %v2603 = vpack.c.b16 %v2550, %v2549
      %v2604 = vpack.c.b16 %v2552, %v2551
      %v2605 = vpack.c.b16 %v2554, %v2553
      %v2606 = vpack.c.b16 %v2556, %v2555
      %v2607 = vpack.c.b16 %v2558, %v2557
      %v2608 = vpack.c.b16 %v2560, %v2559
      %v2609 = vpack.c.b16 %v2562, %v2561
      %v2610 = vpack.c.b16 %v2564, %v2563
      %v2611 = vpack.c.b16 %v2566, %v2565
      %v2612 = vpack.c.b16 %v2568, %v2567
      %v2613 = vpack.c.b16 %v2570, %v2569
      %v2614 = vpack.c.b16 %v2572, %v2571
      %v2615 = vpack.c.b16 %v2574, %v2573
      %v2616 = vpack.c.b16 %v2576, %v2575
      %v2617 = vpack.c.b16 %v2578, %v2577
      %v2618 = vpack.c.b16 %v2580, %v2579
      %v2619 = vpack.c.b16 %v2582, %v2581
      %v2620 = vpack.c.b16 %v2584, %v2583
      %v2621 = vpack.c.b16 %v2586, %v2585
      %v2622 = vpack.c.b16 %v2588, %v2587
      %v2623 = vpack.c.b16 %v2590, %v2589
      %v2624 = vpack.c.b16 %v2592, %v2591
      %2657 = vmatprep.subr.bf16.mxu0 0
      %2658 = vmatpush1.bf16.msra.mxu0 %v2593
      %2659 = vmatprep.subr.bf16.mxu0 0
      %2660 = vmatpush1.bf16.msra.mxu0 %v2594
      %2661 = vmatprep.subr.bf16.mxu0 0
      %2662 = vmatpush1.bf16.msra.mxu0 %v2595
      %2663 = vmatprep.subr.bf16.mxu0 0
      %2664 = vmatpush1.bf16.msra.mxu0 %v2596
      %2665 = vmatprep.subr.bf16.mxu0 0
      %2666 = vmatpush1.bf16.msra.mxu0 %v2597
      %2667 = vmatprep.subr.bf16.mxu0 0
      %2668 = vmatpush1.bf16.msra.mxu0 %v2598
      %2669 = vmatprep.subr.bf16.mxu0 0
      %2670 = vmatpush1.bf16.msra.mxu0 %v2599
      %2671 = vmatprep.subr.bf16.mxu0 0
      %2672 = vmatpush1.bf16.msra.mxu0 %v2600
      %2673 = vmatprep.subr.bf16.mxu0 0
      %2674 = vmatpush1.bf16.msra.mxu0 %v2601
      %2675 = vmatprep.subr.bf16.mxu0 0
      %2676 = vmatpush1.bf16.msra.mxu0 %v2602
      %2677 = vmatprep.subr.bf16.mxu0 0
      %2678 = vmatpush1.bf16.msra.mxu0 %v2603
      %2679 = vmatprep.subr.bf16.mxu0 0
      %2680 = vmatpush1.bf16.msra.mxu0 %v2604
      %2681 = vmatprep.subr.bf16.mxu0 0
      %2682 = vmatpush1.bf16.msra.mxu0 %v2605
      %2683 = vmatprep.subr.bf16.mxu0 0
      %2684 = vmatpush1.bf16.msra.mxu0 %v2606
      %2685 = vmatprep.subr.bf16.mxu0 0
      %2686 = vmatpush1.bf16.msra.mxu0 %v2607
      %2687 = vmatprep.subr.bf16.mxu0 0
      %2688 = vmatpush1.bf16.msra.mxu0 %v2608
      %2689 = vmatprep.mubr.bf16.mxu0 %v300
      %2690 = vmatmul.mubr.bf16.gmra.mrb[0].mxu0 %v299
      %v2691 = vpop.f32.mrb[0].mxu0
      %v2692 = vadd.f32 0.0, %v2691
      %v2693 = vpop.f32.mrb[0].mxu0
      %v2694 = vpop.f32.mrb[0].mxu0
      %v2695 = vadd.f32 0.0, %v2694
      %v2696 = vpop.f32.mrb[0].mxu0
      %2697 = vmatprep.mubr.bf16.mxu0 %v304
      %2698 = vmatmul.mubr.bf16.gmra.mrb[0].mxu0 %v303
      %v2699 = vpop.f32.mrb[0].mxu0
      %v2700 = vadd.f32 0.0, %v2699
      %v2701 = vpop.f32.mrb[0].mxu0
      %v2702 = vpop.f32.mrb[0].mxu0
      %v2703 = vadd.f32 0.0, %v2702
      %v2704 = vpop.f32.mrb[0].mxu0
      %2705 = vdwg.mxu0
      %2706 = vmatprep.subr.bf16.mxu0 0
      %2707 = vmatpush1.bf16.msra.mxu0 %v2609
      %2708 = vmatprep.subr.bf16.mxu0 0
      %2709 = vmatpush1.bf16.msra.mxu0 %v2610
      %2710 = vmatprep.subr.bf16.mxu0 0
      %2711 = vmatpush1.bf16.msra.mxu0 %v2611
      %2712 = vmatprep.subr.bf16.mxu0 0
      %2713 = vmatpush1.bf16.msra.mxu0 %v2612
      %2714 = vmatprep.subr.bf16.mxu0 0
      %2715 = vmatpush1.bf16.msra.mxu0 %v2613
      %2716 = vmatprep.subr.bf16.mxu0 0
      %2717 = vmatpush1.bf16.msra.mxu0 %v2614
      %2718 = vmatprep.subr.bf16.mxu0 0
      %2719 = vmatpush1.bf16.msra.mxu0 %v2615
      %2720 = vmatprep.subr.bf16.mxu0 0
      %2721 = vmatpush1.bf16.msra.mxu0 %v2616
      %2722 = vmatprep.subr.bf16.mxu0 0
      %2723 = vmatpush1.bf16.msra.mxu0 %v2617
      %2724 = vmatprep.subr.bf16.mxu0 0
      %2725 = vmatpush1.bf16.msra.mxu0 %v2618
      %2726 = vmatprep.subr.bf16.mxu0 0
      %2727 = vmatpush1.bf16.msra.mxu0 %v2619
      %2728 = vmatprep.subr.bf16.mxu0 0
      %2729 = vmatpush1.bf16.msra.mxu0 %v2620
      %2730 = vmatprep.subr.bf16.mxu0 0
      %2731 = vmatpush1.bf16.msra.mxu0 %v2621
      %2732 = vmatprep.subr.bf16.mxu0 0
      %2733 = vmatpush1.bf16.msra.mxu0 %v2622
      %2734 = vmatprep.subr.bf16.mxu0 0
      %2735 = vmatpush1.bf16.msra.mxu0 %v2623
      %2736 = vmatprep.subr.bf16.mxu0 0
      %2737 = vmatpush1.bf16.msra.mxu0 %v2624
      %2738 = vmatprep.mubr.bf16.mxu0 %v302
      %2739 = vmatmul.mubr.bf16.gmra.mrb[0].mxu0 %v301
      %v2740 = vpop.f32.mrb[0].mxu0
      %v2741 = vadd.f32 %v2692, %v2740
      %v2742 = vpop.f32.mrb[0].mxu0
      %v2743 = vpop.f32.mrb[0].mxu0
      %v2744 = vadd.f32 %v2695, %v2743
      %v2745 = vpop.f32.mrb[0].mxu0
      %2746 = vmatprep.mubr.bf16.mxu0 %v306
      %2747 = vmatmul.mubr.bf16.gmra.mrb[0].mxu0 %v305
      %v2748 = vpop.f32.mrb[0].mxu0
      %v2749 = vadd.f32 %v2700, %v2748
      %v2750 = vpop.f32.mrb[0].mxu0
      %v2751 = vpop.f32.mrb[0].mxu0
      %v2752 = vadd.f32 %v2703, %v2751
      %v2753 = vpop.f32.mrb[0].mxu0
      %2754 = vdwg.mxu0
      %v2755 = vmax.f32 %v2396, %v2741
      %v2756 = vmax.f32 %v2397, %v2744
      %v2757 = vmax.f32 %v2398, %v2749
      %v2758 = vmax.f32 %v2399, %v2752
      %s2759 = scalar_lea.vmem %s193, 1792
      %v2760 = vld [vmem:[%s2759] sm:$0xf]
      %v2761 = vld [vmem:[%s2759 + $0x4] sm:$0xf]
      %v2762 = vld [vmem:[%s2759 + $0x8] sm:$0xf]
      %v2763 = vld [vmem:[%s2759 + $0xc] sm:$0xf]
      %v2764 = vld [vmem:[%s2759 + $0x10] sm:$0xf]
      %v2765 = vld [vmem:[%s2759 + $0x14] sm:$0xf]
      %v2766 = vld [vmem:[%s2759 + $0x18] sm:$0xf]
      %v2767 = vld [vmem:[%s2759 + $0x1c] sm:$0xf]
      %v2768 = vld [vmem:[%s2759 + $0x20] sm:$0xf]
      %v2769 = vld [vmem:[%s2759 + $0x24] sm:$0xf]
      %v2770 = vld [vmem:[%s2759 + $0x28] sm:$0xf]
      %v2771 = vld [vmem:[%s2759 + $0x2c] sm:$0xf]
      %v2772 = vld [vmem:[%s2759 + $0x30] sm:$0xf]
      %v2773 = vld [vmem:[%s2759 + $0x34] sm:$0xf]
      %v2774 = vld [vmem:[%s2759 + $0x38] sm:$0xf]
      %v2775 = vld [vmem:[%s2759 + $0x3c] sm:$0xf]
      %v2776 = vld [vmem:[%s2759 + $0x40] sm:$0xf]
      %v2777 = vld [vmem:[%s2759 + $0x44] sm:$0xf]
      %v2778 = vld [vmem:[%s2759 + $0x48] sm:$0xf]
      %v2779 = vld [vmem:[%s2759 + $0x4c] sm:$0xf]
      %v2780 = vld [vmem:[%s2759 + $0x50] sm:$0xf]
      %v2781 = vld [vmem:[%s2759 + $0x54] sm:$0xf]
      %v2782 = vld [vmem:[%s2759 + $0x58] sm:$0xf]
      %v2783 = vld [vmem:[%s2759 + $0x5c] sm:$0xf]
      %v2784 = vld [vmem:[%s2759 + $0x60] sm:$0xf]
      %v2785 = vld [vmem:[%s2759 + $0x64] sm:$0xf]
      %v2786 = vld [vmem:[%s2759 + $0x68] sm:$0xf]
      %v2787 = vld [vmem:[%s2759 + $0x6c] sm:$0xf]
      %v2788 = vld [vmem:[%s2759 + $0x70] sm:$0xf]
      %v2789 = vld [vmem:[%s2759 + $0x74] sm:$0xf]
      %v2790 = vld [vmem:[%s2759 + $0x78] sm:$0xf]
      %v2791 = vld [vmem:[%s2759 + $0x7c] sm:$0xf]
      %v2792 = vld [vmem:[%s2759 + $0x80] sm:$0xf]
      %v2793 = vld [vmem:[%s2759 + $0x84] sm:$0xf]
      %v2794 = vld [vmem:[%s2759 + $0x88] sm:$0xf]
      %v2795 = vld [vmem:[%s2759 + $0x8c] sm:$0xf]
      %v2796 = vld [vmem:[%s2759 + $0x90] sm:$0xf]
      %v2797 = vld [vmem:[%s2759 + $0x94] sm:$0xf]
      %v2798 = vld [vmem:[%s2759 + $0x98] sm:$0xf]
      %v2799 = vld [vmem:[%s2759 + $0x9c] sm:$0xf]
      %v2800 = vld [vmem:[%s2759 + $0xa0] sm:$0xf]
      %v2801 = vld [vmem:[%s2759 + $0xa4] sm:$0xf]
      %v2802 = vld [vmem:[%s2759 + $0xa8] sm:$0xf]
      %v2803 = vld [vmem:[%s2759 + $0xac] sm:$0xf]
      %v2804 = vld [vmem:[%s2759 + $0xb0] sm:$0xf]
      %v2805 = vld [vmem:[%s2759 + $0xb4] sm:$0xf]
      %v2806 = vld [vmem:[%s2759 + $0xb8] sm:$0xf]
      %v2807 = vld [vmem:[%s2759 + $0xbc] sm:$0xf]
      %v2808 = vld [vmem:[%s2759 + $0xc0] sm:$0xf]
      %v2809 = vld [vmem:[%s2759 + $0xc4] sm:$0xf]
      %v2810 = vld [vmem:[%s2759 + $0xc8] sm:$0xf]
      %v2811 = vld [vmem:[%s2759 + $0xcc] sm:$0xf]
      %v2812 = vld [vmem:[%s2759 + $0xd0] sm:$0xf]
      %v2813 = vld [vmem:[%s2759 + $0xd4] sm:$0xf]
      %v2814 = vld [vmem:[%s2759 + $0xd8] sm:$0xf]
      %v2815 = vld [vmem:[%s2759 + $0xdc] sm:$0xf]
      %v2816 = vld [vmem:[%s2759 + $0xe0] sm:$0xf]
      %v2817 = vld [vmem:[%s2759 + $0xe4] sm:$0xf]
      %v2818 = vld [vmem:[%s2759 + $0xe8] sm:$0xf]
      %v2819 = vld [vmem:[%s2759 + $0xec] sm:$0xf]
      %v2820 = vld [vmem:[%s2759 + $0xf0] sm:$0xf]
      %v2821 = vld [vmem:[%s2759 + $0xf4] sm:$0xf]
      %v2822 = vld [vmem:[%s2759 + $0xf8] sm:$0xf]
      %v2823 = vld [vmem:[%s2759 + $0xfc] sm:$0xf]
      %v2888 = vunpack.c.l.b16 %v2760
      %v2889 = vunpack.c.l.b16 %v2761
      %v2890 = vunpack.c.l.b16 %v2762
      %v2891 = vunpack.c.l.b16 %v2763
      %v2892 = vunpack.c.l.b16 %v2764
      %v2893 = vunpack.c.l.b16 %v2765
      %v2894 = vunpack.c.l.b16 %v2766
      %v2895 = vunpack.c.l.b16 %v2767
      %v2896 = vunpack.c.l.b16 %v2768
      %v2897 = vunpack.c.l.b16 %v2769
      %v2898 = vunpack.c.l.b16 %v2770
      %v2899 = vunpack.c.l.b16 %v2771
      %v2900 = vunpack.c.l.b16 %v2772
      %v2901 = vunpack.c.l.b16 %v2773
      %v2902 = vunpack.c.l.b16 %v2774
      %v2903 = vunpack.c.l.b16 %v2775
      %v2904 = vunpack.c.l.b16 %v2776
      %v2905 = vunpack.c.l.b16 %v2777
      %v2906 = vunpack.c.l.b16 %v2778
      %v2907 = vunpack.c.l.b16 %v2779
      %v2908 = vunpack.c.l.b16 %v2780
      %v2909 = vunpack.c.l.b16 %v2781
      %v2910 = vunpack.c.l.b16 %v2782
      %v2911 = vunpack.c.l.b16 %v2783
      %v2912 = vunpack.c.l.b16 %v2784
      %v2913 = vunpack.c.l.b16 %v2785
      %v2914 = vunpack.c.l.b16 %v2786
      %v2915 = vunpack.c.l.b16 %v2787
      %v2916 = vunpack.c.l.b16 %v2788
      %v2917 = vunpack.c.l.b16 %v2789
      %v2918 = vunpack.c.l.b16 %v2790
      %v2919 = vunpack.c.l.b16 %v2791
      %v2920 = vunpack.c.l.b16 %v2792
      %v2921 = vunpack.c.l.b16 %v2793
      %v2922 = vunpack.c.l.b16 %v2794
      %v2923 = vunpack.c.l.b16 %v2795
      %v2924 = vunpack.c.l.b16 %v2796
      %v2925 = vunpack.c.l.b16 %v2797
      %v2926 = vunpack.c.l.b16 %v2798
      %v2927 = vunpack.c.l.b16 %v2799
      %v2928 = vunpack.c.l.b16 %v2800
      %v2929 = vunpack.c.l.b16 %v2801
      %v2930 = vunpack.c.l.b16 %v2802
      %v2931 = vunpack.c.l.b16 %v2803
      %v2932 = vunpack.c.l.b16 %v2804
      %v2933 = vunpack.c.l.b16 %v2805
      %v2934 = vunpack.c.l.b16 %v2806
      %v2935 = vunpack.c.l.b16 %v2807
      %v2936 = vunpack.c.l.b16 %v2808
      %v2937 = vunpack.c.l.b16 %v2809
      %v2938 = vunpack.c.l.b16 %v2810
      %v2939 = vunpack.c.l.b16 %v2811
      %v2940 = vunpack.c.l.b16 %v2812
      %v2941 = vunpack.c.l.b16 %v2813
      %v2942 = vunpack.c.l.b16 %v2814
      %v2943 = vunpack.c.l.b16 %v2815
      %v2944 = vunpack.c.l.b16 %v2816
      %v2945 = vunpack.c.l.b16 %v2817
      %v2946 = vunpack.c.l.b16 %v2818
      %v2947 = vunpack.c.l.b16 %v2819
      %v2948 = vunpack.c.l.b16 %v2820
      %v2949 = vunpack.c.l.b16 %v2821
      %v2950 = vunpack.c.l.b16 %v2822
      %v2951 = vunpack.c.l.b16 %v2823
      %v2952 = vpack.c.b16 %v2889, %v2888
      %v2953 = vpack.c.b16 %v2891, %v2890
      %v2954 = vpack.c.b16 %v2893, %v2892
      %v2955 = vpack.c.b16 %v2895, %v2894
      %v2956 = vpack.c.b16 %v2897, %v2896
      %v2957 = vpack.c.b16 %v2899, %v2898
      %v2958 = vpack.c.b16 %v2901, %v2900
      %v2959 = vpack.c.b16 %v2903, %v2902
      %v2960 = vpack.c.b16 %v2905, %v2904
      %v2961 = vpack.c.b16 %v2907, %v2906
      %v2962 = vpack.c.b16 %v2909, %v2908
      %v2963 = vpack.c.b16 %v2911, %v2910
      %v2964 = vpack.c.b16 %v2913, %v2912
      %v2965 = vpack.c.b16 %v2915, %v2914
      %v2966 = vpack.c.b16 %v2917, %v2916
      %v2967 = vpack.c.b16 %v2919, %v2918
      %v2968 = vpack.c.b16 %v2921, %v2920
      %v2969 = vpack.c.b16 %v2923, %v2922
      %v2970 = vpack.c.b16 %v2925, %v2924
      %v2971 = vpack.c.b16 %v2927, %v2926
      %v2972 = vpack.c.b16 %v2929, %v2928
      %v2973 = vpack.c.b16 %v2931, %v2930
      %v2974 = vpack.c.b16 %v2933, %v2932
      %v2975 = vpack.c.b16 %v2935, %v2934
      %v2976 = vpack.c.b16 %v2937, %v2936
      %v2977 = vpack.c.b16 %v2939, %v2938
      %v2978 = vpack.c.b16 %v2941, %v2940
      %v2979 = vpack.c.b16 %v2943, %v2942
      %v2980 = vpack.c.b16 %v2945, %v2944
      %v2981 = vpack.c.b16 %v2947, %v2946
      %v2982 = vpack.c.b16 %v2949, %v2948
      %v2983 = vpack.c.b16 %v2951, %v2950
      %3016 = vmatprep.subr.bf16.mxu0 0
      %3017 = vmatpush1.bf16.msra.mxu0 %v2952
      %3018 = vmatprep.subr.bf16.mxu0 0
      %3019 = vmatpush1.bf16.msra.mxu0 %v2953
      %3020 = vmatprep.subr.bf16.mxu0 0
      %3021 = vmatpush1.bf16.msra.mxu0 %v2954
      %3022 = vmatprep.subr.bf16.mxu0 0
      %3023 = vmatpush1.bf16.msra.mxu0 %v2955
      %3024 = vmatprep.subr.bf16.mxu0 0
      %3025 = vmatpush1.bf16.msra.mxu0 %v2956
      %3026 = vmatprep.subr.bf16.mxu0 0
      %3027 = vmatpush1.bf16.msra.mxu0 %v2957
      %3028 = vmatprep.subr.bf16.mxu0 0
      %3029 = vmatpush1.bf16.msra.mxu0 %v2958
      %3030 = vmatprep.subr.bf16.mxu0 0
      %3031 = vmatpush1.bf16.msra.mxu0 %v2959
      %3032 = vmatprep.subr.bf16.mxu0 0
      %3033 = vmatpush1.bf16.msra.mxu0 %v2960
      %3034 = vmatprep.subr.bf16.mxu0 0
      %3035 = vmatpush1.bf16.msra.mxu0 %v2961
      %3036 = vmatprep.subr.bf16.mxu0 0
      %3037 = vmatpush1.bf16.msra.mxu0 %v2962
      %3038 = vmatprep.subr.bf16.mxu0 0
      %3039 = vmatpush1.bf16.msra.mxu0 %v2963
      %3040 = vmatprep.subr.bf16.mxu0 0
      %3041 = vmatpush1.bf16.msra.mxu0 %v2964
      %3042 = vmatprep.subr.bf16.mxu0 0
      %3043 = vmatpush1.bf16.msra.mxu0 %v2965
      %3044 = vmatprep.subr.bf16.mxu0 0
      %3045 = vmatpush1.bf16.msra.mxu0 %v2966
      %3046 = vmatprep.subr.bf16.mxu0 0
      %3047 = vmatpush1.bf16.msra.mxu0 %v2967
      %3048 = vmatprep.mubr.bf16.mxu0 %v300
      %3049 = vmatmul.mubr.bf16.gmra.mrb[0].mxu0 %v299
      %v3050 = vpop.f32.mrb[0].mxu0
      %v3051 = vadd.f32 0.0, %v3050
      %v3052 = vpop.f32.mrb[0].mxu0
      %v3053 = vpop.f32.mrb[0].mxu0
      %v3054 = vadd.f32 0.0, %v3053
      %v3055 = vpop.f32.mrb[0].mxu0
      %3056 = vmatprep.mubr.bf16.mxu0 %v304
      %3057 = vmatmul.mubr.bf16.gmra.mrb[0].mxu0 %v303
      %v3058 = vpop.f32.mrb[0].mxu0
      %v3059 = vadd.f32 0.0, %v3058
      %v3060 = vpop.f32.mrb[0].mxu0
      %v3061 = vpop.f32.mrb[0].mxu0
      %v3062 = vadd.f32 0.0, %v3061
      %v3063 = vpop.f32.mrb[0].mxu0
      %3064 = vdwg.mxu0
      %3065 = vmatprep.subr.bf16.mxu0 0
      %3066 = vmatpush1.bf16.msra.mxu0 %v2968
      %3067 = vmatprep.subr.bf16.mxu0 0
      %3068 = vmatpush1.bf16.msra.mxu0 %v2969
      %3069 = vmatprep.subr.bf16.mxu0 0
      %3070 = vmatpush1.bf16.msra.mxu0 %v2970
      %3071 = vmatprep.subr.bf16.mxu0 0
      %3072 = vmatpush1.bf16.msra.mxu0 %v2971
      %3073 = vmatprep.subr.bf16.mxu0 0
      %3074 = vmatpush1.bf16.msra.mxu0 %v2972
      %3075 = vmatprep.subr.bf16.mxu0 0
      %3076 = vmatpush1.bf16.msra.mxu0 %v2973
      %3077 = vmatprep.subr.bf16.mxu0 0
      %3078 = vmatpush1.bf16.msra.mxu0 %v2974
      %3079 = vmatprep.subr.bf16.mxu0 0
      %3080 = vmatpush1.bf16.msra.mxu0 %v2975
      %3081 = vmatprep.subr.bf16.mxu0 0
      %3082 = vmatpush1.bf16.msra.mxu0 %v2976
      %3083 = vmatprep.subr.bf16.mxu0 0
      %3084 = vmatpush1.bf16.msra.mxu0 %v2977
      %3085 = vmatprep.subr.bf16.mxu0 0
      %3086 = vmatpush1.bf16.msra.mxu0 %v2978
      %3087 = vmatprep.subr.bf16.mxu0 0
      %3088 = vmatpush1.bf16.msra.mxu0 %v2979
      %3089 = vmatprep.subr.bf16.mxu0 0
      %3090 = vmatpush1.bf16.msra.mxu0 %v2980
      %3091 = vmatprep.subr.bf16.mxu0 0
      %3092 = vmatpush1.bf16.msra.mxu0 %v2981
      %3093 = vmatprep.subr.bf16.mxu0 0
      %3094 = vmatpush1.bf16.msra.mxu0 %v2982
      %3095 = vmatprep.subr.bf16.mxu0 0
      %3096 = vmatpush1.bf16.msra.mxu0 %v2983
      %3097 = vmatprep.mubr.bf16.mxu0 %v302
      %3098 = vmatmul.mubr.bf16.gmra.mrb[0].mxu0 %v301
      %v3099 = vpop.f32.mrb[0].mxu0
      %v3100 = vadd.f32 %v3051, %v3099
      %v3101 = vpop.f32.mrb[0].mxu0
      %v3102 = vpop.f32.mrb[0].mxu0
      %v3103 = vadd.f32 %v3054, %v3102
      %v3104 = vpop.f32.mrb[0].mxu0
      %3105 = vmatprep.mubr.bf16.mxu0 %v306
      %3106 = vmatmul.mubr.bf16.gmra.mrb[0].mxu0 %v305
      %v3107 = vpop.f32.mrb[0].mxu0
      %v3108 = vadd.f32 %v3059, %v3107
      %v3109 = vpop.f32.mrb[0].mxu0
      %v3110 = vpop.f32.mrb[0].mxu0
      %v3111 = vadd.f32 %v3062, %v3110
      %v3112 = vpop.f32.mrb[0].mxu0
      %3113 = vdwg.mxu0
      %v3114 = vmax.f32 %v2755, %v3100
      %v3115 = vmax.f32 %v2756, %v3103
      %v3116 = vmax.f32 %v2757, %v3108
      %v3117 = vmax.f32 %v2758, %v3111
      %v3118 = vld [vmem:[%s2] sm:$0xff]
      %v3119 = vld [vmem:[%s2 + $0x8] sm:$0xff]
      %v3120 = vld [vmem:[%s2 + $0x10] sm:$0xff]
      %v3121 = vld [vmem:[%s2 + $0x18] sm:$0xff]
      %3123 = vset.pattern.permute.xlu0 0
      %3124 = vperm.xlu0 %3123, %v3118
      %v3125 = vpop.permute.xlu0 %3124
      %3128 = vset.pattern.permute.xlu0 0
      %3129 = vperm.xlu0 %3128, %v3119
      %v3130 = vpop.permute.xlu0 %3129
      %3133 = vset.pattern.permute.xlu0 0
      %3134 = vperm.xlu0 %3133, %v3120
      %v3135 = vpop.permute.xlu0 %3134
      %3138 = vset.pattern.permute.xlu0 0
      %3139 = vperm.xlu0 %3138, %v3121
      %v3140 = vpop.permute.xlu0 %3139
      %v3142 = vadd.f32 %v3114, %v3125
      %v3143 = vadd.f32 %v3115, %v3130
      %v3144 = vadd.f32 %v3116, %v3135
      %v3145 = vadd.f32 %v3117, %v3140
      %v3146 = vmax.f32 %v3142, 0.0
      %v3147 = vmax.f32 %v3143, 0.0
      %v3148 = vmax.f32 %v3144, 0.0
      %v3149 = vmax.f32 %v3145, 0.0
      %3150 = vst [vmem:[%s201] sm:$0xff] %v3146
      %3151 = vst [vmem:[%s201 + $0x8] sm:$0xff] %v3147
      %3152 = vst [vmem:[%s201 + $0x10] sm:$0xff] %v3148
      %3153 = vst [vmem:[%s201 + $0x18] sm:$0xff] %v3149
      %p3154 = scmp.lt.s32.totalorder %s18, 1
      %s3155 = scalar_select %p3154, %s18, 1
      %p3156 = scmp.lt.s32.totalorder %s19, 0
      %s3157 = scalar_select %p3156, %s19, 0
      %s3158 = smul.addr %s3155, 4
      %s3159 = sadd.s32 %s3157, %s3158
      %s3160 = smul.addr %s3159, 8
      %s3161 = scalar_lea.vmem %s3, %s3160
      // Predicated region
      $region33: #{perception_net_forward.3} parent=31 // pred_check
        %p3162 = pneg %p116
      $region34: #{perception_net_forward.3} parent=31 // pred_check_branch
        %3164 = sbr.rel (%p3162) target = $region36
      $region35: #{perception_net_forward.3} parent=31 // pred_region
        _
      $region36: #{perception_net_forward.3} parent=31 // pred_fallthru
        _
    $region32: #{perception_net_forward.3} parent=5 // pred_fallthru
      _
    %p3165 = scmp.le.s32.totalorder 2, %s9
    // Predicated region
    $region37: #{perception_net_forward.3} parent=5 // pred_check
      %p3166 = pneg %p3165
    $region38: #{perception_net_forward.3} parent=5 // pred_check_branch
      %3168 = sbr.rel (%p3166) target = $region40
    $region39: #{perception_net_forward.3} parent=5 // pred_region
      %s3169 = ssub.s32 %s9, 2
      // Predicated region
      $region41: #{perception_net_forward.3} parent=39 // pred_check
        %p3170 = pneg %p122
      $region42: #{perception_net_forward.3} parent=39 // pred_check_branch
        %3172 = sbr.rel (%p3170) target = $region44
      $region43: #{perception_net_forward.3} parent=39 // pred_region
        %p3173 = scmp.lt.s32.totalorder %s20, 1
        %s3174 = scalar_select %p3173, %s20, 1
        %p3175 = scmp.lt.s32.totalorder %s21, 0
        %s3176 = scalar_select %p3175, %s21, 0
        %s3177 = smul.addr %s3174, 4
        %s3178 = sadd.s32 %s3176, %s3177
        %s3179 = smul.addr %s3178, 8
        %s3180 = scalar_lea.vmem %s3, %s3179
      $region44: #{perception_net_forward.3} parent=39 // pred_fallthru
        _
    $region40: #{perception_net_forward.3} parent=5 // pred_fallthru
      _
  $region6: #{perception_net_forward.3} parent=0 // loop_footer
    %s13 = sadd.s32 1, %s9
  $region7: #{perception_net_forward.3} parent=0 // loop_footer_branch
    %8 = sbr.rel target = $region3
  $region8: #{perception_net_forward.3} parent=0 // loop_exit
    _

</llo_original>
